<compile_context>
chip_gen: v7x
topology: tpu7x:2x2x1
jax: 0.10.0
libtpu: 0.0.40
codegen_flags: <defaults>
</compile_context>

<pallas_src>
import functools

import jax
import jax.numpy as jnp
from jax import lax
from jax.experimental import pallas as pl
from jax.experimental.pallas import tpu as pltpu

VMEM_SPEC = pl.BlockSpec(memory_space=pltpu.MemorySpace.VMEM)


# ------------------------------ fused kernel -------------------------------- #

def _fused_lstm_bf_kernel(
    x_ref,      # (T*N, C)   f32   rows ordered (t, b, f)
    wih1_ref,   # (C, 4H)    f32   LN-gamma folded in, gate order [i|f|g|o]
    b1_ref,     # (1, 4H)    f32   b_ih1 + b_hh1 + ln_beta @ wih1
    whh1_ref,   # (H, 4H)    f32
    w2_ref,     # (2H, 4H)   f32   stacked [W_ih2 ; W_hh2]
    b2_ref,     # (1, 4H)    f32   b_ih2 + b_hh2
    dw1_ref,    # (H, H)     f32
    db1_ref,    # (1, H)     f32
    dw2t_ref,   # (2M, H)    f32   transposed second linear
    db2t_ref,   # (2M, 1)    f32
    o_ref,      # (2M, T*N)  f32   lane-dense transposed output
    gx_ref,     # scratch (T*N, 4H) f32  hoisted LSTM1 input projection
    h2s_ref,    # scratch (T*N, H)  f32  LSTM2 hidden states
    *, T, N, H,
):
    f32 = jnp.float32

    # -------- LayerNorm statistics (affine folded into wih1/b1 on host) ------
    x = x_ref[...]                                            # (T*N, C)
    mean = jnp.mean(x, axis=-1, keepdims=True)
    xc = x - mean
    var = jnp.mean(xc * xc, axis=-1, keepdims=True)
    xhat = xc * lax.rsqrt(var + 1e-5)                         # (T*N, C)

    # ---- LSTM1 input projection hoisted out of the recurrence (one wide dot),
    # kept lane-dense in (T*N, 4H); per-step loads are dense (N, 128) tiles. ---
    gx_ref[...] = (jnp.dot(xhat, wih1_ref[...], preferred_element_type=f32)
                   + b1_ref[...])

    # Small, lane-dense weights held live across the loop (~13 vregs total).
    whh1 = whh1_ref[...]                                      # (H, 4H)
    w2 = w2_ref[...]                                          # (2H, 4H)
    b2 = b2_ref[...]                                          # (1, 4H)

    h1 = jnp.zeros((N, H), f32)
    c1 = jnp.zeros((N, H), f32)
    h2 = jnp.zeros((N, H), f32)
    c2 = jnp.zeros((N, H), f32)

    # ------- two stacked LSTM layers fused in ONE unrolled time loop ---------
    for t in range(T):                                        # T static -> unrolled
        row = t * N

        # ---- layer 1: single fused 4H-lane recurrent matmul -----------------
        z1 = gx_ref[row:row + N, :] + jnp.dot(h1, whh1,
                                              preferred_element_type=f32)  # (N,4H)
        s1 = jax.nn.sigmoid(z1)                               # one wide EUP pass
        g1 = jnp.tanh(z1[:, 2 * H:3 * H])
        c1 = s1[:, H:2 * H] * c1 + s1[:, 0:H] * g1
        h1 = s1[:, 3 * H:4 * H] * jnp.tanh(c1)

        # ---- layer 2: [h1|h2] against stacked weight, single matmul ---------
        hcat = jnp.concatenate([h1, h2], axis=-1)             # (N, 2H)
        z2 = b2 + jnp.dot(hcat, w2, preferred_element_type=f32)  # (N, 4H)
        s2 = jax.nn.sigmoid(z2)
        g2 = jnp.tanh(z2[:, 2 * H:3 * H])
        c2 = s2[:, H:2 * H] * c2 + s2[:, 0:H] * g2
        h2 = s2[:, 3 * H:4 * H] * jnp.tanh(c2)

        h2s_ref[row:row + N, :] = h2

    # ---------------- MLP epilogue: Linear -> ReLU -> Linear -----------------
    hs = h2s_ref[...]                                         # (T*N, H)
    hid = jnp.dot(hs, dw1_ref[...], preferred_element_type=f32) + db1_ref[...]
    hid = jnp.maximum(hid, 0.0)                               # (T*N, H)
    # Second linear computed transposed -> (2M, T*N) lane-dense output store.
    out_t = lax.dot_general(dw2t_ref[...], hid,
                            (((1,), (1,)), ((), ())),
                            preferred_element_type=f32)       # (2M, T*N)
    o_ref[...] = out_t + db2t_ref[...]


# ------------------------------- forward ------------------------------------ #

def lstm_bf_forward(params, embed_x, M, hid_node):
    """embed_x: (B, C, T, F) -> (B, T, F, M, 2)"""
    B, C, T, F = embed_x.shape
    H = hid_node
    N = B * F
    ROWS = T * N
    f32 = jnp.float32

    # Single small XLA permute so the kernel sees rows ordered (t, b, f); all
    # activation-sized data movement after this happens inside the kernel.
    x = jnp.transpose(embed_x, (2, 0, 3, 1)).reshape(ROWS, C).astype(f32)

    ln_g = params["ln_g"].astype(f32)                         # (C,)
    ln_b = params["ln_b"].astype(f32)                         # (C,)
    wih1 = params["wih1"].astype(f32)                         # (C, 4H)
    b1 = params["b1"].reshape(1, 4 * H).astype(f32)

    # Fold the LayerNorm affine into the hoisted input projection.
    wih1_eff = ln_g[:, None] * wih1                           # (C, 4H)
    b1_eff = b1 + ln_b[None, :] @ wih1                        # (1, 4H)

    whh1 = params["whh1"].astype(f32)                         # (H, 4H)
    w2 = jnp.concatenate([params["wih2"], params["whh2"]], axis=0).astype(f32)  # (2H,4H)
    b2 = params["b2"].reshape(1, 4 * H).astype(f32)
    dw1 = params["dw1"].astype(f32)                           # (H, H)
    db1 = params["db1"].reshape(1, H).astype(f32)
    dw2t = params["dw2"].T.astype(f32)                        # (2M, H)
    db2t = params["db2"].reshape(2 * M, 1).astype(f32)

    kernel = functools.partial(_fused_lstm_bf_kernel, T=T, N=N, H=H)
    out_t = pl.pallas_call(
        kernel,
        out_shape=jax.ShapeDtypeStruct((2 * M, ROWS), f32),
        in_specs=[VMEM_SPEC] * 10,
        out_specs=VMEM_SPEC,
        scratch_shapes=[
            pltpu.VMEM((ROWS, 4 * H), f32),    # hoisted LSTM1 input gates (dense layout)
            pltpu.VMEM((ROWS, H), f32),        # LSTM2 hidden states
        ],
    )(x, wih1_eff, b1_eff, whh1, w2, b2, dw1, db1, dw2t, db2t)

    # (2M, T*B*F) cols ordered (t, b, f) -> (B, T, F, M, 2); tiny (8 KB) XLA reorder.
    w = out_t.reshape(2 * M, T, B, F)
    w = jnp.transpose(w, (2, 1, 3, 0))                        # (B, T, F, 2M)
    return w.reshape(B, T, F, M, 2)


# ------------------------- parameter construction --------------------------- #

def init_params(key, embed_dim, M, hid_node):
    ks = jax.random.split(key, 12)
    H = hid_node
    s = 0.1

    def rnd(k, shape):
        return jax.random.normal(k, shape, jnp.float32) * s

    return dict(
        ln_g=jnp.ones((embed_dim,), jnp.float32),
        ln_b=jnp.zeros((embed_dim,), jnp.float32),
        # rnn1: PyTorch weight_ih (4H, Cin) stored transposed -> (Cin, 4H), gate order i,f,g,o
        wih1=rnd(ks[0], (embed_dim, 4 * H)),
        whh1=rnd(ks[1], (H, 4 * H)),
        b1=(rnd(ks[2], (1, 4 * H)) + rnd(ks[3], (1, 4 * H))),   # b_ih + b_hh
        # rnn2
        wih2=rnd(ks[4], (H, 4 * H)),
        whh2=rnd(ks[5], (H, 4 * H)),
        b2=(rnd(ks[6], (1, 4 * H)) + rnd(ks[7], (1, 4 * H))),
        # w_dnn: Linear(H, H) then Linear(H, 2M); weights stored as (in, out)
        dw1=rnd(ks[8], (H, H)),
        db1=rnd(ks[9], (H,)),
        dw2=rnd(ks[10], (H, 2 * M)),
        db2=rnd(ks[11], (2 * M,)),
    )


# --------------------------------- main -------------------------------------- #

if __name__ == "__main__":
    B, embed_dim, T, F = 2, 16, 8, 16
    M, hid_node = 4, 32

    key = jax.random.PRNGKey(0)
    k_param, k_data = jax.random.split(key)

    params = init_params(k_param, embed_dim, M, hid_node)
    embed_x = jax.random.normal(k_data, (B, embed_dim, T, F), jnp.float32)

    fwd = jax.jit(lambda p, x: lstm_bf_forward(p, x, M, hid_node))
    bf_w = jax.block_until_ready(fwd(params, embed_x))

    assert bf_w.shape == (B, T, F, M, 2), bf_w.shape
    assert jnp.all(jnp.isfinite(bf_w))
    print("KERNEL_OK")
</pallas_src>

<mosaic_0001>
module attributes {stable_mosaic.version = 11 : i64} {
  func.func @_fused_lstm_bf_kernel(%arg0: memref<256x16xf32, #tpu.memory_space<vmem>>, %arg1: memref<16x128xf32, #tpu.memory_space<vmem>>, %arg2: memref<1x128xf32, #tpu.memory_space<vmem>>, %arg3: memref<32x128xf32, #tpu.memory_space<vmem>>, %arg4: memref<64x128xf32, #tpu.memory_space<vmem>>, %arg5: memref<1x128xf32, #tpu.memory_space<vmem>>, %arg6: memref<32x32xf32, #tpu.memory_space<vmem>>, %arg7: memref<1x32xf32, #tpu.memory_space<vmem>>, %arg8: memref<8x32xf32, #tpu.memory_space<vmem>>, %arg9: memref<8x1xf32, #tpu.memory_space<vmem>>, %arg10: memref<8x256xf32, #tpu.memory_space<vmem>>, %arg11: memref<256x128xf32, #tpu.memory_space<vmem>>, %arg12: memref<256x32xf32, #tpu.memory_space<vmem>>) attributes {dimension_semantics = [], scalar_prefetch = 0 : i64, scratch_operands = 2 : i64, tpu.core_type = #tpu.core_type<tc>} {
    %c0 = arith.constant 0 : index
    %c0_0 = arith.constant 0 : index
    %0 = vector.load %arg0[%c0, %c0_0] : memref<256x16xf32, #tpu.memory_space<vmem>>, vector<256x16xf32>
    %cst = arith.constant dense<0.000000e+00> : vector<256xf32>
    %1 = vector.multi_reduction <add>, %0, %cst [1] : vector<256x16xf32> to vector<256xf32>
    %2 = vector.shape_cast %1 : vector<256xf32> to vector<256x1xf32>
    %cst_1 = arith.constant 1.600000e+01 : f32
    %3 = vector.broadcast %cst_1 : f32 to vector<256x1xf32>
    %4 = arith.divf %2, %3 : vector<256x1xf32>
    %5 = vector.broadcast %4 : vector<256x1xf32> to vector<256x16xf32>
    %6 = arith.subf %0, %5 : vector<256x16xf32>
    %7 = arith.mulf %6, %6 : vector<256x16xf32>
    %cst_2 = arith.constant dense<0.000000e+00> : vector<256xf32>
    %8 = vector.multi_reduction <add>, %7, %cst_2 [1] : vector<256x16xf32> to vector<256xf32>
    %9 = vector.shape_cast %8 : vector<256xf32> to vector<256x1xf32>
    %cst_3 = arith.constant 1.600000e+01 : f32
    %10 = vector.broadcast %cst_3 : f32 to vector<256x1xf32>
    %11 = arith.divf %9, %10 : vector<256x1xf32>
    %cst_4 = arith.constant 9.99999974E-6 : f32
    %12 = vector.broadcast %cst_4 : f32 to vector<256x1xf32>
    %13 = arith.addf %11, %12 : vector<256x1xf32>
    %14 = math.rsqrt %13 : vector<256x1xf32>
    %15 = vector.broadcast %14 : vector<256x1xf32> to vector<256x16xf32>
    %16 = arith.mulf %6, %15 : vector<256x16xf32>
    %c0_5 = arith.constant 0 : index
    %c0_6 = arith.constant 0 : index
    %17 = vector.load %arg1[%c0_5, %c0_6] : memref<16x128xf32, #tpu.memory_space<vmem>>, vector<16x128xf32>
    %cst_7 = arith.constant dense<0.000000e+00> : vector<256x128xf32>
    %18 = tpu.matmul %16, %17, %cst_7 {dimension_numbers = #tpu.dot_dimension_numbers<[1], [0], [0], [1], [0, 0, 1, 1], [], []>} : vector<256x16xf32>, vector<16x128xf32>, vector<256x128xf32> -> vector<256x128xf32>
    %c0_8 = arith.constant 0 : index
    %c0_9 = arith.constant 0 : index
    %19 = vector.load %arg2[%c0_8, %c0_9] : memref<1x128xf32, #tpu.memory_space<vmem>>, vector<1x128xf32>
    %20 = vector.broadcast %19 : vector<1x128xf32> to vector<256x128xf32>
    %21 = arith.addf %18, %20 : vector<256x128xf32>
    %c0_10 = arith.constant 0 : index
    %c0_11 = arith.constant 0 : index
    %22 = vector.load %arg11[%c0_10, %c0_11] : memref<256x128xf32, #tpu.memory_space<vmem>>, vector<256x128xf32>
    tpu.vector_store %arg11[%c0_10, %c0_11], %21 {strides = array<i32>} : memref<256x128xf32, #tpu.memory_space<vmem>>, vector<256x128xf32>,
    %c0_12 = arith.constant 0 : index
    %c0_13 = arith.constant 0 : index
    %23 = vector.load %arg3[%c0_12, %c0_13] : memref<32x128xf32, #tpu.memory_space<vmem>>, vector<32x128xf32>
    %c0_14 = arith.constant 0 : index
    %c0_15 = arith.constant 0 : index
    %24 = vector.load %arg4[%c0_14, %c0_15] : memref<64x128xf32, #tpu.memory_space<vmem>>, vector<64x128xf32>
    %c0_16 = arith.constant 0 : index
    %c0_17 = arith.constant 0 : index
    %25 = vector.load %arg5[%c0_16, %c0_17] : memref<1x128xf32, #tpu.memory_space<vmem>>, vector<1x128xf32>
    %cst_18 = arith.constant 0.000000e+00 : f32
    %26 = vector.broadcast %cst_18 : f32 to vector<32x32xf32>
    %cst_19 = arith.constant 0.000000e+00 : f32
    %27 = vector.broadcast %cst_19 : f32 to vector<32x32xf32>
    %cst_20 = arith.constant 0.000000e+00 : f32
    %28 = vector.broadcast %cst_20 : f32 to vector<32x32xf32>
    %cst_21 = arith.constant 0.000000e+00 : f32
    %29 = vector.broadcast %cst_21 : f32 to vector<32x32xf32>
    %c0_22 = arith.constant 0 : index
    %c0_23 = arith.constant 0 : index
    %30 = vector.load %arg11[%c0_22, %c0_23] : memref<256x128xf32, #tpu.memory_space<vmem>>, vector<32x128xf32>
    %cst_24 = arith.constant dense<0.000000e+00> : vector<32x128xf32>
    %31 = tpu.matmul %26, %23, %cst_24 {dimension_numbers = #tpu.dot_dimension_numbers<[1], [0], [0], [1], [0, 0, 1, 1], [], []>} : vector<32x32xf32>, vector<32x128xf32>, vector<32x128xf32> -> vector<32x128xf32>
    %32 = arith.addf %30, %31 : vector<32x128xf32>
    %33 = arith.negf %32 : vector<32x128xf32>
    %34 = math.exp %33 : vector<32x128xf32>
    %cst_25 = arith.constant 1.000000e+00 : f32
    %35 = vector.broadcast %cst_25 : f32 to vector<32x128xf32>
    %36 = arith.addf %35, %34 : vector<32x128xf32>
    %37 = arith.divf %35, %36 : vector<32x128xf32>
    %38 = vector.extract_strided_slice %32 {offsets = [0, 64], sizes = [32, 32], strides = [1, 1]} : vector<32x128xf32> to vector<32x32xf32>
    %39 = math.tanh %38 : vector<32x32xf32>
    %40 = vector.extract_strided_slice %37 {offsets = [0, 32], sizes = [32, 32], strides = [1, 1]} : vector<32x128xf32> to vector<32x32xf32>
    %41 = arith.mulf %40, %27 : vector<32x32xf32>
    %42 = vector.extract_strided_slice %37 {offsets = [0, 0], sizes = [32, 32], strides = [1, 1]} : vector<32x128xf32> to vector<32x32xf32>
    %43 = arith.mulf %42, %39 : vector<32x32xf32>
    %44 = arith.addf %41, %43 : vector<32x32xf32>
    %45 = vector.extract_strided_slice %37 {offsets = [0, 96], sizes = [32, 32], strides = [1, 1]} : vector<32x128xf32> to vector<32x32xf32>
    %46 = math.tanh %44 : vector<32x32xf32>
    %47 = arith.mulf %45, %46 : vector<32x32xf32>
    %48 = tpu.concatenate %47, %28 in 1 : vector<32x32xf32>, vector<32x32xf32> -> vector<32x64xf32>
    %cst_26 = arith.constant dense<0.000000e+00> : vector<32x128xf32>
    %49 = tpu.matmul %48, %24, %cst_26 {dimension_numbers = #tpu.dot_dimension_numbers<[1], [0], [0], [1], [0, 0, 1, 1], [], []>} : vector<32x64xf32>, vector<64x128xf32>, vector<32x128xf32> -> vector<32x128xf32>
    %50 = vector.broadcast %25 : vector<1x128xf32> to vector<32x128xf32>
    %51 = arith.addf %50, %49 : vector<32x128xf32>
    %52 = arith.negf %51 : vector<32x128xf32>
    %53 = math.exp %52 : vector<32x128xf32>
    %cst_27 = arith.constant 1.000000e+00 : f32
    %54 = vector.broadcast %cst_27 : f32 to vector<32x128xf32>
    %55 = arith.addf %54, %53 : vector<32x128xf32>
    %56 = arith.divf %54, %55 : vector<32x128xf32>
    %57 = vector.extract_strided_slice %51 {offsets = [0, 64], sizes = [32, 32], strides = [1, 1]} : vector<32x128xf32> to vector<32x32xf32>
    %58 = math.tanh %57 : vector<32x32xf32>
    %59 = vector.extract_strided_slice %56 {offsets = [0, 32], sizes = [32, 32], strides = [1, 1]} : vector<32x128xf32> to vector<32x32xf32>
    %60 = arith.mulf %59, %29 : vector<32x32xf32>
    %61 = vector.extract_strided_slice %56 {offsets = [0, 0], sizes = [32, 32], strides = [1, 1]} : vector<32x128xf32> to vector<32x32xf32>
    %62 = arith.mulf %61, %58 : vector<32x32xf32>
    %63 = arith.addf %60, %62 : vector<32x32xf32>
    %64 = vector.extract_strided_slice %56 {offsets = [0, 96], sizes = [32, 32], strides = [1, 1]} : vector<32x128xf32> to vector<32x32xf32>
    %65 = math.tanh %63 : vector<32x32xf32>
    %66 = arith.mulf %64, %65 : vector<32x32xf32>
    %c0_28 = arith.constant 0 : index
    %c0_29 = arith.constant 0 : index
    %67 = vector.load %arg12[%c0_28, %c0_29] : memref<256x32xf32, #tpu.memory_space<vmem>>, vector<32x32xf32>
    tpu.vector_store %arg12[%c0_28, %c0_29], %66 {strides = array<i32>} : memref<256x32xf32, #tpu.memory_space<vmem>>, vector<32x32xf32>,
    %c32 = arith.constant 32 : index
    %c0_30 = arith.constant 0 : index
    %68 = vector.load %arg11[%c32, %c0_30] : memref<256x128xf32, #tpu.memory_space<vmem>>, vector<32x128xf32>
    %cst_31 = arith.constant dense<0.000000e+00> : vector<32x128xf32>
    %69 = tpu.matmul %47, %23, %cst_31 {dimension_numbers = #tpu.dot_dimension_numbers<[1], [0], [0], [1], [0, 0, 1, 1], [], []>} : vector<32x32xf32>, vector<32x128xf32>, vector<32x128xf32> -> vector<32x128xf32>
    %70 = arith.addf %68, %69 : vector<32x128xf32>
    %71 = arith.negf %70 : vector<32x128xf32>
    %72 = math.exp %71 : vector<32x128xf32>
    %cst_32 = arith.constant 1.000000e+00 : f32
    %73 = vector.broadcast %cst_32 : f32 to vector<32x128xf32>
    %74 = arith.addf %73, %72 : vector<32x128xf32>
    %75 = arith.divf %73, %74 : vector<32x128xf32>
    %76 = vector.extract_strided_slice %70 {offsets = [0, 64], sizes = [32, 32], strides = [1, 1]} : vector<32x128xf32> to vector<32x32xf32>
    %77 = math.tanh %76 : vector<32x32xf32>
    %78 = vector.extract_strided_slice %75 {offsets = [0, 32], sizes = [32, 32], strides = [1, 1]} : vector<32x128xf32> to vector<32x32xf32>
    %79 = arith.mulf %78, %44 : vector<32x32xf32>
    %80 = vector.extract_strided_slice %75 {offsets = [0, 0], sizes = [32, 32], strides = [1, 1]} : vector<32x128xf32> to vector<32x32xf32>
    %81 = arith.mulf %80, %77 : vector<32x32xf32>
    %82 = arith.addf %79, %81 : vector<32x32xf32>
    %83 = vector.extract_strided_slice %75 {offsets = [0, 96], sizes = [32, 32], strides = [1, 1]} : vector<32x128xf32> to vector<32x32xf32>
    %84 = math.tanh %82 : vector<32x32xf32>
    %85 = arith.mulf %83, %84 : vector<32x32xf32>
    %86 = tpu.concatenate %85, %66 in 1 : vector<32x32xf32>, vector<32x32xf32> -> vector<32x64xf32>
    %cst_33 = arith.constant dense<0.000000e+00> : vector<32x128xf32>
    %87 = tpu.matmul %86, %24, %cst_33 {dimension_numbers = #tpu.dot_dimension_numbers<[1], [0], [0], [1], [0, 0, 1, 1], [], []>} : vector<32x64xf32>, vector<64x128xf32>, vector<32x128xf32> -> vector<32x128xf32>
    %88 = vector.broadcast %25 : vector<1x128xf32> to vector<32x128xf32>
    %89 = arith.addf %88, %87 : vector<32x128xf32>
    %90 = arith.negf %89 : vector<32x128xf32>
    %91 = math.exp %90 : vector<32x128xf32>
    %cst_34 = arith.constant 1.000000e+00 : f32
    %92 = vector.broadcast %cst_34 : f32 to vector<32x128xf32>
    %93 = arith.addf %92, %91 : vector<32x128xf32>
    %94 = arith.divf %92, %93 : vector<32x128xf32>
    %95 = vector.extract_strided_slice %89 {offsets = [0, 64], sizes = [32, 32], strides = [1, 1]} : vector<32x128xf32> to vector<32x32xf32>
    %96 = math.tanh %95 : vector<32x32xf32>
    %97 = vector.extract_strided_slice %94 {offsets = [0, 32], sizes = [32, 32], strides = [1, 1]} : vector<32x128xf32> to vector<32x32xf32>
    %98 = arith.mulf %97, %63 : vector<32x32xf32>
    %99 = vector.extract_strided_slice %94 {offsets = [0, 0], sizes = [32, 32], strides = [1, 1]} : vector<32x128xf32> to vector<32x32xf32>
    %100 = arith.mulf %99, %96 : vector<32x32xf32>
    %101 = arith.addf %98, %100 : vector<32x32xf32>
    %102 = vector.extract_strided_slice %94 {offsets = [0, 96], sizes = [32, 32], strides = [1, 1]} : vector<32x128xf32> to vector<32x32xf32>
    %103 = math.tanh %101 : vector<32x32xf32>
    %104 = arith.mulf %102, %103 : vector<32x32xf32>
    %c32_35 = arith.constant 32 : index
    %c0_36 = arith.constant 0 : index
    %105 = vector.load %arg12[%c32_35, %c0_36] : memref<256x32xf32, #tpu.memory_space<vmem>>, vector<32x32xf32>
    tpu.vector_store %arg12[%c32_35, %c0_36], %104 {strides = array<i32>} : memref<256x32xf32, #tpu.memory_space<vmem>>, vector<32x32xf32>,
    %c64 = arith.constant 64 : index
    %c0_37 = arith.constant 0 : index
    %106 = vector.load %arg11[%c64, %c0_37] : memref<256x128xf32, #tpu.memory_space<vmem>>, vector<32x128xf32>
    %cst_38 = arith.constant dense<0.000000e+00> : vector<32x128xf32>
    %107 = tpu.matmul %85, %23, %cst_38 {dimension_numbers = #tpu.dot_dimension_numbers<[1], [0], [0], [1], [0, 0, 1, 1], [], []>} : vector<32x32xf32>, vector<32x128xf32>, vector<32x128xf32> -> vector<32x128xf32>
    %108 = arith.addf %106, %107 : vector<32x128xf32>
    %109 = arith.negf %108 : vector<32x128xf32>
    %110 = math.exp %109 : vector<32x128xf32>
    %cst_39 = arith.constant 1.000000e+00 : f32
    %111 = vector.broadcast %cst_39 : f32 to vector<32x128xf32>
    %112 = arith.addf %111, %110 : vector<32x128xf32>
    %113 = arith.divf %111, %112 : vector<32x128xf32>
    %114 = vector.extract_strided_slice %108 {offsets = [0, 64], sizes = [32, 32], strides = [1, 1]} : vector<32x128xf32> to vector<32x32xf32>
    %115 = math.tanh %114 : vector<32x32xf32>
    %116 = vector.extract_strided_slice %113 {offsets = [0, 32], sizes = [32, 32], strides = [1, 1]} : vector<32x128xf32> to vector<32x32xf32>
    %117 = arith.mulf %116, %82 : vector<32x32xf32>
    %118 = vector.extract_strided_slice %113 {offsets = [0, 0], sizes = [32, 32], strides = [1, 1]} : vector<32x128xf32> to vector<32x32xf32>
    %119 = arith.mulf %118, %115 : vector<32x32xf32>
    %120 = arith.addf %117, %119 : vector<32x32xf32>
    %121 = vector.extract_strided_slice %113 {offsets = [0, 96], sizes = [32, 32], strides = [1, 1]} : vector<32x128xf32> to vector<32x32xf32>
    %122 = math.tanh %120 : vector<32x32xf32>
    %123 = arith.mulf %121, %122 : vector<32x32xf32>
    %124 = tpu.concatenate %123, %104 in 1 : vector<32x32xf32>, vector<32x32xf32> -> vector<32x64xf32>
    %cst_40 = arith.constant dense<0.000000e+00> : vector<32x128xf32>
    %125 = tpu.matmul %124, %24, %cst_40 {dimension_numbers = #tpu.dot_dimension_numbers<[1], [0], [0], [1], [0, 0, 1, 1], [], []>} : vector<32x64xf32>, vector<64x128xf32>, vector<32x128xf32> -> vector<32x128xf32>
    %126 = vector.broadcast %25 : vector<1x128xf32> to vector<32x128xf32>
    %127 = arith.addf %126, %125 : vector<32x128xf32>
    %128 = arith.negf %127 : vector<32x128xf32>
    %129 = math.exp %128 : vector<32x128xf32>
    %cst_41 = arith.constant 1.000000e+00 : f32
    %130 = vector.broadcast %cst_41 : f32 to vector<32x128xf32>
    %131 = arith.addf %130, %129 : vector<32x128xf32>
    %132 = arith.divf %130, %131 : vector<32x128xf32>
    %133 = vector.extract_strided_slice %127 {offsets = [0, 64], sizes = [32, 32], strides = [1, 1]} : vector<32x128xf32> to vector<32x32xf32>
    %134 = math.tanh %133 : vector<32x32xf32>
    %135 = vector.extract_strided_slice %132 {offsets = [0, 32], sizes = [32, 32], strides = [1, 1]} : vector<32x128xf32> to vector<32x32xf32>
    %136 = arith.mulf %135, %101 : vector<32x32xf32>
    %137 = vector.extract_strided_slice %132 {offsets = [0, 0], sizes = [32, 32], strides = [1, 1]} : vector<32x128xf32> to vector<32x32xf32>
    %138 = arith.mulf %137, %134 : vector<32x32xf32>
    %139 = arith.addf %136, %138 : vector<32x32xf32>
    %140 = vector.extract_strided_slice %132 {offsets = [0, 96], sizes = [32, 32], strides = [1, 1]} : vector<32x128xf32> to vector<32x32xf32>
    %141 = math.tanh %139 : vector<32x32xf32>
    %142 = arith.mulf %140, %141 : vector<32x32xf32>
    %c64_42 = arith.constant 64 : index
    %c0_43 = arith.constant 0 : index
    %143 = vector.load %arg12[%c64_42, %c0_43] : memref<256x32xf32, #tpu.memory_space<vmem>>, vector<32x32xf32>
    tpu.vector_store %arg12[%c64_42, %c0_43], %142 {strides = array<i32>} : memref<256x32xf32, #tpu.memory_space<vmem>>, vector<32x32xf32>,
    %c96 = arith.constant 96 : index
    %c0_44 = arith.constant 0 : index
    %144 = vector.load %arg11[%c96, %c0_44] : memref<256x128xf32, #tpu.memory_space<vmem>>, vector<32x128xf32>
    %cst_45 = arith.constant dense<0.000000e+00> : vector<32x128xf32>
    %145 = tpu.matmul %123, %23, %cst_45 {dimension_numbers = #tpu.dot_dimension_numbers<[1], [0], [0], [1], [0, 0, 1, 1], [], []>} : vector<32x32xf32>, vector<32x128xf32>, vector<32x128xf32> -> vector<32x128xf32>
    %146 = arith.addf %144, %145 : vector<32x128xf32>
    %147 = arith.negf %146 : vector<32x128xf32>
    %148 = math.exp %147 : vector<32x128xf32>
    %cst_46 = arith.constant 1.000000e+00 : f32
    %149 = vector.broadcast %cst_46 : f32 to vector<32x128xf32>
    %150 = arith.addf %149, %148 : vector<32x128xf32>
    %151 = arith.divf %149, %150 : vector<32x128xf32>
    %152 = vector.extract_strided_slice %146 {offsets = [0, 64], sizes = [32, 32], strides = [1, 1]} : vector<32x128xf32> to vector<32x32xf32>
    %153 = math.tanh %152 : vector<32x32xf32>
    %154 = vector.extract_strided_slice %151 {offsets = [0, 32], sizes = [32, 32], strides = [1, 1]} : vector<32x128xf32> to vector<32x32xf32>
    %155 = arith.mulf %154, %120 : vector<32x32xf32>
    %156 = vector.extract_strided_slice %151 {offsets = [0, 0], sizes = [32, 32], strides = [1, 1]} : vector<32x128xf32> to vector<32x32xf32>
    %157 = arith.mulf %156, %153 : vector<32x32xf32>
    %158 = arith.addf %155, %157 : vector<32x32xf32>
    %159 = vector.extract_strided_slice %151 {offsets = [0, 96], sizes = [32, 32], strides = [1, 1]} : vector<32x128xf32> to vector<32x32xf32>
    %160 = math.tanh %158 : vector<32x32xf32>
    %161 = arith.mulf %159, %160 : vector<32x32xf32>
    %162 = tpu.concatenate %161, %142 in 1 : vector<32x32xf32>, vector<32x32xf32> -> vector<32x64xf32>
    %cst_47 = arith.constant dense<0.000000e+00> : vector<32x128xf32>
    %163 = tpu.matmul %162, %24, %cst_47 {dimension_numbers = #tpu.dot_dimension_numbers<[1], [0], [0], [1], [0, 0, 1, 1], [], []>} : vector<32x64xf32>, vector<64x128xf32>, vector<32x128xf32> -> vector<32x128xf32>
    %164 = vector.broadcast %25 : vector<1x128xf32> to vector<32x128xf32>
    %165 = arith.addf %164, %163 : vector<32x128xf32>
    %166 = arith.negf %165 : vector<32x128xf32>
    %167 = math.exp %166 : vector<32x128xf32>
    %cst_48 = arith.constant 1.000000e+00 : f32
    %168 = vector.broadcast %cst_48 : f32 to vector<32x128xf32>
    %169 = arith.addf %168, %167 : vector<32x128xf32>
    %170 = arith.divf %168, %169 : vector<32x128xf32>
    %171 = vector.extract_strided_slice %165 {offsets = [0, 64], sizes = [32, 32], strides = [1, 1]} : vector<32x128xf32> to vector<32x32xf32>
    %172 = math.tanh %171 : vector<32x32xf32>
    %173 = vector.extract_strided_slice %170 {offsets = [0, 32], sizes = [32, 32], strides = [1, 1]} : vector<32x128xf32> to vector<32x32xf32>
    %174 = arith.mulf %173, %139 : vector<32x32xf32>
    %175 = vector.extract_strided_slice %170 {offsets = [0, 0], sizes = [32, 32], strides = [1, 1]} : vector<32x128xf32> to vector<32x32xf32>
    %176 = arith.mulf %175, %172 : vector<32x32xf32>
    %177 = arith.addf %174, %176 : vector<32x32xf32>
    %178 = vector.extract_strided_slice %170 {offsets = [0, 96], sizes = [32, 32], strides = [1, 1]} : vector<32x128xf32> to vector<32x32xf32>
    %179 = math.tanh %177 : vector<32x32xf32>
    %180 = arith.mulf %178, %179 : vector<32x32xf32>
    %c96_49 = arith.constant 96 : index
    %c0_50 = arith.constant 0 : index
    %181 = vector.load %arg12[%c96_49, %c0_50] : memref<256x32xf32, #tpu.memory_space<vmem>>, vector<32x32xf32>
    tpu.vector_store %arg12[%c96_49, %c0_50], %180 {strides = array<i32>} : memref<256x32xf32, #tpu.memory_space<vmem>>, vector<32x32xf32>,
    %c128 = arith.constant 128 : index
    %c0_51 = arith.constant 0 : index
    %182 = vector.load %arg11[%c128, %c0_51] : memref<256x128xf32, #tpu.memory_space<vmem>>, vector<32x128xf32>
    %cst_52 = arith.constant dense<0.000000e+00> : vector<32x128xf32>
    %183 = tpu.matmul %161, %23, %cst_52 {dimension_numbers = #tpu.dot_dimension_numbers<[1], [0], [0], [1], [0, 0, 1, 1], [], []>} : vector<32x32xf32>, vector<32x128xf32>, vector<32x128xf32> -> vector<32x128xf32>
    %184 = arith.addf %182, %183 : vector<32x128xf32>
    %185 = arith.negf %184 : vector<32x128xf32>
    %186 = math.exp %185 : vector<32x128xf32>
    %cst_53 = arith.constant 1.000000e+00 : f32
    %187 = vector.broadcast %cst_53 : f32 to vector<32x128xf32>
    %188 = arith.addf %187, %186 : vector<32x128xf32>
    %189 = arith.divf %187, %188 : vector<32x128xf32>
    %190 = vector.extract_strided_slice %184 {offsets = [0, 64], sizes = [32, 32], strides = [1, 1]} : vector<32x128xf32> to vector<32x32xf32>
    %191 = math.tanh %190 : vector<32x32xf32>
    %192 = vector.extract_strided_slice %189 {offsets = [0, 32], sizes = [32, 32], strides = [1, 1]} : vector<32x128xf32> to vector<32x32xf32>
    %193 = arith.mulf %192, %158 : vector<32x32xf32>
    %194 = vector.extract_strided_slice %189 {offsets = [0, 0], sizes = [32, 32], strides = [1, 1]} : vector<32x128xf32> to vector<32x32xf32>
    %195 = arith.mulf %194, %191 : vector<32x32xf32>
    %196 = arith.addf %193, %195 : vector<32x32xf32>
    %197 = vector.extract_strided_slice %189 {offsets = [0, 96], sizes = [32, 32], strides = [1, 1]} : vector<32x128xf32> to vector<32x32xf32>
    %198 = math.tanh %196 : vector<32x32xf32>
    %199 = arith.mulf %197, %198 : vector<32x32xf32>
    %200 = tpu.concatenate %199, %180 in 1 : vector<32x32xf32>, vector<32x32xf32> -> vector<32x64xf32>
    %cst_54 = arith.constant dense<0.000000e+00> : vector<32x128xf32>
    %201 = tpu.matmul %200, %24, %cst_54 {dimension_numbers = #tpu.dot_dimension_numbers<[1], [0], [0], [1], [0, 0, 1, 1], [], []>} : vector<32x64xf32>, vector<64x128xf32>, vector<32x128xf32> -> vector<32x128xf32>
    %202 = vector.broadcast %25 : vector<1x128xf32> to vector<32x128xf32>
    %203 = arith.addf %202, %201 : vector<32x128xf32>
    %204 = arith.negf %203 : vector<32x128xf32>
    %205 = math.exp %204 : vector<32x128xf32>
    %cst_55 = arith.constant 1.000000e+00 : f32
    %206 = vector.broadcast %cst_55 : f32 to vector<32x128xf32>
    %207 = arith.addf %206, %205 : vector<32x128xf32>
    %208 = arith.divf %206, %207 : vector<32x128xf32>
    %209 = vector.extract_strided_slice %203 {offsets = [0, 64], sizes = [32, 32], strides = [1, 1]} : vector<32x128xf32> to vector<32x32xf32>
    %210 = math.tanh %209 : vector<32x32xf32>
    %211 = vector.extract_strided_slice %208 {offsets = [0, 32], sizes = [32, 32], strides = [1, 1]} : vector<32x128xf32> to vector<32x32xf32>
    %212 = arith.mulf %211, %177 : vector<32x32xf32>
    %213 = vector.extract_strided_slice %208 {offsets = [0, 0], sizes = [32, 32], strides = [1, 1]} : vector<32x128xf32> to vector<32x32xf32>
    %214 = arith.mulf %213, %210 : vector<32x32xf32>
    %215 = arith.addf %212, %214 : vector<32x32xf32>
    %216 = vector.extract_strided_slice %208 {offsets = [0, 96], sizes = [32, 32], strides = [1, 1]} : vector<32x128xf32> to vector<32x32xf32>
    %217 = math.tanh %215 : vector<32x32xf32>
    %218 = arith.mulf %216, %217 : vector<32x32xf32>
    %c128_56 = arith.constant 128 : index
    %c0_57 = arith.constant 0 : index
    %219 = vector.load %arg12[%c128_56, %c0_57] : memref<256x32xf32, #tpu.memory_space<vmem>>, vector<32x32xf32>
    tpu.vector_store %arg12[%c128_56, %c0_57], %218 {strides = array<i32>} : memref<256x32xf32, #tpu.memory_space<vmem>>, vector<32x32xf32>,
    %c160 = arith.constant 160 : index
    %c0_58 = arith.constant 0 : index
    %220 = vector.load %arg11[%c160, %c0_58] : memref<256x128xf32, #tpu.memory_space<vmem>>, vector<32x128xf32>
    %cst_59 = arith.constant dense<0.000000e+00> : vector<32x128xf32>
    %221 = tpu.matmul %199, %23, %cst_59 {dimension_numbers = #tpu.dot_dimension_numbers<[1], [0], [0], [1], [0, 0, 1, 1], [], []>} : vector<32x32xf32>, vector<32x128xf32>, vector<32x128xf32> -> vector<32x128xf32>
    %222 = arith.addf %220, %221 : vector<32x128xf32>
    %223 = arith.negf %222 : vector<32x128xf32>
    %224 = math.exp %223 : vector<32x128xf32>
    %cst_60 = arith.constant 1.000000e+00 : f32
    %225 = vector.broadcast %cst_60 : f32 to vector<32x128xf32>
    %226 = arith.addf %225, %224 : vector<32x128xf32>
    %227 = arith.divf %225, %226 : vector<32x128xf32>
    %228 = vector.extract_strided_slice %222 {offsets = [0, 64], sizes = [32, 32], strides = [1, 1]} : vector<32x128xf32> to vector<32x32xf32>
    %229 = math.tanh %228 : vector<32x32xf32>
    %230 = vector.extract_strided_slice %227 {offsets = [0, 32], sizes = [32, 32], strides = [1, 1]} : vector<32x128xf32> to vector<32x32xf32>
    %231 = arith.mulf %230, %196 : vector<32x32xf32>
    %232 = vector.extract_strided_slice %227 {offsets = [0, 0], sizes = [32, 32], strides = [1, 1]} : vector<32x128xf32> to vector<32x32xf32>
    %233 = arith.mulf %232, %229 : vector<32x32xf32>
    %234 = arith.addf %231, %233 : vector<32x32xf32>
    %235 = vector.extract_strided_slice %227 {offsets = [0, 96], sizes = [32, 32], strides = [1, 1]} : vector<32x128xf32> to vector<32x32xf32>
    %236 = math.tanh %234 : vector<32x32xf32>
    %237 = arith.mulf %235, %236 : vector<32x32xf32>
    %238 = tpu.concatenate %237, %218 in 1 : vector<32x32xf32>, vector<32x32xf32> -> vector<32x64xf32>
    %cst_61 = arith.constant dense<0.000000e+00> : vector<32x128xf32>
    %239 = tpu.matmul %238, %24, %cst_61 {dimension_numbers = #tpu.dot_dimension_numbers<[1], [0], [0], [1], [0, 0, 1, 1], [], []>} : vector<32x64xf32>, vector<64x128xf32>, vector<32x128xf32> -> vector<32x128xf32>
    %240 = vector.broadcast %25 : vector<1x128xf32> to vector<32x128xf32>
    %241 = arith.addf %240, %239 : vector<32x128xf32>
    %242 = arith.negf %241 : vector<32x128xf32>
    %243 = math.exp %242 : vector<32x128xf32>
    %cst_62 = arith.constant 1.000000e+00 : f32
    %244 = vector.broadcast %cst_62 : f32 to vector<32x128xf32>
    %245 = arith.addf %244, %243 : vector<32x128xf32>
    %246 = arith.divf %244, %245 : vector<32x128xf32>
    %247 = vector.extract_strided_slice %241 {offsets = [0, 64], sizes = [32, 32], strides = [1, 1]} : vector<32x128xf32> to vector<32x32xf32>
    %248 = math.tanh %247 : vector<32x32xf32>
    %249 = vector.extract_strided_slice %246 {offsets = [0, 32], sizes = [32, 32], strides = [1, 1]} : vector<32x128xf32> to vector<32x32xf32>
    %250 = arith.mulf %249, %215 : vector<32x32xf32>
    %251 = vector.extract_strided_slice %246 {offsets = [0, 0], sizes = [32, 32], strides = [1, 1]} : vector<32x128xf32> to vector<32x32xf32>
    %252 = arith.mulf %251, %248 : vector<32x32xf32>
    %253 = arith.addf %250, %252 : vector<32x32xf32>
    %254 = vector.extract_strided_slice %246 {offsets = [0, 96], sizes = [32, 32], strides = [1, 1]} : vector<32x128xf32> to vector<32x32xf32>
    %255 = math.tanh %253 : vector<32x32xf32>
    %256 = arith.mulf %254, %255 : vector<32x32xf32>
    %c160_63 = arith.constant 160 : index
    %c0_64 = arith.constant 0 : index
    %257 = vector.load %arg12[%c160_63, %c0_64] : memref<256x32xf32, #tpu.memory_space<vmem>>, vector<32x32xf32>
    tpu.vector_store %arg12[%c160_63, %c0_64], %256 {strides = array<i32>} : memref<256x32xf32, #tpu.memory_space<vmem>>, vector<32x32xf32>,
    %c192 = arith.constant 192 : index
    %c0_65 = arith.constant 0 : index
    %258 = vector.load %arg11[%c192, %c0_65] : memref<256x128xf32, #tpu.memory_space<vmem>>, vector<32x128xf32>
    %cst_66 = arith.constant dense<0.000000e+00> : vector<32x128xf32>
    %259 = tpu.matmul %237, %23, %cst_66 {dimension_numbers = #tpu.dot_dimension_numbers<[1], [0], [0], [1], [0, 0, 1, 1], [], []>} : vector<32x32xf32>, vector<32x128xf32>, vector<32x128xf32> -> vector<32x128xf32>
    %260 = arith.addf %258, %259 : vector<32x128xf32>
    %261 = arith.negf %260 : vector<32x128xf32>
    %262 = math.exp %261 : vector<32x128xf32>
    %cst_67 = arith.constant 1.000000e+00 : f32
    %263 = vector.broadcast %cst_67 : f32 to vector<32x128xf32>
    %264 = arith.addf %263, %262 : vector<32x128xf32>
    %265 = arith.divf %263, %264 : vector<32x128xf32>
    %266 = vector.extract_strided_slice %260 {offsets = [0, 64], sizes = [32, 32], strides = [1, 1]} : vector<32x128xf32> to vector<32x32xf32>
    %267 = math.tanh %266 : vector<32x32xf32>
    %268 = vector.extract_strided_slice %265 {offsets = [0, 32], sizes = [32, 32], strides = [1, 1]} : vector<32x128xf32> to vector<32x32xf32>
    %269 = arith.mulf %268, %234 : vector<32x32xf32>
    %270 = vector.extract_strided_slice %265 {offsets = [0, 0], sizes = [32, 32], strides = [1, 1]} : vector<32x128xf32> to vector<32x32xf32>
    %271 = arith.mulf %270, %267 : vector<32x32xf32>
    %272 = arith.addf %269, %271 : vector<32x32xf32>
    %273 = vector.extract_strided_slice %265 {offsets = [0, 96], sizes = [32, 32], strides = [1, 1]} : vector<32x128xf32> to vector<32x32xf32>
    %274 = math.tanh %272 : vector<32x32xf32>
    %275 = arith.mulf %273, %274 : vector<32x32xf32>
    %276 = tpu.concatenate %275, %256 in 1 : vector<32x32xf32>, vector<32x32xf32> -> vector<32x64xf32>
    %cst_68 = arith.constant dense<0.000000e+00> : vector<32x128xf32>
    %277 = tpu.matmul %276, %24, %cst_68 {dimension_numbers = #tpu.dot_dimension_numbers<[1], [0], [0], [1], [0, 0, 1, 1], [], []>} : vector<32x64xf32>, vector<64x128xf32>, vector<32x128xf32> -> vector<32x128xf32>
    %278 = vector.broadcast %25 : vector<1x128xf32> to vector<32x128xf32>
    %279 = arith.addf %278, %277 : vector<32x128xf32>
    %280 = arith.negf %279 : vector<32x128xf32>
    %281 = math.exp %280 : vector<32x128xf32>
    %cst_69 = arith.constant 1.000000e+00 : f32
    %282 = vector.broadcast %cst_69 : f32 to vector<32x128xf32>
    %283 = arith.addf %282, %281 : vector<32x128xf32>
    %284 = arith.divf %282, %283 : vector<32x128xf32>
    %285 = vector.extract_strided_slice %279 {offsets = [0, 64], sizes = [32, 32], strides = [1, 1]} : vector<32x128xf32> to vector<32x32xf32>
    %286 = math.tanh %285 : vector<32x32xf32>
    %287 = vector.extract_strided_slice %284 {offsets = [0, 32], sizes = [32, 32], strides = [1, 1]} : vector<32x128xf32> to vector<32x32xf32>
    %288 = arith.mulf %287, %253 : vector<32x32xf32>
    %289 = vector.extract_strided_slice %284 {offsets = [0, 0], sizes = [32, 32], strides = [1, 1]} : vector<32x128xf32> to vector<32x32xf32>
    %290 = arith.mulf %289, %286 : vector<32x32xf32>
    %291 = arith.addf %288, %290 : vector<32x32xf32>
    %292 = vector.extract_strided_slice %284 {offsets = [0, 96], sizes = [32, 32], strides = [1, 1]} : vector<32x128xf32> to vector<32x32xf32>
    %293 = math.tanh %291 : vector<32x32xf32>
    %294 = arith.mulf %292, %293 : vector<32x32xf32>
    %c192_70 = arith.constant 192 : index
    %c0_71 = arith.constant 0 : index
    %295 = vector.load %arg12[%c192_70, %c0_71] : memref<256x32xf32, #tpu.memory_space<vmem>>, vector<32x32xf32>
    tpu.vector_store %arg12[%c192_70, %c0_71], %294 {strides = array<i32>} : memref<256x32xf32, #tpu.memory_space<vmem>>, vector<32x32xf32>,
    %c224 = arith.constant 224 : index
    %c0_72 = arith.constant 0 : index
    %296 = vector.load %arg11[%c224, %c0_72] : memref<256x128xf32, #tpu.memory_space<vmem>>, vector<32x128xf32>
    %cst_73 = arith.constant dense<0.000000e+00> : vector<32x128xf32>
    %297 = tpu.matmul %275, %23, %cst_73 {dimension_numbers = #tpu.dot_dimension_numbers<[1], [0], [0], [1], [0, 0, 1, 1], [], []>} : vector<32x32xf32>, vector<32x128xf32>, vector<32x128xf32> -> vector<32x128xf32>
    %298 = arith.addf %296, %297 : vector<32x128xf32>
    %299 = arith.negf %298 : vector<32x128xf32>
    %300 = math.exp %299 : vector<32x128xf32>
    %cst_74 = arith.constant 1.000000e+00 : f32
    %301 = vector.broadcast %cst_74 : f32 to vector<32x128xf32>
    %302 = arith.addf %301, %300 : vector<32x128xf32>
    %303 = arith.divf %301, %302 : vector<32x128xf32>
    %304 = vector.extract_strided_slice %298 {offsets = [0, 64], sizes = [32, 32], strides = [1, 1]} : vector<32x128xf32> to vector<32x32xf32>
    %305 = math.tanh %304 : vector<32x32xf32>
    %306 = vector.extract_strided_slice %303 {offsets = [0, 32], sizes = [32, 32], strides = [1, 1]} : vector<32x128xf32> to vector<32x32xf32>
    %307 = arith.mulf %306, %272 : vector<32x32xf32>
    %308 = vector.extract_strided_slice %303 {offsets = [0, 0], sizes = [32, 32], strides = [1, 1]} : vector<32x128xf32> to vector<32x32xf32>
    %309 = arith.mulf %308, %305 : vector<32x32xf32>
    %310 = arith.addf %307, %309 : vector<32x32xf32>
    %311 = vector.extract_strided_slice %303 {offsets = [0, 96], sizes = [32, 32], strides = [1, 1]} : vector<32x128xf32> to vector<32x32xf32>
    %312 = math.tanh %310 : vector<32x32xf32>
    %313 = arith.mulf %311, %312 : vector<32x32xf32>
    %314 = tpu.concatenate %313, %294 in 1 : vector<32x32xf32>, vector<32x32xf32> -> vector<32x64xf32>
    %cst_75 = arith.constant dense<0.000000e+00> : vector<32x128xf32>
    %315 = tpu.matmul %314, %24, %cst_75 {dimension_numbers = #tpu.dot_dimension_numbers<[1], [0], [0], [1], [0, 0, 1, 1], [], []>} : vector<32x64xf32>, vector<64x128xf32>, vector<32x128xf32> -> vector<32x128xf32>
    %316 = vector.broadcast %25 : vector<1x128xf32> to vector<32x128xf32>
    %317 = arith.addf %316, %315 : vector<32x128xf32>
    %318 = arith.negf %317 : vector<32x128xf32>
    %319 = math.exp %318 : vector<32x128xf32>
    %cst_76 = arith.constant 1.000000e+00 : f32
    %320 = vector.broadcast %cst_76 : f32 to vector<32x128xf32>
    %321 = arith.addf %320, %319 : vector<32x128xf32>
    %322 = arith.divf %320, %321 : vector<32x128xf32>
    %323 = vector.extract_strided_slice %317 {offsets = [0, 64], sizes = [32, 32], strides = [1, 1]} : vector<32x128xf32> to vector<32x32xf32>
    %324 = math.tanh %323 : vector<32x32xf32>
    %325 = vector.extract_strided_slice %322 {offsets = [0, 32], sizes = [32, 32], strides = [1, 1]} : vector<32x128xf32> to vector<32x32xf32>
    %326 = arith.mulf %325, %291 : vector<32x32xf32>
    %327 = vector.extract_strided_slice %322 {offsets = [0, 0], sizes = [32, 32], strides = [1, 1]} : vector<32x128xf32> to vector<32x32xf32>
    %328 = arith.mulf %327, %324 : vector<32x32xf32>
    %329 = arith.addf %326, %328 : vector<32x32xf32>
    %330 = vector.extract_strided_slice %322 {offsets = [0, 96], sizes = [32, 32], strides = [1, 1]} : vector<32x128xf32> to vector<32x32xf32>
    %331 = math.tanh %329 : vector<32x32xf32>
    %332 = arith.mulf %330, %331 : vector<32x32xf32>
    %c224_77 = arith.constant 224 : index
    %c0_78 = arith.constant 0 : index
    %333 = vector.load %arg12[%c224_77, %c0_78] : memref<256x32xf32, #tpu.memory_space<vmem>>, vector<32x32xf32>
    tpu.vector_store %arg12[%c224_77, %c0_78], %332 {strides = array<i32>} : memref<256x32xf32, #tpu.memory_space<vmem>>, vector<32x32xf32>,
    %c0_79 = arith.constant 0 : index
    %c0_80 = arith.constant 0 : index
    %334 = vector.load %arg12[%c0_79, %c0_80] : memref<256x32xf32, #tpu.memory_space<vmem>>, vector<256x32xf32>
    %c0_81 = arith.constant 0 : index
    %c0_82 = arith.constant 0 : index
    %335 = vector.load %arg6[%c0_81, %c0_82] : memref<32x32xf32, #tpu.memory_space<vmem>>, vector<32x32xf32>
    %cst_83 = arith.constant dense<0.000000e+00> : vector<256x32xf32>
    %336 = tpu.matmul %334, %335, %cst_83 {dimension_numbers = #tpu.dot_dimension_numbers<[1], [0], [0], [1], [0, 0, 1, 1], [], []>} : vector<256x32xf32>, vector<32x32xf32>, vector<256x32xf32> -> vector<256x32xf32>
    %c0_84 = arith.constant 0 : index
    %c0_85 = arith.constant 0 : index
    %337 = vector.load %arg7[%c0_84, %c0_85] : memref<1x32xf32, #tpu.memory_space<vmem>>, vector<1x32xf32>
    %338 = vector.broadcast %337 : vector<1x32xf32> to vector<256x32xf32>
    %339 = arith.addf %336, %338 : vector<256x32xf32>
    %cst_86 = arith.constant 0.000000e+00 : f32
    %340 = vector.broadcast %cst_86 : f32 to vector<256x32xf32>
    %341 = arith.maximumf %339, %340 : vector<256x32xf32>
    %c0_87 = arith.constant 0 : index
    %c0_88 = arith.constant 0 : index
    %342 = vector.load %arg8[%c0_87, %c0_88] : memref<8x32xf32, #tpu.memory_space<vmem>>, vector<8x32xf32>
    %cst_89 = arith.constant dense<0.000000e+00> : vector<8x256xf32>
    %343 = tpu.matmul %342, %341, %cst_89 {dimension_numbers = #tpu.dot_dimension_numbers<[1], [1], [0], [0], [0, 0, 1, 0], [], []>} : vector<8x32xf32>, vector<256x32xf32>, vector<8x256xf32> -> vector<8x256xf32>
    %c0_90 = arith.constant 0 : index
    %c0_91 = arith.constant 0 : index
    %344 = vector.load %arg9[%c0_90, %c0_91] : memref<8x1xf32, #tpu.memory_space<vmem>>, vector<8x1xf32>
    %345 = vector.broadcast %344 : vector<8x1xf32> to vector<8x256xf32>
    %346 = arith.addf %343, %345 : vector<8x256xf32>
    %c0_92 = arith.constant 0 : index
    %c0_93 = arith.constant 0 : index
    %347 = vector.load %arg10[%c0_92, %c0_93] : memref<8x256xf32, #tpu.memory_space<vmem>>, vector<8x256xf32>
    tpu.vector_store %arg10[%c0_92, %c0_93], %346 {strides = array<i32>} : memref<8x256xf32, #tpu.memory_space<vmem>>, vector<8x256xf32>,
    return
  }
}

</mosaic_0001>

<llo_original>
// kernel: _lambda_.1
$region0: #{_lambda_.1}
  #allocation0 [shape = 'u32[]', space=smem, size = 0x4, offset = 0x4, fixed_abs, tag = 'smem constant byte address 0x4 - core index']
  #allocation1 [shape = 'u32[144,128]{1,0:T(1,128)}', space=vmem, size = 0x12000, scoped, tag = 'internal scratch']
  #allocation2 [shape = 'f32[256,128]{1,0:T(8,128)}', space=vmem, size = 0x20000, scoped, tag = 'scratch operand']
  #allocation3 [shape = 'f32[256,32]{1,0:T(8,128)}', space=vmem, size = 0x20000, scoped, tag = 'scratch operand']
  %s0 = inlined_call_operand.vmem [shape: f32[256,16], index: 0, kind: input, shape index: {}]
  %s1 = inlined_call_operand.vmem [shape: f32[16,128], index: 1, kind: input, shape index: {}]
  %s2 = inlined_call_operand.vmem [shape: f32[1,128], index: 2, kind: input, shape index: {}]
  %s3 = inlined_call_operand.vmem [shape: f32[32,128], index: 3, kind: input, shape index: {}]
  %s4 = inlined_call_operand.vmem [shape: f32[64,128], index: 4, kind: input, shape index: {}]
  %s5 = inlined_call_operand.vmem [shape: f32[1,128], index: 5, kind: input, shape index: {}]
  %s6 = inlined_call_operand.vmem [shape: f32[32,32], index: 6, kind: input, shape index: {}]
  %s7 = inlined_call_operand.vmem [shape: f32[1,32], index: 7, kind: input, shape index: {}]
  %s8 = inlined_call_operand.vmem [shape: f32[8,32], index: 8, kind: input, shape index: {}]
  %s9 = inlined_call_operand.vmem [shape: f32[8,1], index: 9, kind: input, shape index: {}]
  %s10 = inlined_call_operand.vmem [shape: f32[8,256], index: 10, kind: output, shape index: {}]
  %s11 = sld [smem:[#allocation0]]
  $region50: #{_lambda_.1} parent=0
    _
  %s13 = ssub.s32 1, %s11
  %s14 = scalar_select 0, %s13, %s11
  // Predicated region
  $region2: #{_lambda_.1} parent=0 // pred_check
    _
  $region3: #{_lambda_.1} parent=0 // pred_check_branch
    %16 = sbr.rel (0) target = $region5
  $region4: #{_lambda_.1} parent=0 // pred_region
    _
  $region5: #{_lambda_.1} parent=0 // pred_fallthru
    _
  // Predicated region
  $region6: #{_lambda_.1} parent=0 // pred_check
    _
  $region7: #{_lambda_.1} parent=0 // pred_check_branch
    %18 = sbr.rel (0) target = $region9
  $region8: #{_lambda_.1} parent=0 // pred_region
    _
  $region9: #{_lambda_.1} parent=0 // pred_fallthru
    _
  // Predicated region
  $region10: #{_lambda_.1} parent=0 // pred_check
    _
  $region11: #{_lambda_.1} parent=0 // pred_check_branch
    %20 = sbr.rel (0) target = $region13
  $region12: #{_lambda_.1} parent=0 // pred_region
    _
  $region13: #{_lambda_.1} parent=0 // pred_fallthru
    _
  // Predicated region
  $region14: #{_lambda_.1} parent=0 // pred_check
    _
  $region15: #{_lambda_.1} parent=0 // pred_check_branch
    %22 = sbr.rel (0) target = $region17
  $region16: #{_lambda_.1} parent=0 // pred_region
    _
  $region17: #{_lambda_.1} parent=0 // pred_fallthru
    _
  // Predicated region
  $region18: #{_lambda_.1} parent=0 // pred_check
    _
  $region19: #{_lambda_.1} parent=0 // pred_check_branch
    %24 = sbr.rel (0) target = $region21
  $region20: #{_lambda_.1} parent=0 // pred_region
    _
  $region21: #{_lambda_.1} parent=0 // pred_fallthru
    _
  // Predicated region
  $region22: #{_lambda_.1} parent=0 // pred_check
    _
  $region23: #{_lambda_.1} parent=0 // pred_check_branch
    %26 = sbr.rel (0) target = $region25
  $region24: #{_lambda_.1} parent=0 // pred_region
    _
  $region25: #{_lambda_.1} parent=0 // pred_fallthru
    _
  // Predicated region
  $region26: #{_lambda_.1} parent=0 // pred_check
    _
  $region27: #{_lambda_.1} parent=0 // pred_check_branch
    %28 = sbr.rel (0) target = $region29
  $region28: #{_lambda_.1} parent=0 // pred_region
    _
  $region29: #{_lambda_.1} parent=0 // pred_fallthru
    _
  // Predicated region
  $region30: #{_lambda_.1} parent=0 // pred_check
    _
  $region31: #{_lambda_.1} parent=0 // pred_check_branch
    %30 = sbr.rel (0) target = $region33
  $region32: #{_lambda_.1} parent=0 // pred_region
    _
  $region33: #{_lambda_.1} parent=0 // pred_fallthru
    _
  // Predicated region
  $region34: #{_lambda_.1} parent=0 // pred_check
    _
  $region35: #{_lambda_.1} parent=0 // pred_check_branch
    %32 = sbr.rel (0) target = $region37
  $region36: #{_lambda_.1} parent=0 // pred_region
    _
  $region37: #{_lambda_.1} parent=0 // pred_fallthru
    _
  // Predicated region
  $region38: #{_lambda_.1} parent=0 // pred_check
    _
  $region39: #{_lambda_.1} parent=0 // pred_check_branch
    %34 = sbr.rel (0) target = $region41
  $region40: #{_lambda_.1} parent=0 // pred_region
    _
  $region41: #{_lambda_.1} parent=0 // pred_fallthru
    _
  %v35 = vld [vmem:[%s0] sm:$0xff]
  %v36 = vld [vmem:[%s0 + $0x8] sm:$0xff]
  %v37 = vld [vmem:[%s0 + $0x10] sm:$0xff]
  %v38 = vld [vmem:[%s0 + $0x18] sm:$0xff]
  %v39 = vld [vmem:[%s0 + $0x20] sm:$0xff]
  %v40 = vld [vmem:[%s0 + $0x28] sm:$0xff]
  %v41 = vld [vmem:[%s0 + $0x30] sm:$0xff]
  %v42 = vld [vmem:[%s0 + $0x38] sm:$0xff]
  %v43 = vld [vmem:[%s0 + $0x40] sm:$0xff]
  %v44 = vld [vmem:[%s0 + $0x48] sm:$0xff]
  %v45 = vld [vmem:[%s0 + $0x50] sm:$0xff]
  %v46 = vld [vmem:[%s0 + $0x58] sm:$0xff]
  %v47 = vld [vmem:[%s0 + $0x60] sm:$0xff]
  %v48 = vld [vmem:[%s0 + $0x68] sm:$0xff]
  %v49 = vld [vmem:[%s0 + $0x70] sm:$0xff]
  %v50 = vld [vmem:[%s0 + $0x78] sm:$0xff]
  %v51 = vld [vmem:[%s0 + $0x80] sm:$0xff]
  %v52 = vld [vmem:[%s0 + $0x88] sm:$0xff]
  %v53 = vld [vmem:[%s0 + $0x90] sm:$0xff]
  %v54 = vld [vmem:[%s0 + $0x98] sm:$0xff]
  %v55 = vld [vmem:[%s0 + $0xa0] sm:$0xff]
  %v56 = vld [vmem:[%s0 + $0xa8] sm:$0xff]
  %v57 = vld [vmem:[%s0 + $0xb0] sm:$0xff]
  %v58 = vld [vmem:[%s0 + $0xb8] sm:$0xff]
  %v59 = vld [vmem:[%s0 + $0xc0] sm:$0xff]
  %v60 = vld [vmem:[%s0 + $0xc8] sm:$0xff]
  %v61 = vld [vmem:[%s0 + $0xd0] sm:$0xff]
  %v62 = vld [vmem:[%s0 + $0xd8] sm:$0xff]
  %v63 = vld [vmem:[%s0 + $0xe0] sm:$0xff]
  %v64 = vld [vmem:[%s0 + $0xe8] sm:$0xff]
  %v65 = vld [vmem:[%s0 + $0xf0] sm:$0xff]
  %v66 = vld [vmem:[%s0 + $0xf8] sm:$0xff]
  %vm67 = vcmask 130048
  %v68 = vsel %vm67, %v35, 0.0
  %69 = vadd.xlane.f32.xlu0 %v68
  %v70 = vpop.xlane.xlu0 %69
  %v71 = vsel %vm67, %v36, 0.0
  %72 = vadd.xlane.f32.xlu0 %v71
  %v73 = vpop.xlane.xlu0 %72
  %v74 = vsel %vm67, %v37, 0.0
  %75 = vadd.xlane.f32.xlu0 %v74
  %v76 = vpop.xlane.xlu0 %75
  %v77 = vsel %vm67, %v38, 0.0
  %78 = vadd.xlane.f32.xlu0 %v77
  %v79 = vpop.xlane.xlu0 %78
  %v80 = vsel %vm67, %v39, 0.0
  %81 = vadd.xlane.f32.xlu0 %v80
  %v82 = vpop.xlane.xlu0 %81
  %v83 = vsel %vm67, %v40, 0.0
  %84 = vadd.xlane.f32.xlu0 %v83
  %v85 = vpop.xlane.xlu0 %84
  %v86 = vsel %vm67, %v41, 0.0
  %87 = vadd.xlane.f32.xlu0 %v86
  %v88 = vpop.xlane.xlu0 %87
  %v89 = vsel %vm67, %v42, 0.0
  %90 = vadd.xlane.f32.xlu0 %v89
  %v91 = vpop.xlane.xlu0 %90
  %v92 = vsel %vm67, %v43, 0.0
  %93 = vadd.xlane.f32.xlu0 %v92
  %v94 = vpop.xlane.xlu0 %93
  %v95 = vsel %vm67, %v44, 0.0
  %96 = vadd.xlane.f32.xlu0 %v95
  %v97 = vpop.xlane.xlu0 %96
  %v98 = vsel %vm67, %v45, 0.0
  %99 = vadd.xlane.f32.xlu0 %v98
  %v100 = vpop.xlane.xlu0 %99
  %v101 = vsel %vm67, %v46, 0.0
  %102 = vadd.xlane.f32.xlu0 %v101
  %v103 = vpop.xlane.xlu0 %102
  %v104 = vsel %vm67, %v47, 0.0
  %105 = vadd.xlane.f32.xlu0 %v104
  %v106 = vpop.xlane.xlu0 %105
  %v107 = vsel %vm67, %v48, 0.0
  %108 = vadd.xlane.f32.xlu0 %v107
  %v109 = vpop.xlane.xlu0 %108
  %v110 = vsel %vm67, %v49, 0.0
  %111 = vadd.xlane.f32.xlu0 %v110
  %v112 = vpop.xlane.xlu0 %111
  %v113 = vsel %vm67, %v50, 0.0
  %114 = vadd.xlane.f32.xlu0 %v113
  %v115 = vpop.xlane.xlu0 %114
  %v116 = vsel %vm67, %v51, 0.0
  %117 = vadd.xlane.f32.xlu0 %v116
  %v118 = vpop.xlane.xlu0 %117
  %v119 = vsel %vm67, %v52, 0.0
  %120 = vadd.xlane.f32.xlu0 %v119
  %v121 = vpop.xlane.xlu0 %120
  %v122 = vsel %vm67, %v53, 0.0
  %123 = vadd.xlane.f32.xlu0 %v122
  %v124 = vpop.xlane.xlu0 %123
  %v125 = vsel %vm67, %v54, 0.0
  %126 = vadd.xlane.f32.xlu0 %v125
  %v127 = vpop.xlane.xlu0 %126
  %v128 = vsel %vm67, %v55, 0.0
  %129 = vadd.xlane.f32.xlu0 %v128
  %v130 = vpop.xlane.xlu0 %129
  %v131 = vsel %vm67, %v56, 0.0
  %132 = vadd.xlane.f32.xlu0 %v131
  %v133 = vpop.xlane.xlu0 %132
  %v134 = vsel %vm67, %v57, 0.0
  %135 = vadd.xlane.f32.xlu0 %v134
  %v136 = vpop.xlane.xlu0 %135
  %v137 = vsel %vm67, %v58, 0.0
  %138 = vadd.xlane.f32.xlu0 %v137
  %v139 = vpop.xlane.xlu0 %138
  %v140 = vsel %vm67, %v59, 0.0
  %141 = vadd.xlane.f32.xlu0 %v140
  %v142 = vpop.xlane.xlu0 %141
  %v143 = vsel %vm67, %v60, 0.0
  %144 = vadd.xlane.f32.xlu0 %v143
  %v145 = vpop.xlane.xlu0 %144
  %v146 = vsel %vm67, %v61, 0.0
  %147 = vadd.xlane.f32.xlu0 %v146
  %v148 = vpop.xlane.xlu0 %147
  %v149 = vsel %vm67, %v62, 0.0
  %150 = vadd.xlane.f32.xlu0 %v149
  %v151 = vpop.xlane.xlu0 %150
  %v152 = vsel %vm67, %v63, 0.0
  %153 = vadd.xlane.f32.xlu0 %v152
  %v154 = vpop.xlane.xlu0 %153
  %v155 = vsel %vm67, %v64, 0.0
  %156 = vadd.xlane.f32.xlu0 %v155
  %v157 = vpop.xlane.xlu0 %156
  %v158 = vsel %vm67, %v65, 0.0
  %159 = vadd.xlane.f32.xlu0 %v158
  %v160 = vpop.xlane.xlu0 %159
  %v161 = vsel %vm67, %v66, 0.0
  %162 = vadd.xlane.f32.xlu0 %v161
  %v163 = vpop.xlane.xlu0 %162
  %v164 = vrcp.pop 16.0
  %v165 = vmul.f32 %v70, %v164
  %v166 = vmul.f32 %v73, %v164
  %v167 = vmul.f32 %v76, %v164
  %v168 = vmul.f32 %v79, %v164
  %v169 = vmul.f32 %v82, %v164
  %v170 = vmul.f32 %v85, %v164
  %v171 = vmul.f32 %v88, %v164
  %v172 = vmul.f32 %v91, %v164
  %v173 = vmul.f32 %v94, %v164
  %v174 = vmul.f32 %v97, %v164
  %v175 = vmul.f32 %v100, %v164
  %v176 = vmul.f32 %v103, %v164
  %v177 = vmul.f32 %v106, %v164
  %v178 = vmul.f32 %v109, %v164
  %v179 = vmul.f32 %v112, %v164
  %v180 = vmul.f32 %v115, %v164
  %v181 = vmul.f32 %v118, %v164
  %v182 = vmul.f32 %v121, %v164
  %v183 = vmul.f32 %v124, %v164
  %v184 = vmul.f32 %v127, %v164
  %v185 = vmul.f32 %v130, %v164
  %v186 = vmul.f32 %v133, %v164
  %v187 = vmul.f32 %v136, %v164
  %v188 = vmul.f32 %v139, %v164
  %v189 = vmul.f32 %v142, %v164
  %v190 = vmul.f32 %v145, %v164
  %v191 = vmul.f32 %v148, %v164
  %v192 = vmul.f32 %v151, %v164
  %v193 = vmul.f32 %v154, %v164
  %v194 = vmul.f32 %v157, %v164
  %v195 = vmul.f32 %v160, %v164
  %v196 = vmul.f32 %v163, %v164
  %v197 = vsub.f32 %v35, %v165
  %v198 = vsub.f32 %v36, %v166
  %v199 = vsub.f32 %v37, %v167
  %v200 = vsub.f32 %v38, %v168
  %v201 = vsub.f32 %v39, %v169
  %v202 = vsub.f32 %v40, %v170
  %v203 = vsub.f32 %v41, %v171
  %v204 = vsub.f32 %v42, %v172
  %v205 = vsub.f32 %v43, %v173
  %v206 = vsub.f32 %v44, %v174
  %v207 = vsub.f32 %v45, %v175
  %v208 = vsub.f32 %v46, %v176
  %v209 = vsub.f32 %v47, %v177
  %v210 = vsub.f32 %v48, %v178
  %v211 = vsub.f32 %v49, %v179
  %v212 = vsub.f32 %v50, %v180
  %v213 = vsub.f32 %v51, %v181
  %v214 = vsub.f32 %v52, %v182
  %v215 = vsub.f32 %v53, %v183
  %v216 = vsub.f32 %v54, %v184
  %v217 = vsub.f32 %v55, %v185
  %v218 = vsub.f32 %v56, %v186
  %v219 = vsub.f32 %v57, %v187
  %v220 = vsub.f32 %v58, %v188
  %v221 = vsub.f32 %v59, %v189
  %v222 = vsub.f32 %v60, %v190
  %v223 = vsub.f32 %v61, %v191
  %v224 = vsub.f32 %v62, %v192
  %v225 = vsub.f32 %v63, %v193
  %v226 = vsub.f32 %v64, %v194
  %v227 = vsub.f32 %v65, %v195
  %v228 = vsub.f32 %v66, %v196
  %v229 = vmul.f32 %v197, %v197
  %v230 = vmul.f32 %v198, %v198
  %v231 = vmul.f32 %v199, %v199
  %v232 = vmul.f32 %v200, %v200
  %v233 = vmul.f32 %v201, %v201
  %v234 = vmul.f32 %v202, %v202
  %v235 = vmul.f32 %v203, %v203
  %v236 = vmul.f32 %v204, %v204
  %v237 = vmul.f32 %v205, %v205
  %v238 = vmul.f32 %v206, %v206
  %v239 = vmul.f32 %v207, %v207
  %v240 = vmul.f32 %v208, %v208
  %v241 = vmul.f32 %v209, %v209
  %v242 = vmul.f32 %v210, %v210
  %v243 = vmul.f32 %v211, %v211
  %v244 = vmul.f32 %v212, %v212
  %v245 = vmul.f32 %v213, %v213
  %v246 = vmul.f32 %v214, %v214
  %v247 = vmul.f32 %v215, %v215
  %v248 = vmul.f32 %v216, %v216
  %v249 = vmul.f32 %v217, %v217
  %v250 = vmul.f32 %v218, %v218
  %v251 = vmul.f32 %v219, %v219
  %v252 = vmul.f32 %v220, %v220
  %v253 = vmul.f32 %v221, %v221
  %v254 = vmul.f32 %v222, %v222
  %v255 = vmul.f32 %v223, %v223
  %v256 = vmul.f32 %v224, %v224
  %v257 = vmul.f32 %v225, %v225
  %v258 = vmul.f32 %v226, %v226
  %v259 = vmul.f32 %v227, %v227
  %v260 = vmul.f32 %v228, %v228
  %v261 = vsel %vm67, %v229, 0.0
  %262 = vadd.xlane.f32.xlu0 %v261
  %v263 = vpop.xlane.xlu0 %262
  %v264 = vsel %vm67, %v230, 0.0
  %265 = vadd.xlane.f32.xlu0 %v264
  %v266 = vpop.xlane.xlu0 %265
  %v267 = vsel %vm67, %v231, 0.0
  %268 = vadd.xlane.f32.xlu0 %v267
  %v269 = vpop.xlane.xlu0 %268
  %v270 = vsel %vm67, %v232, 0.0
  %271 = vadd.xlane.f32.xlu0 %v270
  %v272 = vpop.xlane.xlu0 %271
  %v273 = vsel %vm67, %v233, 0.0
  %274 = vadd.xlane.f32.xlu0 %v273
  %v275 = vpop.xlane.xlu0 %274
  %v276 = vsel %vm67, %v234, 0.0
  %277 = vadd.xlane.f32.xlu0 %v276
  %v278 = vpop.xlane.xlu0 %277
  %v279 = vsel %vm67, %v235, 0.0
  %280 = vadd.xlane.f32.xlu0 %v279
  %v281 = vpop.xlane.xlu0 %280
  %v282 = vsel %vm67, %v236, 0.0
  %283 = vadd.xlane.f32.xlu0 %v282
  %v284 = vpop.xlane.xlu0 %283
  %v285 = vsel %vm67, %v237, 0.0
  %286 = vadd.xlane.f32.xlu0 %v285
  %v287 = vpop.xlane.xlu0 %286
  %v288 = vsel %vm67, %v238, 0.0
  %289 = vadd.xlane.f32.xlu0 %v288
  %v290 = vpop.xlane.xlu0 %289
  %v291 = vsel %vm67, %v239, 0.0
  %292 = vadd.xlane.f32.xlu0 %v291
  %v293 = vpop.xlane.xlu0 %292
  %v294 = vsel %vm67, %v240, 0.0
  %295 = vadd.xlane.f32.xlu0 %v294
  %v296 = vpop.xlane.xlu0 %295
  %v297 = vsel %vm67, %v241, 0.0
  %298 = vadd.xlane.f32.xlu0 %v297
  %v299 = vpop.xlane.xlu0 %298
  %v300 = vsel %vm67, %v242, 0.0
  %301 = vadd.xlane.f32.xlu0 %v300
  %v302 = vpop.xlane.xlu0 %301
  %v303 = vsel %vm67, %v243, 0.0
  %304 = vadd.xlane.f32.xlu0 %v303
  %v305 = vpop.xlane.xlu0 %304
  %v306 = vsel %vm67, %v244, 0.0
  %307 = vadd.xlane.f32.xlu0 %v306
  %v308 = vpop.xlane.xlu0 %307
  %v309 = vsel %vm67, %v245, 0.0
  %310 = vadd.xlane.f32.xlu0 %v309
  %v311 = vpop.xlane.xlu0 %310
  %v312 = vsel %vm67, %v246, 0.0
  %313 = vadd.xlane.f32.xlu0 %v312
  %v314 = vpop.xlane.xlu0 %313
  %v315 = vsel %vm67, %v247, 0.0
  %316 = vadd.xlane.f32.xlu0 %v315
  %v317 = vpop.xlane.xlu0 %316
  %v318 = vsel %vm67, %v248, 0.0
  %319 = vadd.xlane.f32.xlu0 %v318
  %v320 = vpop.xlane.xlu0 %319
  %v321 = vsel %vm67, %v249, 0.0
  %322 = vadd.xlane.f32.xlu0 %v321
  %v323 = vpop.xlane.xlu0 %322
  %v324 = vsel %vm67, %v250, 0.0
  %325 = vadd.xlane.f32.xlu0 %v324
  %v326 = vpop.xlane.xlu0 %325
  %v327 = vsel %vm67, %v251, 0.0
  %328 = vadd.xlane.f32.xlu0 %v327
  %v329 = vpop.xlane.xlu0 %328
  %v330 = vsel %vm67, %v252, 0.0
  %331 = vadd.xlane.f32.xlu0 %v330
  %v332 = vpop.xlane.xlu0 %331
  %v333 = vsel %vm67, %v253, 0.0
  %334 = vadd.xlane.f32.xlu0 %v333
  %v335 = vpop.xlane.xlu0 %334
  %v336 = vsel %vm67, %v254, 0.0
  %337 = vadd.xlane.f32.xlu0 %v336
  %v338 = vpop.xlane.xlu0 %337
  %v339 = vsel %vm67, %v255, 0.0
  %340 = vadd.xlane.f32.xlu0 %v339
  %v341 = vpop.xlane.xlu0 %340
  %v342 = vsel %vm67, %v256, 0.0
  %343 = vadd.xlane.f32.xlu0 %v342
  %v344 = vpop.xlane.xlu0 %343
  %v345 = vsel %vm67, %v257, 0.0
  %346 = vadd.xlane.f32.xlu0 %v345
  %v347 = vpop.xlane.xlu0 %346
  %v348 = vsel %vm67, %v258, 0.0
  %349 = vadd.xlane.f32.xlu0 %v348
  %v350 = vpop.xlane.xlu0 %349
  %v351 = vsel %vm67, %v259, 0.0
  %352 = vadd.xlane.f32.xlu0 %v351
  %v353 = vpop.xlane.xlu0 %352
  %v354 = vsel %vm67, %v260, 0.0
  %355 = vadd.xlane.f32.xlu0 %v354
  %v356 = vpop.xlane.xlu0 %355
  %v357 = vmul.f32 %v263, %v164
  %v358 = vmul.f32 %v266, %v164
  %v359 = vmul.f32 %v269, %v164
  %v360 = vmul.f32 %v272, %v164
  %v361 = vmul.f32 %v275, %v164
  %v362 = vmul.f32 %v278, %v164
  %v363 = vmul.f32 %v281, %v164
  %v364 = vmul.f32 %v284, %v164
  %v365 = vmul.f32 %v287, %v164
  %v366 = vmul.f32 %v290, %v164
  %v367 = vmul.f32 %v293, %v164
  %v368 = vmul.f32 %v296, %v164
  %v369 = vmul.f32 %v299, %v164
  %v370 = vmul.f32 %v302, %v164
  %v371 = vmul.f32 %v305, %v164
  %v372 = vmul.f32 %v308, %v164
  %v373 = vmul.f32 %v311, %v164
  %v374 = vmul.f32 %v314, %v164
  %v375 = vmul.f32 %v317, %v164
  %v376 = vmul.f32 %v320, %v164
  %v377 = vmul.f32 %v323, %v164
  %v378 = vmul.f32 %v326, %v164
  %v379 = vmul.f32 %v329, %v164
  %v380 = vmul.f32 %v332, %v164
  %v381 = vmul.f32 %v335, %v164
  %v382 = vmul.f32 %v338, %v164
  %v383 = vmul.f32 %v341, %v164
  %v384 = vmul.f32 %v344, %v164
  %v385 = vmul.f32 %v347, %v164
  %v386 = vmul.f32 %v350, %v164
  %v387 = vmul.f32 %v353, %v164
  %v388 = vmul.f32 %v356, %v164
  %v389 = vadd.f32 %v357, 1e-05
  %v390 = vadd.f32 %v358, 1e-05
  %v391 = vadd.f32 %v359, 1e-05
  %v392 = vadd.f32 %v360, 1e-05
  %v393 = vadd.f32 %v361, 1e-05
  %v394 = vadd.f32 %v362, 1e-05
  %v395 = vadd.f32 %v363, 1e-05
  %v396 = vadd.f32 %v364, 1e-05
  %v397 = vadd.f32 %v365, 1e-05
  %v398 = vadd.f32 %v366, 1e-05
  %v399 = vadd.f32 %v367, 1e-05
  %v400 = vadd.f32 %v368, 1e-05
  %v401 = vadd.f32 %v369, 1e-05
  %v402 = vadd.f32 %v370, 1e-05
  %v403 = vadd.f32 %v371, 1e-05
  %v404 = vadd.f32 %v372, 1e-05
  %v405 = vadd.f32 %v373, 1e-05
  %v406 = vadd.f32 %v374, 1e-05
  %v407 = vadd.f32 %v375, 1e-05
  %v408 = vadd.f32 %v376, 1e-05
  %v409 = vadd.f32 %v377, 1e-05
  %v410 = vadd.f32 %v378, 1e-05
  %v411 = vadd.f32 %v379, 1e-05
  %v412 = vadd.f32 %v380, 1e-05
  %v413 = vadd.f32 %v381, 1e-05
  %v414 = vadd.f32 %v382, 1e-05
  %v415 = vadd.f32 %v383, 1e-05
  %v416 = vadd.f32 %v384, 1e-05
  %v417 = vadd.f32 %v385, 1e-05
  %v418 = vadd.f32 %v386, 1e-05
  %v419 = vadd.f32 %v387, 1e-05
  %v420 = vadd.f32 %v388, 1e-05
  %v421 = vrsqrt.pop %v389
  %v422 = vrsqrt.pop %v390
  %v423 = vrsqrt.pop %v391
  %v424 = vrsqrt.pop %v392
  %v425 = vrsqrt.pop %v393
  %v426 = vrsqrt.pop %v394
  %v427 = vrsqrt.pop %v395
  %v428 = vrsqrt.pop %v396
  %v429 = vrsqrt.pop %v397
  %v430 = vrsqrt.pop %v398
  %v431 = vrsqrt.pop %v399
  %v432 = vrsqrt.pop %v400
  %v433 = vrsqrt.pop %v401
  %v434 = vrsqrt.pop %v402
  %v435 = vrsqrt.pop %v403
  %v436 = vrsqrt.pop %v404
  %v437 = vrsqrt.pop %v405
  %v438 = vrsqrt.pop %v406
  %v439 = vrsqrt.pop %v407
  %v440 = vrsqrt.pop %v408
  %v441 = vrsqrt.pop %v409
  %v442 = vrsqrt.pop %v410
  %v443 = vrsqrt.pop %v411
  %v444 = vrsqrt.pop %v412
  %v445 = vrsqrt.pop %v413
  %v446 = vrsqrt.pop %v414
  %v447 = vrsqrt.pop %v415
  %v448 = vrsqrt.pop %v416
  %v449 = vrsqrt.pop %v417
  %v450 = vrsqrt.pop %v418
  %v451 = vrsqrt.pop %v419
  %v452 = vrsqrt.pop %v420
  %v453 = vmul.f32 %v197, %v421
  %v454 = vmul.f32 %v198, %v422
  %v455 = vmul.f32 %v199, %v423
  %v456 = vmul.f32 %v200, %v424
  %v457 = vmul.f32 %v201, %v425
  %v458 = vmul.f32 %v202, %v426
  %v459 = vmul.f32 %v203, %v427
  %v460 = vmul.f32 %v204, %v428
  %v461 = vmul.f32 %v205, %v429
  %v462 = vmul.f32 %v206, %v430
  %v463 = vmul.f32 %v207, %v431
  %v464 = vmul.f32 %v208, %v432
  %v465 = vmul.f32 %v209, %v433
  %v466 = vmul.f32 %v210, %v434
  %v467 = vmul.f32 %v211, %v435
  %v468 = vmul.f32 %v212, %v436
  %v469 = vmul.f32 %v213, %v437
  %v470 = vmul.f32 %v214, %v438
  %v471 = vmul.f32 %v215, %v439
  %v472 = vmul.f32 %v216, %v440
  %v473 = vmul.f32 %v217, %v441
  %v474 = vmul.f32 %v218, %v442
  %v475 = vmul.f32 %v219, %v443
  %v476 = vmul.f32 %v220, %v444
  %v477 = vmul.f32 %v221, %v445
  %v478 = vmul.f32 %v222, %v446
  %v479 = vmul.f32 %v223, %v447
  %v480 = vmul.f32 %v224, %v448
  %v481 = vmul.f32 %v225, %v449
  %v482 = vmul.f32 %v226, %v450
  %v483 = vmul.f32 %v227, %v451
  %v484 = vmul.f32 %v228, %v452
  %v485 = vld [vmem:[%s1] sm:$0xff]
  %v486 = vld [vmem:[%s1 + $0x8] sm:$0xff]
  %v487 = vld [vmem:[%s2] sm:$0x1]
  %v489 = vlaneseq
  %v490 = vshrl.u32 %v489, 7
  %v491 = vsub.s32 0, %v490
  %v492 = vrot.slane %v487, %v491
  %v495 = vsel %vm67, %v453, 0
  %v498 = vsel %vm67, %v454, 0
  %v501 = vsel %vm67, %v455, 0
  %v504 = vsel %vm67, %v456, 0
  %v507 = vsel %vm67, %v457, 0
  %v510 = vsel %vm67, %v458, 0
  %v513 = vsel %vm67, %v459, 0
  %v516 = vsel %vm67, %v460, 0
  %v519 = vsel %vm67, %v461, 0
  %v522 = vsel %vm67, %v462, 0
  %v525 = vsel %vm67, %v463, 0
  %v528 = vsel %vm67, %v464, 0
  %v531 = vsel %vm67, %v465, 0
  %v534 = vsel %vm67, %v466, 0
  %v537 = vsel %vm67, %v467, 0
  %v540 = vsel %vm67, %v468, 0
  %v543 = vsel %vm67, %v469, 0
  %v546 = vsel %vm67, %v470, 0
  %v549 = vsel %vm67, %v471, 0
  %v552 = vsel %vm67, %v472, 0
  %v555 = vsel %vm67, %v473, 0
  %v558 = vsel %vm67, %v474, 0
  %v561 = vsel %vm67, %v475, 0
  %v564 = vsel %vm67, %v476, 0
  %v567 = vsel %vm67, %v477, 0
  %v570 = vsel %vm67, %v478, 0
  %v573 = vsel %vm67, %v479, 0
  %v576 = vsel %vm67, %v480, 0
  %v579 = vsel %vm67, %v481, 0
  %v582 = vsel %vm67, %v482, 0
  %v585 = vsel %vm67, %v483, 0
  %v588 = vsel %vm67, %v484, 0
  %590 = vmatprep.subr.mxu0 0.0
  %591 = vmatpush1.msra.mxu0 %v485
  %592 = vmatprep.subr.mxu0 0.0
  %593 = vmatpush1.msra.mxu0 %v486
  %594 = vmatprep.subr.mxu0 0.0
  %595 = vmatpush1.msra.mxu0 0.0
  %596 = vmatprep.subr.mxu0 0.0
  %597 = vmatpush1.msra.mxu0 0.0
  %598 = vmatprep.subr.mxu0 0.0
  %599 = vmatpush1.msra.mxu0 0.0
  %600 = vmatprep.subr.mxu0 0.0
  %601 = vmatpush1.msra.mxu0 0.0
  %602 = vmatprep.subr.mxu0 0.0
  %603 = vmatpush1.msra.mxu0 0.0
  %604 = vmatprep.subr.mxu0 0.0
  %605 = vmatpush1.msra.mxu0 0.0
  %606 = vmatprep.subr.mxu0 0.0
  %607 = vmatpush1.msra.mxu0 0.0
  %608 = vmatprep.subr.mxu0 0.0
  %609 = vmatpush1.msra.mxu0 0.0
  %610 = vmatprep.subr.mxu0 0.0
  %611 = vmatpush1.msra.mxu0 0.0
  %612 = vmatprep.subr.mxu0 0.0
  %613 = vmatpush1.msra.mxu0 0.0
  %614 = vmatprep.subr.mxu0 0.0
  %615 = vmatpush1.msra.mxu0 0.0
  %616 = vmatprep.subr.mxu0 0.0
  %617 = vmatpush1.msra.mxu0 0.0
  %618 = vmatprep.subr.mxu0 0.0
  %619 = vmatpush1.msra.mxu0 0.0
  %620 = vmatprep.subr.mxu0 0.0
  %621 = vmatpush1.msra.mxu0 0.0
  %622 = vmatprep.subr.mxu0 0.0
  %623 = vmatpush1.msra.mxu0 0.0
  %624 = vmatprep.subr.mxu0 0.0
  %625 = vmatpush1.msra.mxu0 0.0
  %626 = vmatprep.subr.mxu0 0.0
  %627 = vmatpush1.msra.mxu0 0.0
  %628 = vmatprep.subr.mxu0 0.0
  %629 = vmatpush1.msra.mxu0 0.0
  %630 = vmatprep.subr.mxu0 0.0
  %631 = vmatpush1.msra.mxu0 0.0
  %632 = vmatprep.subr.mxu0 0.0
  %633 = vmatpush1.msra.mxu0 0.0
  %634 = vmatprep.subr.mxu0 0.0
  %635 = vmatpush1.msra.mxu0 0.0
  %636 = vmatprep.subr.mxu0 0.0
  %637 = vmatpush1.msra.mxu0 0.0
  %638 = vmatprep.subr.mxu0 0.0
  %639 = vmatpush1.msra.mxu0 0.0
  %640 = vmatprep.subr.mxu0 0.0
  %641 = vmatpush1.msra.mxu0 0.0
  %642 = vmatprep.subr.mxu0 0.0
  %643 = vmatpush1.msra.mxu0 0.0
  %644 = vmatprep.subr.mxu0 0.0
  %645 = vmatpush1.msra.mxu0 0.0
  %646 = vmatprep.subr.mxu0 0.0
  %647 = vmatpush1.msra.mxu0 0.0
  %648 = vmatprep.subr.mxu0 0.0
  %649 = vmatpush1.msra.mxu0 0.0
  %650 = vmatprep.subr.mxu0 0.0
  %651 = vmatpush1.msra.mxu0 0.0
  %652 = vmatprep.subr.mxu0 0.0
  %653 = vmatpush1.msra.mxu0 0.0
  %654 = vmatprep.mubr.f32.mxu0 0.0
  %655 = vmatmul.mubr.f32.gmra.mrb[0].mxu0 %v495
  %v656 = vpop.f32.mrb[0].mxu0
  %v657 = vadd.f32 %v492, %v656
  %v658 = vpop.f32.mrb[0].mxu0
  %659 = vmatprep.mubr.f32.mxu0 0.0
  %660 = vmatmul.mubr.f32.gmra.mrb[0].mxu0 %v498
  %v661 = vpop.f32.mrb[0].mxu0
  %v662 = vadd.f32 %v492, %v661
  %v663 = vpop.f32.mrb[0].mxu0
  %664 = vmatprep.mubr.f32.mxu0 0.0
  %665 = vmatmul.mubr.f32.gmra.mrb[0].mxu0 %v501
  %v666 = vpop.f32.mrb[0].mxu0
  %v667 = vadd.f32 %v492, %v666
  %v668 = vpop.f32.mrb[0].mxu0
  %669 = vmatprep.mubr.f32.mxu0 0.0
  %670 = vmatmul.mubr.f32.gmra.mrb[0].mxu0 %v504
  %v671 = vpop.f32.mrb[0].mxu0
  %v672 = vadd.f32 %v492, %v671
  %v673 = vpop.f32.mrb[0].mxu0
  %674 = vmatprep.mubr.f32.mxu0 0.0
  %675 = vmatmul.mubr.f32.gmra.mrb[0].mxu0 %v507
  %v676 = vpop.f32.mrb[0].mxu0
  %v677 = vadd.f32 %v492, %v676
  %v678 = vpop.f32.mrb[0].mxu0
  %679 = vmatprep.mubr.f32.mxu0 0.0
  %680 = vmatmul.mubr.f32.gmra.mrb[0].mxu0 %v510
  %v681 = vpop.f32.mrb[0].mxu0
  %v682 = vadd.f32 %v492, %v681
  %v683 = vpop.f32.mrb[0].mxu0
  %684 = vmatprep.mubr.f32.mxu0 0.0
  %685 = vmatmul.mubr.f32.gmra.mrb[0].mxu0 %v513
  %v686 = vpop.f32.mrb[0].mxu0
  %v687 = vadd.f32 %v492, %v686
  %v688 = vpop.f32.mrb[0].mxu0
  %689 = vmatprep.mubr.f32.mxu0 0.0
  %690 = vmatmul.mubr.f32.gmra.mrb[0].mxu0 %v516
  %v691 = vpop.f32.mrb[0].mxu0
  %v692 = vadd.f32 %v492, %v691
  %v693 = vpop.f32.mrb[0].mxu0
  %694 = vmatprep.mubr.f32.mxu0 0.0
  %695 = vmatmul.mubr.f32.gmra.mrb[0].mxu0 %v519
  %v696 = vpop.f32.mrb[0].mxu0
  %v697 = vadd.f32 %v492, %v696
  %v698 = vpop.f32.mrb[0].mxu0
  %699 = vmatprep.mubr.f32.mxu0 0.0
  %700 = vmatmul.mubr.f32.gmra.mrb[0].mxu0 %v522
  %v701 = vpop.f32.mrb[0].mxu0
  %v702 = vadd.f32 %v492, %v701
  %v703 = vpop.f32.mrb[0].mxu0
  %704 = vmatprep.mubr.f32.mxu0 0.0
  %705 = vmatmul.mubr.f32.gmra.mrb[0].mxu0 %v525
  %v706 = vpop.f32.mrb[0].mxu0
  %v707 = vadd.f32 %v492, %v706
  %v708 = vpop.f32.mrb[0].mxu0
  %709 = vmatprep.mubr.f32.mxu0 0.0
  %710 = vmatmul.mubr.f32.gmra.mrb[0].mxu0 %v528
  %v711 = vpop.f32.mrb[0].mxu0
  %v712 = vadd.f32 %v492, %v711
  %v713 = vpop.f32.mrb[0].mxu0
  %714 = vmatprep.mubr.f32.mxu0 0.0
  %715 = vmatmul.mubr.f32.gmra.mrb[0].mxu0 %v531
  %v716 = vpop.f32.mrb[0].mxu0
  %v717 = vadd.f32 %v492, %v716
  %v718 = vpop.f32.mrb[0].mxu0
  %719 = vmatprep.mubr.f32.mxu0 0.0
  %720 = vmatmul.mubr.f32.gmra.mrb[0].mxu0 %v534
  %v721 = vpop.f32.mrb[0].mxu0
  %v722 = vadd.f32 %v492, %v721
  %v723 = vpop.f32.mrb[0].mxu0
  %724 = vmatprep.mubr.f32.mxu0 0.0
  %725 = vmatmul.mubr.f32.gmra.mrb[0].mxu0 %v537
  %v726 = vpop.f32.mrb[0].mxu0
  %v727 = vadd.f32 %v492, %v726
  %v728 = vpop.f32.mrb[0].mxu0
  %729 = vmatprep.mubr.f32.mxu0 0.0
  %730 = vmatmul.mubr.f32.gmra.mrb[0].mxu0 %v540
  %v731 = vpop.f32.mrb[0].mxu0
  %v732 = vadd.f32 %v492, %v731
  %v733 = vpop.f32.mrb[0].mxu0
  %734 = vmatprep.mubr.f32.mxu0 0.0
  %735 = vmatmul.mubr.f32.gmra.mrb[0].mxu0 %v543
  %v736 = vpop.f32.mrb[0].mxu0
  %v737 = vadd.f32 %v492, %v736
  %v738 = vpop.f32.mrb[0].mxu0
  %739 = vmatprep.mubr.f32.mxu0 0.0
  %740 = vmatmul.mubr.f32.gmra.mrb[0].mxu0 %v546
  %v741 = vpop.f32.mrb[0].mxu0
  %v742 = vadd.f32 %v492, %v741
  %v743 = vpop.f32.mrb[0].mxu0
  %744 = vmatprep.mubr.f32.mxu0 0.0
  %745 = vmatmul.mubr.f32.gmra.mrb[0].mxu0 %v549
  %v746 = vpop.f32.mrb[0].mxu0
  %v747 = vadd.f32 %v492, %v746
  %v748 = vpop.f32.mrb[0].mxu0
  %749 = vmatprep.mubr.f32.mxu0 0.0
  %750 = vmatmul.mubr.f32.gmra.mrb[0].mxu0 %v552
  %v751 = vpop.f32.mrb[0].mxu0
  %v752 = vadd.f32 %v492, %v751
  %v753 = vpop.f32.mrb[0].mxu0
  %754 = vmatprep.mubr.f32.mxu0 0.0
  %755 = vmatmul.mubr.f32.gmra.mrb[0].mxu0 %v555
  %v756 = vpop.f32.mrb[0].mxu0
  %v757 = vadd.f32 %v492, %v756
  %v758 = vpop.f32.mrb[0].mxu0
  %759 = vmatprep.mubr.f32.mxu0 0.0
  %760 = vmatmul.mubr.f32.gmra.mrb[0].mxu0 %v558
  %v761 = vpop.f32.mrb[0].mxu0
  %v762 = vadd.f32 %v492, %v761
  %v763 = vpop.f32.mrb[0].mxu0
  %764 = vmatprep.mubr.f32.mxu0 0.0
  %765 = vmatmul.mubr.f32.gmra.mrb[0].mxu0 %v561
  %v766 = vpop.f32.mrb[0].mxu0
  %v767 = vadd.f32 %v492, %v766
  %v768 = vpop.f32.mrb[0].mxu0
  %769 = vmatprep.mubr.f32.mxu0 0.0
  %770 = vmatmul.mubr.f32.gmra.mrb[0].mxu0 %v564
  %v771 = vpop.f32.mrb[0].mxu0
  %v772 = vadd.f32 %v492, %v771
  %v773 = vpop.f32.mrb[0].mxu0
  %774 = vmatprep.mubr.f32.mxu0 0.0
  %775 = vmatmul.mubr.f32.gmra.mrb[0].mxu0 %v567
  %v776 = vpop.f32.mrb[0].mxu0
  %v777 = vadd.f32 %v492, %v776
  %v778 = vpop.f32.mrb[0].mxu0
  %779 = vmatprep.mubr.f32.mxu0 0.0
  %780 = vmatmul.mubr.f32.gmra.mrb[0].mxu0 %v570
  %v781 = vpop.f32.mrb[0].mxu0
  %v782 = vadd.f32 %v492, %v781
  %v783 = vpop.f32.mrb[0].mxu0
  %784 = vmatprep.mubr.f32.mxu0 0.0
  %785 = vmatmul.mubr.f32.gmra.mrb[0].mxu0 %v573
  %v786 = vpop.f32.mrb[0].mxu0
  %v787 = vadd.f32 %v492, %v786
  %v788 = vpop.f32.mrb[0].mxu0
  %789 = vmatprep.mubr.f32.mxu0 0.0
  %790 = vmatmul.mubr.f32.gmra.mrb[0].mxu0 %v576
  %v791 = vpop.f32.mrb[0].mxu0
  %v792 = vadd.f32 %v492, %v791
  %v793 = vpop.f32.mrb[0].mxu0
  %794 = vmatprep.mubr.f32.mxu0 0.0
  %795 = vmatmul.mubr.f32.gmra.mrb[0].mxu0 %v579
  %v796 = vpop.f32.mrb[0].mxu0
  %v797 = vadd.f32 %v492, %v796
  %v798 = vpop.f32.mrb[0].mxu0
  %799 = vmatprep.mubr.f32.mxu0 0.0
  %800 = vmatmul.mubr.f32.gmra.mrb[0].mxu0 %v582
  %v801 = vpop.f32.mrb[0].mxu0
  %v802 = vadd.f32 %v492, %v801
  %v803 = vpop.f32.mrb[0].mxu0
  %804 = vmatprep.mubr.f32.mxu0 0.0
  %805 = vmatmul.mubr.f32.gmra.mrb[0].mxu0 %v585
  %v806 = vpop.f32.mrb[0].mxu0
  %v807 = vadd.f32 %v492, %v806
  %v808 = vpop.f32.mrb[0].mxu0
  %809 = vmatprep.mubr.f32.mxu0 0.0
  %810 = vmatmul.mubr.f32.gmra.mrb[0].mxu0 %v588
  %v811 = vpop.f32.mrb[0].mxu0
  %v812 = vadd.f32 %v492, %v811
  %v813 = vpop.f32.mrb[0].mxu0
  %814 = vdwg.mxu0
  %815 = vst [vmem:[#allocation2] sm:$0xff] %v657
  %816 = vst [vmem:[#allocation2 + $0x8] sm:$0xff] %v662
  %817 = vst [vmem:[#allocation2 + $0x10] sm:$0xff] %v667
  %818 = vst [vmem:[#allocation2 + $0x18] sm:$0xff] %v672
  %819 = vst [vmem:[#allocation2 + $0x20] sm:$0xff] %v677
  %820 = vst [vmem:[#allocation2 + $0x28] sm:$0xff] %v682
  %821 = vst [vmem:[#allocation2 + $0x30] sm:$0xff] %v687
  %822 = vst [vmem:[#allocation2 + $0x38] sm:$0xff] %v692
  %823 = vst [vmem:[#allocation2 + $0x40] sm:$0xff] %v697
  %824 = vst [vmem:[#allocation2 + $0x48] sm:$0xff] %v702
  %825 = vst [vmem:[#allocation2 + $0x50] sm:$0xff] %v707
  %826 = vst [vmem:[#allocation2 + $0x58] sm:$0xff] %v712
  %827 = vst [vmem:[#allocation2 + $0x60] sm:$0xff] %v717
  %828 = vst [vmem:[#allocation2 + $0x68] sm:$0xff] %v722
  %829 = vst [vmem:[#allocation2 + $0x70] sm:$0xff] %v727
  %830 = vst [vmem:[#allocation2 + $0x78] sm:$0xff] %v732
  %831 = vst [vmem:[#allocation2 + $0x80] sm:$0xff] %v737
  %832 = vst [vmem:[#allocation2 + $0x88] sm:$0xff] %v742
  %833 = vst [vmem:[#allocation2 + $0x90] sm:$0xff] %v747
  %834 = vst [vmem:[#allocation2 + $0x98] sm:$0xff] %v752
  %835 = vst [vmem:[#allocation2 + $0xa0] sm:$0xff] %v757
  %836 = vst [vmem:[#allocation2 + $0xa8] sm:$0xff] %v762
  %837 = vst [vmem:[#allocation2 + $0xb0] sm:$0xff] %v767
  %838 = vst [vmem:[#allocation2 + $0xb8] sm:$0xff] %v772
  %839 = vst [vmem:[#allocation2 + $0xc0] sm:$0xff] %v777
  %840 = vst [vmem:[#allocation2 + $0xc8] sm:$0xff] %v782
  %841 = vst [vmem:[#allocation2 + $0xd0] sm:$0xff] %v787
  %842 = vst [vmem:[#allocation2 + $0xd8] sm:$0xff] %v792
  %843 = vst [vmem:[#allocation2 + $0xe0] sm:$0xff] %v797
  %844 = vst [vmem:[#allocation2 + $0xe8] sm:$0xff] %v802
  %845 = vst [vmem:[#allocation2 + $0xf0] sm:$0xff] %v807
  %846 = vst [vmem:[#allocation2 + $0xf8] sm:$0xff] %v812
  %v847 = vld [vmem:[%s3] sm:$0xff]
  %v848 = vld [vmem:[%s3 + $0x8] sm:$0xff]
  %v849 = vld [vmem:[%s3 + $0x10] sm:$0xff]
  %v850 = vld [vmem:[%s3 + $0x18] sm:$0xff]
  %v851 = vld [vmem:[%s4] sm:$0xff]
  %v852 = vld [vmem:[%s4 + $0x8] sm:$0xff]
  %v853 = vld [vmem:[%s4 + $0x10] sm:$0xff]
  %v854 = vld [vmem:[%s4 + $0x18] sm:$0xff]
  %v855 = vld [vmem:[%s4 + $0x20] sm:$0xff]
  %v856 = vld [vmem:[%s4 + $0x28] sm:$0xff]
  %v857 = vld [vmem:[%s4 + $0x30] sm:$0xff]
  %v858 = vld [vmem:[%s4 + $0x38] sm:$0xff]
  %v859 = vld [vmem:[%s5] sm:$0x1]
  %v860 = vld [vmem:[#allocation2] sm:$0xff]
  %v861 = vld [vmem:[#allocation2 + $0x8] sm:$0xff]
  %v862 = vld [vmem:[#allocation2 + $0x10] sm:$0xff]
  %v863 = vld [vmem:[#allocation2 + $0x18] sm:$0xff]
  %vm864 = vcmask 261120
  %v866 = vsel %vm864, 0.0, 0
  %868 = vmatprep.subr.mxu0 0.0
  %869 = vmatpush1.msra.mxu0 %v847
  %870 = vmatprep.subr.mxu0 0.0
  %871 = vmatpush1.msra.mxu0 %v848
  %872 = vmatprep.subr.mxu0 0.0
  %873 = vmatpush1.msra.mxu0 %v849
  %874 = vmatprep.subr.mxu0 0.0
  %875 = vmatpush1.msra.mxu0 %v850
  %876 = vmatprep.subr.mxu0 0.0
  %877 = vmatpush1.msra.mxu0 0.0
  %878 = vmatprep.subr.mxu0 0.0
  %879 = vmatpush1.msra.mxu0 0.0
  %880 = vmatprep.subr.mxu0 0.0
  %881 = vmatpush1.msra.mxu0 0.0
  %882 = vmatprep.subr.mxu0 0.0
  %883 = vmatpush1.msra.mxu0 0.0
  %884 = vmatprep.subr.mxu0 0.0
  %885 = vmatpush1.msra.mxu0 0.0
  %886 = vmatprep.subr.mxu0 0.0
  %887 = vmatpush1.msra.mxu0 0.0
  %888 = vmatprep.subr.mxu0 0.0
  %889 = vmatpush1.msra.mxu0 0.0
  %890 = vmatprep.subr.mxu0 0.0
  %891 = vmatpush1.msra.mxu0 0.0
  %892 = vmatprep.subr.mxu0 0.0
  %893 = vmatpush1.msra.mxu0 0.0
  %894 = vmatprep.subr.mxu0 0.0
  %895 = vmatpush1.msra.mxu0 0.0
  %896 = vmatprep.subr.mxu0 0.0
  %897 = vmatpush1.msra.mxu0 0.0
  %898 = vmatprep.subr.mxu0 0.0
  %899 = vmatpush1.msra.mxu0 0.0
  %900 = vmatprep.subr.mxu0 0.0
  %901 = vmatpush1.msra.mxu0 0.0
  %902 = vmatprep.subr.mxu0 0.0
  %903 = vmatpush1.msra.mxu0 0.0
  %904 = vmatprep.subr.mxu0 0.0
  %905 = vmatpush1.msra.mxu0 0.0
  %906 = vmatprep.subr.mxu0 0.0
  %907 = vmatpush1.msra.mxu0 0.0
  %908 = vmatprep.subr.mxu0 0.0
  %909 = vmatpush1.msra.mxu0 0.0
  %910 = vmatprep.subr.mxu0 0.0
  %911 = vmatpush1.msra.mxu0 0.0
  %912 = vmatprep.subr.mxu0 0.0
  %913 = vmatpush1.msra.mxu0 0.0
  %914 = vmatprep.subr.mxu0 0.0
  %915 = vmatpush1.msra.mxu0 0.0
  %916 = vmatprep.subr.mxu0 0.0
  %917 = vmatpush1.msra.mxu0 0.0
  %918 = vmatprep.subr.mxu0 0.0
  %919 = vmatpush1.msra.mxu0 0.0
  %920 = vmatprep.subr.mxu0 0.0
  %921 = vmatpush1.msra.mxu0 0.0
  %922 = vmatprep.subr.mxu0 0.0
  %923 = vmatpush1.msra.mxu0 0.0
  %924 = vmatprep.subr.mxu0 0.0
  %925 = vmatpush1.msra.mxu0 0.0
  %926 = vmatprep.subr.mxu0 0.0
  %927 = vmatpush1.msra.mxu0 0.0
  %928 = vmatprep.subr.mxu0 0.0
  %929 = vmatpush1.msra.mxu0 0.0
  %930 = vmatprep.subr.mxu0 0.0
  %931 = vmatpush1.msra.mxu0 0.0
  %932 = vmatprep.mubr.f32.mxu0 0.0
  %933 = vmatmul.mubr.f32.gmra.mrb[0].mxu0 %v866
  %v934 = vpop.f32.mrb[0].mxu0
  %v935 = vadd.f32 0.0, %v934
  %v936 = vpop.f32.mrb[0].mxu0
  %937 = vmatprep.mubr.f32.mxu0 0.0
  %938 = vmatmul.mubr.f32.gmra.mrb[0].mxu0 %v866
  %v939 = vpop.f32.mrb[0].mxu0
  %v940 = vadd.f32 0.0, %v939
  %v941 = vpop.f32.mrb[0].mxu0
  %942 = vmatprep.mubr.f32.mxu0 0.0
  %943 = vmatmul.mubr.f32.gmra.mrb[0].mxu0 %v866
  %v944 = vpop.f32.mrb[0].mxu0
  %v945 = vadd.f32 0.0, %v944
  %v946 = vpop.f32.mrb[0].mxu0
  %947 = vmatprep.mubr.f32.mxu0 0.0
  %948 = vmatmul.mubr.f32.gmra.mrb[0].mxu0 %v866
  %v949 = vpop.f32.mrb[0].mxu0
  %v950 = vadd.f32 0.0, %v949
  %v951 = vpop.f32.mrb[0].mxu0
  %952 = vdwg.mxu0
  %v953 = vadd.f32 %v860, %v935
  %v954 = vadd.f32 %v861, %v940
  %v955 = vadd.f32 %v862, %v945
  %v956 = vadd.f32 %v863, %v950
  %v957 = vxor.u32 %v953, 2147483648
  %v958 = vxor.u32 %v954, 2147483648
  %v959 = vxor.u32 %v955, 2147483648
  %v960 = vxor.u32 %v956, 2147483648
  %v961 = vmul.f32 %v957, 1.442695
  %v962 = vpow.pop %v961
  %v963 = vmul.f32 %v958, 1.442695
  %v964 = vpow.pop %v963
  %v965 = vmul.f32 %v959, 1.442695
  %v966 = vpow.pop %v965
  %v967 = vmul.f32 %v960, 1.442695
  %v968 = vpow.pop %v967
  %v969 = vadd.f32 %v962, 1.0
  %v970 = vadd.f32 %v964, 1.0
  %v971 = vadd.f32 %v966, 1.0
  %v972 = vadd.f32 %v968, 1.0
  %v973 = vrcp.pop %v969
  %v974 = vmul.f32 1.0, %v973
  %v975 = vrcp.pop %v970
  %v976 = vmul.f32 1.0, %v975
  %v977 = vrcp.pop %v971
  %v978 = vmul.f32 1.0, %v977
  %v979 = vrcp.pop %v972
  %v980 = vmul.f32 1.0, %v979
  %v981 = vtanh.pop %v953
  %v982 = vtanh.pop %v954
  %v983 = vtanh.pop %v955
  %v984 = vtanh.pop %v956
  %v985 = vmul.f32 %v974, 0.0
  %v986 = vmul.f32 %v976, 0.0
  %v987 = vmul.f32 %v978, 0.0
  %v988 = vmul.f32 %v980, 0.0
  %993 = vrot.lane.b32.xlu0 %v981, 64
  %v994 = vpop.permute.xlu0 %993
  %995 = vrot.lane.b32.xlu0 %v982, 64
  %v996 = vpop.permute.xlu0 %995
  %997 = vrot.lane.b32.xlu0 %v983, 64
  %v998 = vpop.permute.xlu0 %997
  %999 = vrot.lane.b32.xlu0 %v984, 64
  %v1000 = vpop.permute.xlu0 %999
  %v1005 = vmul.f32 %v974, %v994
  %v1006 = vmul.f32 %v976, %v996
  %v1007 = vmul.f32 %v978, %v998
  %v1008 = vmul.f32 %v980, %v1000
  %1013 = vrot.lane.b32.xlu0 %v1005, 32
  %v1014 = vpop.permute.xlu0 %1013
  %1015 = vrot.lane.b32.xlu0 %v1006, 32
  %v1016 = vpop.permute.xlu0 %1015
  %1017 = vrot.lane.b32.xlu0 %v1007, 32
  %v1018 = vpop.permute.xlu0 %1017
  %1019 = vrot.lane.b32.xlu0 %v1008, 32
  %v1020 = vpop.permute.xlu0 %1019
  %v1025 = vadd.f32 %v985, %v1014
  %v1026 = vadd.f32 %v986, %v1016
  %v1027 = vadd.f32 %v987, %v1018
  %v1028 = vadd.f32 %v988, %v1020
  %v1029 = vtanh.pop %v1025
  %v1030 = vtanh.pop %v1026
  %v1031 = vtanh.pop %v1027
  %v1032 = vtanh.pop %v1028
  %1037 = vrot.lane.b32.xlu0 %v1029, 64
  %v1038 = vpop.permute.xlu0 %1037
  %1039 = vrot.lane.b32.xlu0 %v1030, 64
  %v1040 = vpop.permute.xlu0 %1039
  %1041 = vrot.lane.b32.xlu0 %v1031, 64
  %v1042 = vpop.permute.xlu0 %1041
  %1043 = vrot.lane.b32.xlu0 %v1032, 64
  %v1044 = vpop.permute.xlu0 %1043
  %v1049 = vmul.f32 %v974, %v1038
  %v1050 = vmul.f32 %v976, %v1040
  %v1051 = vmul.f32 %v978, %v1042
  %v1052 = vmul.f32 %v980, %v1044
  %1057 = vrot.lane.b32.xlu0 %v1049, 32
  %v1058 = vpop.permute.xlu0 %1057
  %1059 = vrot.lane.b32.xlu0 %v1050, 32
  %v1060 = vpop.permute.xlu0 %1059
  %1061 = vrot.lane.b32.xlu0 %v1051, 32
  %v1062 = vpop.permute.xlu0 %1061
  %1063 = vrot.lane.b32.xlu0 %v1052, 32
  %v1064 = vpop.permute.xlu0 %1063
  %v1069 = vsel %vm864, %v1058, 0.0
  %v1070 = vsel %vm864, %v1060, 0.0
  %v1071 = vsel %vm864, %v1062, 0.0
  %v1072 = vsel %vm864, %v1064, 0.0
  %vm1073 = vcmask 523264
  %v1075 = vsel %vm1073, %v1069, 0
  %v1078 = vsel %vm1073, %v1070, 0
  %v1081 = vsel %vm1073, %v1071, 0
  %v1084 = vsel %vm1073, %v1072, 0
  %1086 = vmatprep.subr.mxu0 0.0
  %1087 = vmatpush1.msra.mxu0 %v851
  %1088 = vmatprep.subr.mxu0 0.0
  %1089 = vmatpush1.msra.mxu0 %v852
  %1090 = vmatprep.subr.mxu0 0.0
  %1091 = vmatpush1.msra.mxu0 %v853
  %1092 = vmatprep.subr.mxu0 0.0
  %1093 = vmatpush1.msra.mxu0 %v854
  %1094 = vmatprep.subr.mxu0 0.0
  %1095 = vmatpush1.msra.mxu0 %v855
  %1096 = vmatprep.subr.mxu0 0.0
  %1097 = vmatpush1.msra.mxu0 %v856
  %1098 = vmatprep.subr.mxu0 0.0
  %1099 = vmatpush1.msra.mxu0 %v857
  %1100 = vmatprep.subr.mxu0 0.0
  %1101 = vmatpush1.msra.mxu0 %v858
  %1102 = vmatprep.subr.mxu0 0.0
  %1103 = vmatpush1.msra.mxu0 0.0
  %1104 = vmatprep.subr.mxu0 0.0
  %1105 = vmatpush1.msra.mxu0 0.0
  %1106 = vmatprep.subr.mxu0 0.0
  %1107 = vmatpush1.msra.mxu0 0.0
  %1108 = vmatprep.subr.mxu0 0.0
  %1109 = vmatpush1.msra.mxu0 0.0
  %1110 = vmatprep.subr.mxu0 0.0
  %1111 = vmatpush1.msra.mxu0 0.0
  %1112 = vmatprep.subr.mxu0 0.0
  %1113 = vmatpush1.msra.mxu0 0.0
  %1114 = vmatprep.subr.mxu0 0.0
  %1115 = vmatpush1.msra.mxu0 0.0
  %1116 = vmatprep.subr.mxu0 0.0
  %1117 = vmatpush1.msra.mxu0 0.0
  %1118 = vmatprep.subr.mxu0 0.0
  %1119 = vmatpush1.msra.mxu0 0.0
  %1120 = vmatprep.subr.mxu0 0.0
  %1121 = vmatpush1.msra.mxu0 0.0
  %1122 = vmatprep.subr.mxu0 0.0
  %1123 = vmatpush1.msra.mxu0 0.0
  %1124 = vmatprep.subr.mxu0 0.0
  %1125 = vmatpush1.msra.mxu0 0.0
  %1126 = vmatprep.subr.mxu0 0.0
  %1127 = vmatpush1.msra.mxu0 0.0
  %1128 = vmatprep.subr.mxu0 0.0
  %1129 = vmatpush1.msra.mxu0 0.0
  %1130 = vmatprep.subr.mxu0 0.0
  %1131 = vmatpush1.msra.mxu0 0.0
  %1132 = vmatprep.subr.mxu0 0.0
  %1133 = vmatpush1.msra.mxu0 0.0
  %1134 = vmatprep.subr.mxu0 0.0
  %1135 = vmatpush1.msra.mxu0 0.0
  %1136 = vmatprep.subr.mxu0 0.0
  %1137 = vmatpush1.msra.mxu0 0.0
  %1138 = vmatprep.subr.mxu0 0.0
  %1139 = vmatpush1.msra.mxu0 0.0
  %1140 = vmatprep.subr.mxu0 0.0
  %1141 = vmatpush1.msra.mxu0 0.0
  %1142 = vmatprep.subr.mxu0 0.0
  %1143 = vmatpush1.msra.mxu0 0.0
  %1144 = vmatprep.subr.mxu0 0.0
  %1145 = vmatpush1.msra.mxu0 0.0
  %1146 = vmatprep.subr.mxu0 0.0
  %1147 = vmatpush1.msra.mxu0 0.0
  %1148 = vmatprep.subr.mxu0 0.0
  %1149 = vmatpush1.msra.mxu0 0.0
  %1150 = vmatprep.mubr.f32.mxu0 0.0
  %1151 = vmatmul.mubr.f32.gmra.mrb[0].mxu0 %v1075
  %v1152 = vpop.f32.mrb[0].mxu0
  %v1153 = vadd.f32 0.0, %v1152
  %v1154 = vpop.f32.mrb[0].mxu0
  %1155 = vmatprep.mubr.f32.mxu0 0.0
  %1156 = vmatmul.mubr.f32.gmra.mrb[0].mxu0 %v1078
  %v1157 = vpop.f32.mrb[0].mxu0
  %v1158 = vadd.f32 0.0, %v1157
  %v1159 = vpop.f32.mrb[0].mxu0
  %1160 = vmatprep.mubr.f32.mxu0 0.0
  %1161 = vmatmul.mubr.f32.gmra.mrb[0].mxu0 %v1081
  %v1162 = vpop.f32.mrb[0].mxu0
  %v1163 = vadd.f32 0.0, %v1162
  %v1164 = vpop.f32.mrb[0].mxu0
  %1165 = vmatprep.mubr.f32.mxu0 0.0
  %1166 = vmatmul.mubr.f32.gmra.mrb[0].mxu0 %v1084
  %v1167 = vpop.f32.mrb[0].mxu0
  %v1168 = vadd.f32 0.0, %v1167
  %v1169 = vpop.f32.mrb[0].mxu0
  %1170 = vdwg.mxu0
  %v1172 = vlaneseq
  %v1173 = vshrl.u32 %v1172, 7
  %v1174 = vsub.s32 0, %v1173
  %v1175 = vrot.slane %v859, %v1174
  %v1177 = vadd.f32 %v1175, %v1153
  %v1178 = vadd.f32 %v1175, %v1158
  %v1179 = vadd.f32 %v1175, %v1163
  %v1180 = vadd.f32 %v1175, %v1168
  %v1181 = vxor.u32 %v1177, 2147483648
  %v1182 = vxor.u32 %v1178, 2147483648
  %v1183 = vxor.u32 %v1179, 2147483648
  %v1184 = vxor.u32 %v1180, 2147483648
  %v1185 = vmul.f32 %v1181, 1.442695
  %v1186 = vpow.pop %v1185
  %v1187 = vmul.f32 %v1182, 1.442695
  %v1188 = vpow.pop %v1187
  %v1189 = vmul.f32 %v1183, 1.442695
  %v1190 = vpow.pop %v1189
  %v1191 = vmul.f32 %v1184, 1.442695
  %v1192 = vpow.pop %v1191
  %v1193 = vadd.f32 %v1186, 1.0
  %v1194 = vadd.f32 %v1188, 1.0
  %v1195 = vadd.f32 %v1190, 1.0
  %v1196 = vadd.f32 %v1192, 1.0
  %v1197 = vrcp.pop %v1193
  %v1198 = vmul.f32 1.0, %v1197
  %v1199 = vrcp.pop %v1194
  %v1200 = vmul.f32 1.0, %v1199
  %v1201 = vrcp.pop %v1195
  %v1202 = vmul.f32 1.0, %v1201
  %v1203 = vrcp.pop %v1196
  %v1204 = vmul.f32 1.0, %v1203
  %v1205 = vtanh.pop %v1177
  %v1206 = vtanh.pop %v1178
  %v1207 = vtanh.pop %v1179
  %v1208 = vtanh.pop %v1180
  %v1209 = vmul.f32 %v1198, 0.0
  %v1210 = vmul.f32 %v1200, 0.0
  %v1211 = vmul.f32 %v1202, 0.0
  %v1212 = vmul.f32 %v1204, 0.0
  %1217 = vrot.lane.b32.xlu0 %v1205, 64
  %v1218 = vpop.permute.xlu0 %1217
  %1219 = vrot.lane.b32.xlu0 %v1206, 64
  %v1220 = vpop.permute.xlu0 %1219
  %1221 = vrot.lane.b32.xlu0 %v1207, 64
  %v1222 = vpop.permute.xlu0 %1221
  %1223 = vrot.lane.b32.xlu0 %v1208, 64
  %v1224 = vpop.permute.xlu0 %1223
  %v1229 = vmul.f32 %v1198, %v1218
  %v1230 = vmul.f32 %v1200, %v1220
  %v1231 = vmul.f32 %v1202, %v1222
  %v1232 = vmul.f32 %v1204, %v1224
  %1237 = vrot.lane.b32.xlu0 %v1229, 32
  %v1238 = vpop.permute.xlu0 %1237
  %1239 = vrot.lane.b32.xlu0 %v1230, 32
  %v1240 = vpop.permute.xlu0 %1239
  %1241 = vrot.lane.b32.xlu0 %v1231, 32
  %v1242 = vpop.permute.xlu0 %1241
  %1243 = vrot.lane.b32.xlu0 %v1232, 32
  %v1244 = vpop.permute.xlu0 %1243
  %v1249 = vadd.f32 %v1209, %v1238
  %v1250 = vadd.f32 %v1210, %v1240
  %v1251 = vadd.f32 %v1211, %v1242
  %v1252 = vadd.f32 %v1212, %v1244
  %v1253 = vtanh.pop %v1249
  %v1254 = vtanh.pop %v1250
  %v1255 = vtanh.pop %v1251
  %v1256 = vtanh.pop %v1252
  %1261 = vrot.lane.b32.xlu0 %v1253, 64
  %v1262 = vpop.permute.xlu0 %1261
  %1263 = vrot.lane.b32.xlu0 %v1254, 64
  %v1264 = vpop.permute.xlu0 %1263
  %1265 = vrot.lane.b32.xlu0 %v1255, 64
  %v1266 = vpop.permute.xlu0 %1265
  %1267 = vrot.lane.b32.xlu0 %v1256, 64
  %v1268 = vpop.permute.xlu0 %1267
  %v1273 = vmul.f32 %v1198, %v1262
  %v1274 = vmul.f32 %v1200, %v1264
  %v1275 = vmul.f32 %v1202, %v1266
  %v1276 = vmul.f32 %v1204, %v1268
  %1281 = vrot.lane.b32.xlu0 %v1273, 32
  %v1282 = vpop.permute.xlu0 %1281
  %1283 = vrot.lane.b32.xlu0 %v1274, 32
  %v1284 = vpop.permute.xlu0 %1283
  %1285 = vrot.lane.b32.xlu0 %v1275, 32
  %v1286 = vpop.permute.xlu0 %1285
  %1287 = vrot.lane.b32.xlu0 %v1276, 32
  %v1288 = vpop.permute.xlu0 %1287
  %1293 = vst.msk [vmem:[#allocation3] sm:$0xff] %vm864, %v1282
  %1294 = vst.msk [vmem:[#allocation3 + $0x8] sm:$0xff] %vm864, %v1284
  %1295 = vst.msk [vmem:[#allocation3 + $0x10] sm:$0xff] %vm864, %v1286
  %1296 = vst.msk [vmem:[#allocation3 + $0x18] sm:$0xff] %vm864, %v1288
  %v1297 = vld [vmem:[#allocation2 + $0x20] sm:$0xff]
  %v1298 = vld [vmem:[#allocation2 + $0x28] sm:$0xff]
  %v1299 = vld [vmem:[#allocation2 + $0x30] sm:$0xff]
  %v1300 = vld [vmem:[#allocation2 + $0x38] sm:$0xff]
  %v1301 = vsel %vm864, %v1058, 0
  %v1303 = vsel %vm864, %v1060, 0
  %v1305 = vsel %vm864, %v1062, 0
  %v1307 = vsel %vm864, %v1064, 0
  %1309 = vmatprep.subr.mxu0 0.0
  %1310 = vmatpush1.msra.mxu0 %v847
  %1311 = vmatprep.subr.mxu0 0.0
  %1312 = vmatpush1.msra.mxu0 %v848
  %1313 = vmatprep.subr.mxu0 0.0
  %1314 = vmatpush1.msra.mxu0 %v849
  %1315 = vmatprep.subr.mxu0 0.0
  %1316 = vmatpush1.msra.mxu0 %v850
  %1317 = vmatprep.subr.mxu0 0.0
  %1318 = vmatpush1.msra.mxu0 0.0
  %1319 = vmatprep.subr.mxu0 0.0
  %1320 = vmatpush1.msra.mxu0 0.0
  %1321 = vmatprep.subr.mxu0 0.0
  %1322 = vmatpush1.msra.mxu0 0.0
  %1323 = vmatprep.subr.mxu0 0.0
  %1324 = vmatpush1.msra.mxu0 0.0
  %1325 = vmatprep.subr.mxu0 0.0
  %1326 = vmatpush1.msra.mxu0 0.0
  %1327 = vmatprep.subr.mxu0 0.0
  %1328 = vmatpush1.msra.mxu0 0.0
  %1329 = vmatprep.subr.mxu0 0.0
  %1330 = vmatpush1.msra.mxu0 0.0
  %1331 = vmatprep.subr.mxu0 0.0
  %1332 = vmatpush1.msra.mxu0 0.0
  %1333 = vmatprep.subr.mxu0 0.0
  %1334 = vmatpush1.msra.mxu0 0.0
  %1335 = vmatprep.subr.mxu0 0.0
  %1336 = vmatpush1.msra.mxu0 0.0
  %1337 = vmatprep.subr.mxu0 0.0
  %1338 = vmatpush1.msra.mxu0 0.0
  %1339 = vmatprep.subr.mxu0 0.0
  %1340 = vmatpush1.msra.mxu0 0.0
  %1341 = vmatprep.subr.mxu0 0.0
  %1342 = vmatpush1.msra.mxu0 0.0
  %1343 = vmatprep.subr.mxu0 0.0
  %1344 = vmatpush1.msra.mxu0 0.0
  %1345 = vmatprep.subr.mxu0 0.0
  %1346 = vmatpush1.msra.mxu0 0.0
  %1347 = vmatprep.subr.mxu0 0.0
  %1348 = vmatpush1.msra.mxu0 0.0
  %1349 = vmatprep.subr.mxu0 0.0
  %1350 = vmatpush1.msra.mxu0 0.0
  %1351 = vmatprep.subr.mxu0 0.0
  %1352 = vmatpush1.msra.mxu0 0.0
  %1353 = vmatprep.subr.mxu0 0.0
  %1354 = vmatpush1.msra.mxu0 0.0
  %1355 = vmatprep.subr.mxu0 0.0
  %1356 = vmatpush1.msra.mxu0 0.0
  %1357 = vmatprep.subr.mxu0 0.0
  %1358 = vmatpush1.msra.mxu0 0.0
  %1359 = vmatprep.subr.mxu0 0.0
  %1360 = vmatpush1.msra.mxu0 0.0
  %1361 = vmatprep.subr.mxu0 0.0
  %1362 = vmatpush1.msra.mxu0 0.0
  %1363 = vmatprep.subr.mxu0 0.0
  %1364 = vmatpush1.msra.mxu0 0.0
  %1365 = vmatprep.subr.mxu0 0.0
  %1366 = vmatpush1.msra.mxu0 0.0
  %1367 = vmatprep.subr.mxu0 0.0
  %1368 = vmatpush1.msra.mxu0 0.0
  %1369 = vmatprep.subr.mxu0 0.0
  %1370 = vmatpush1.msra.mxu0 0.0
  %1371 = vmatprep.subr.mxu0 0.0
  %1372 = vmatpush1.msra.mxu0 0.0
  %1373 = vmatprep.mubr.f32.mxu0 0.0
  %1374 = vmatmul.mubr.f32.gmra.mrb[0].mxu0 %v1301
  %v1375 = vpop.f32.mrb[0].mxu0
  %v1376 = vadd.f32 0.0, %v1375
  %v1377 = vpop.f32.mrb[0].mxu0
  %1378 = vmatprep.mubr.f32.mxu0 0.0
  %1379 = vmatmul.mubr.f32.gmra.mrb[0].mxu0 %v1303
  %v1380 = vpop.f32.mrb[0].mxu0
  %v1381 = vadd.f32 0.0, %v1380
  %v1382 = vpop.f32.mrb[0].mxu0
  %1383 = vmatprep.mubr.f32.mxu0 0.0
  %1384 = vmatmul.mubr.f32.gmra.mrb[0].mxu0 %v1305
  %v1385 = vpop.f32.mrb[0].mxu0
  %v1386 = vadd.f32 0.0, %v1385
  %v1387 = vpop.f32.mrb[0].mxu0
  %1388 = vmatprep.mubr.f32.mxu0 0.0
  %1389 = vmatmul.mubr.f32.gmra.mrb[0].mxu0 %v1307
  %v1390 = vpop.f32.mrb[0].mxu0
  %v1391 = vadd.f32 0.0, %v1390
  %v1392 = vpop.f32.mrb[0].mxu0
  %1393 = vdwg.mxu0
  %v1394 = vadd.f32 %v1297, %v1376
  %v1395 = vadd.f32 %v1298, %v1381
  %v1396 = vadd.f32 %v1299, %v1386
  %v1397 = vadd.f32 %v1300, %v1391
  %v1398 = vxor.u32 %v1394, 2147483648
  %v1399 = vxor.u32 %v1395, 2147483648
  %v1400 = vxor.u32 %v1396, 2147483648
  %v1401 = vxor.u32 %v1397, 2147483648
  %v1402 = vmul.f32 %v1398, 1.442695
  %v1403 = vpow.pop %v1402
  %v1404 = vmul.f32 %v1399, 1.442695
  %v1405 = vpow.pop %v1404
  %v1406 = vmul.f32 %v1400, 1.442695
  %v1407 = vpow.pop %v1406
  %v1408 = vmul.f32 %v1401, 1.442695
  %v1409 = vpow.pop %v1408
  %v1410 = vadd.f32 %v1403, 1.0
  %v1411 = vadd.f32 %v1405, 1.0
  %v1412 = vadd.f32 %v1407, 1.0
  %v1413 = vadd.f32 %v1409, 1.0
  %v1414 = vrcp.pop %v1410
  %v1415 = vmul.f32 1.0, %v1414
  %v1416 = vrcp.pop %v1411
  %v1417 = vmul.f32 1.0, %v1416
  %v1418 = vrcp.pop %v1412
  %v1419 = vmul.f32 1.0, %v1418
  %v1420 = vrcp.pop %v1413
  %v1421 = vmul.f32 1.0, %v1420
  %v1422 = vtanh.pop %v1394
  %v1423 = vtanh.pop %v1395
  %v1424 = vtanh.pop %v1396
  %v1425 = vtanh.pop %v1397
  %v1426 = vmul.f32 %v1415, %v1025
  %v1427 = vmul.f32 %v1417, %v1026
  %v1428 = vmul.f32 %v1419, %v1027
  %v1429 = vmul.f32 %v1421, %v1028
  %1434 = vrot.lane.b32.xlu0 %v1422, 64
  %v1435 = vpop.permute.xlu0 %1434
  %1436 = vrot.lane.b32.xlu0 %v1423, 64
  %v1437 = vpop.permute.xlu0 %1436
  %1438 = vrot.lane.b32.xlu0 %v1424, 64
  %v1439 = vpop.permute.xlu0 %1438
  %1440 = vrot.lane.b32.xlu0 %v1425, 64
  %v1441 = vpop.permute.xlu0 %1440
  %v1446 = vmul.f32 %v1415, %v1435
  %v1447 = vmul.f32 %v1417, %v1437
  %v1448 = vmul.f32 %v1419, %v1439
  %v1449 = vmul.f32 %v1421, %v1441
  %1454 = vrot.lane.b32.xlu0 %v1446, 32
  %v1455 = vpop.permute.xlu0 %1454
  %1456 = vrot.lane.b32.xlu0 %v1447, 32
  %v1457 = vpop.permute.xlu0 %1456
  %1458 = vrot.lane.b32.xlu0 %v1448, 32
  %v1459 = vpop.permute.xlu0 %1458
  %1460 = vrot.lane.b32.xlu0 %v1449, 32
  %v1461 = vpop.permute.xlu0 %1460
  %v1466 = vadd.f32 %v1426, %v1455
  %v1467 = vadd.f32 %v1427, %v1457
  %v1468 = vadd.f32 %v1428, %v1459
  %v1469 = vadd.f32 %v1429, %v1461
  %v1470 = vtanh.pop %v1466
  %v1471 = vtanh.pop %v1467
  %v1472 = vtanh.pop %v1468
  %v1473 = vtanh.pop %v1469
  %1478 = vrot.lane.b32.xlu0 %v1470, 64
  %v1479 = vpop.permute.xlu0 %1478
  %1480 = vrot.lane.b32.xlu0 %v1471, 64
  %v1481 = vpop.permute.xlu0 %1480
  %1482 = vrot.lane.b32.xlu0 %v1472, 64
  %v1483 = vpop.permute.xlu0 %1482
  %1484 = vrot.lane.b32.xlu0 %v1473, 64
  %v1485 = vpop.permute.xlu0 %1484
  %v1490 = vmul.f32 %v1415, %v1479
  %v1491 = vmul.f32 %v1417, %v1481
  %v1492 = vmul.f32 %v1419, %v1483
  %v1493 = vmul.f32 %v1421, %v1485
  %1498 = vrot.lane.b32.xlu0 %v1490, 32
  %v1499 = vpop.permute.xlu0 %1498
  %1500 = vrot.lane.b32.xlu0 %v1491, 32
  %v1501 = vpop.permute.xlu0 %1500
  %1502 = vrot.lane.b32.xlu0 %v1492, 32
  %v1503 = vpop.permute.xlu0 %1502
  %1504 = vrot.lane.b32.xlu0 %v1493, 32
  %v1505 = vpop.permute.xlu0 %1504
  %1510 = vrot.lane.b32.xlu0 %v1273, 64
  %v1511 = vpop.permute.xlu0 %1510
  %1512 = vrot.lane.b32.xlu0 %v1274, 64
  %v1513 = vpop.permute.xlu0 %1512
  %1514 = vrot.lane.b32.xlu0 %v1275, 64
  %v1515 = vpop.permute.xlu0 %1514
  %1516 = vrot.lane.b32.xlu0 %v1276, 64
  %v1517 = vpop.permute.xlu0 %1516
  %v1522 = vsel %vm864, %v1499, %v1511
  %v1523 = vsel %vm864, %v1501, %v1513
  %v1524 = vsel %vm864, %v1503, %v1515
  %v1525 = vsel %vm864, %v1505, %v1517
  %v1527 = vsel %vm1073, %v1522, 0
  %v1530 = vsel %vm1073, %v1523, 0
  %v1533 = vsel %vm1073, %v1524, 0
  %v1536 = vsel %vm1073, %v1525, 0
  %1538 = vmatprep.subr.mxu0 0.0
  %1539 = vmatpush1.msra.mxu0 %v851
  %1540 = vmatprep.subr.mxu0 0.0
  %1541 = vmatpush1.msra.mxu0 %v852
  %1542 = vmatprep.subr.mxu0 0.0
  %1543 = vmatpush1.msra.mxu0 %v853
  %1544 = vmatprep.subr.mxu0 0.0
  %1545 = vmatpush1.msra.mxu0 %v854
  %1546 = vmatprep.subr.mxu0 0.0
  %1547 = vmatpush1.msra.mxu0 %v855
  %1548 = vmatprep.subr.mxu0 0.0
  %1549 = vmatpush1.msra.mxu0 %v856
  %1550 = vmatprep.subr.mxu0 0.0
  %1551 = vmatpush1.msra.mxu0 %v857
  %1552 = vmatprep.subr.mxu0 0.0
  %1553 = vmatpush1.msra.mxu0 %v858
  %1554 = vmatprep.subr.mxu0 0.0
  %1555 = vmatpush1.msra.mxu0 0.0
  %1556 = vmatprep.subr.mxu0 0.0
  %1557 = vmatpush1.msra.mxu0 0.0
  %1558 = vmatprep.subr.mxu0 0.0
  %1559 = vmatpush1.msra.mxu0 0.0
  %1560 = vmatprep.subr.mxu0 0.0
  %1561 = vmatpush1.msra.mxu0 0.0
  %1562 = vmatprep.subr.mxu0 0.0
  %1563 = vmatpush1.msra.mxu0 0.0
  %1564 = vmatprep.subr.mxu0 0.0
  %1565 = vmatpush1.msra.mxu0 0.0
  %1566 = vmatprep.subr.mxu0 0.0
  %1567 = vmatpush1.msra.mxu0 0.0
  %1568 = vmatprep.subr.mxu0 0.0
  %1569 = vmatpush1.msra.mxu0 0.0
  %1570 = vmatprep.subr.mxu0 0.0
  %1571 = vmatpush1.msra.mxu0 0.0
  %1572 = vmatprep.subr.mxu0 0.0
  %1573 = vmatpush1.msra.mxu0 0.0
  %1574 = vmatprep.subr.mxu0 0.0
  %1575 = vmatpush1.msra.mxu0 0.0
  %1576 = vmatprep.subr.mxu0 0.0
  %1577 = vmatpush1.msra.mxu0 0.0
  %1578 = vmatprep.subr.mxu0 0.0
  %1579 = vmatpush1.msra.mxu0 0.0
  %1580 = vmatprep.subr.mxu0 0.0
  %1581 = vmatpush1.msra.mxu0 0.0
  %1582 = vmatprep.subr.mxu0 0.0
  %1583 = vmatpush1.msra.mxu0 0.0
  %1584 = vmatprep.subr.mxu0 0.0
  %1585 = vmatpush1.msra.mxu0 0.0
  %1586 = vmatprep.subr.mxu0 0.0
  %1587 = vmatpush1.msra.mxu0 0.0
  %1588 = vmatprep.subr.mxu0 0.0
  %1589 = vmatpush1.msra.mxu0 0.0
  %1590 = vmatprep.subr.mxu0 0.0
  %1591 = vmatpush1.msra.mxu0 0.0
  %1592 = vmatprep.subr.mxu0 0.0
  %1593 = vmatpush1.msra.mxu0 0.0
  %1594 = vmatprep.subr.mxu0 0.0
  %1595 = vmatpush1.msra.mxu0 0.0
  %1596 = vmatprep.subr.mxu0 0.0
  %1597 = vmatpush1.msra.mxu0 0.0
  %1598 = vmatprep.subr.mxu0 0.0
  %1599 = vmatpush1.msra.mxu0 0.0
  %1600 = vmatprep.subr.mxu0 0.0
  %1601 = vmatpush1.msra.mxu0 0.0
  %1602 = vmatprep.mubr.f32.mxu0 0.0
  %1603 = vmatmul.mubr.f32.gmra.mrb[0].mxu0 %v1527
  %v1604 = vpop.f32.mrb[0].mxu0
  %v1605 = vadd.f32 0.0, %v1604
  %v1606 = vpop.f32.mrb[0].mxu0
  %1607 = vmatprep.mubr.f32.mxu0 0.0
  %1608 = vmatmul.mubr.f32.gmra.mrb[0].mxu0 %v1530
  %v1609 = vpop.f32.mrb[0].mxu0
  %v1610 = vadd.f32 0.0, %v1609
  %v1611 = vpop.f32.mrb[0].mxu0
  %1612 = vmatprep.mubr.f32.mxu0 0.0
  %1613 = vmatmul.mubr.f32.gmra.mrb[0].mxu0 %v1533
  %v1614 = vpop.f32.mrb[0].mxu0
  %v1615 = vadd.f32 0.0, %v1614
  %v1616 = vpop.f32.mrb[0].mxu0
  %1617 = vmatprep.mubr.f32.mxu0 0.0
  %1618 = vmatmul.mubr.f32.gmra.mrb[0].mxu0 %v1536
  %v1619 = vpop.f32.mrb[0].mxu0
  %v1620 = vadd.f32 0.0, %v1619
  %v1621 = vpop.f32.mrb[0].mxu0
  %1622 = vdwg.mxu0
  %v1623 = vadd.f32 %v1175, %v1605
  %v1624 = vadd.f32 %v1175, %v1610
  %v1625 = vadd.f32 %v1175, %v1615
  %v1626 = vadd.f32 %v1175, %v1620
  %v1627 = vxor.u32 %v1623, 2147483648
  %v1628 = vxor.u32 %v1624, 2147483648
  %v1629 = vxor.u32 %v1625, 2147483648
  %v1630 = vxor.u32 %v1626, 2147483648
  %v1631 = vmul.f32 %v1627, 1.442695
  %v1632 = vpow.pop %v1631
  %v1633 = vmul.f32 %v1628, 1.442695
  %v1634 = vpow.pop %v1633
  %v1635 = vmul.f32 %v1629, 1.442695
  %v1636 = vpow.pop %v1635
  %v1637 = vmul.f32 %v1630, 1.442695
  %v1638 = vpow.pop %v1637
  %v1639 = vadd.f32 %v1632, 1.0
  %v1640 = vadd.f32 %v1634, 1.0
  %v1641 = vadd.f32 %v1636, 1.0
  %v1642 = vadd.f32 %v1638, 1.0
  %v1643 = vrcp.pop %v1639
  %v1644 = vmul.f32 1.0, %v1643
  %v1645 = vrcp.pop %v1640
  %v1646 = vmul.f32 1.0, %v1645
  %v1647 = vrcp.pop %v1641
  %v1648 = vmul.f32 1.0, %v1647
  %v1649 = vrcp.pop %v1642
  %v1650 = vmul.f32 1.0, %v1649
  %v1651 = vtanh.pop %v1623
  %v1652 = vtanh.pop %v1624
  %v1653 = vtanh.pop %v1625
  %v1654 = vtanh.pop %v1626
  %v1655 = vmul.f32 %v1644, %v1249
  %v1656 = vmul.f32 %v1646, %v1250
  %v1657 = vmul.f32 %v1648, %v1251
  %v1658 = vmul.f32 %v1650, %v1252
  %1663 = vrot.lane.b32.xlu0 %v1651, 64
  %v1664 = vpop.permute.xlu0 %1663
  %1665 = vrot.lane.b32.xlu0 %v1652, 64
  %v1666 = vpop.permute.xlu0 %1665
  %1667 = vrot.lane.b32.xlu0 %v1653, 64
  %v1668 = vpop.permute.xlu0 %1667
  %1669 = vrot.lane.b32.xlu0 %v1654, 64
  %v1670 = vpop.permute.xlu0 %1669
  %v1675 = vmul.f32 %v1644, %v1664
  %v1676 = vmul.f32 %v1646, %v1666
  %v1677 = vmul.f32 %v1648, %v1668
  %v1678 = vmul.f32 %v1650, %v1670
  %1683 = vrot.lane.b32.xlu0 %v1675, 32
  %v1684 = vpop.permute.xlu0 %1683
  %1685 = vrot.lane.b32.xlu0 %v1676, 32
  %v1686 = vpop.permute.xlu0 %1685
  %1687 = vrot.lane.b32.xlu0 %v1677, 32
  %v1688 = vpop.permute.xlu0 %1687
  %1689 = vrot.lane.b32.xlu0 %v1678, 32
  %v1690 = vpop.permute.xlu0 %1689
  %v1695 = vadd.f32 %v1655, %v1684
  %v1696 = vadd.f32 %v1656, %v1686
  %v1697 = vadd.f32 %v1657, %v1688
  %v1698 = vadd.f32 %v1658, %v1690
  %v1699 = vtanh.pop %v1695
  %v1700 = vtanh.pop %v1696
  %v1701 = vtanh.pop %v1697
  %v1702 = vtanh.pop %v1698
  %1707 = vrot.lane.b32.xlu0 %v1699, 64
  %v1708 = vpop.permute.xlu0 %1707
  %1709 = vrot.lane.b32.xlu0 %v1700, 64
  %v1710 = vpop.permute.xlu0 %1709
  %1711 = vrot.lane.b32.xlu0 %v1701, 64
  %v1712 = vpop.permute.xlu0 %1711
  %1713 = vrot.lane.b32.xlu0 %v1702, 64
  %v1714 = vpop.permute.xlu0 %1713
  %v1719 = vmul.f32 %v1644, %v1708
  %v1720 = vmul.f32 %v1646, %v1710
  %v1721 = vmul.f32 %v1648, %v1712
  %v1722 = vmul.f32 %v1650, %v1714
  %1727 = vrot.lane.b32.xlu0 %v1719, 32
  %v1728 = vpop.permute.xlu0 %1727
  %1729 = vrot.lane.b32.xlu0 %v1720, 32
  %v1730 = vpop.permute.xlu0 %1729
  %1731 = vrot.lane.b32.xlu0 %v1721, 32
  %v1732 = vpop.permute.xlu0 %1731
  %1733 = vrot.lane.b32.xlu0 %v1722, 32
  %v1734 = vpop.permute.xlu0 %1733
  %1739 = vst.msk [vmem:[#allocation3 + $0x20] sm:$0xff] %vm864, %v1728
  %1740 = vst.msk [vmem:[#allocation3 + $0x28] sm:$0xff] %vm864, %v1730
  %1741 = vst.msk [vmem:[#allocation3 + $0x30] sm:$0xff] %vm864, %v1732
  %1742 = vst.msk [vmem:[#allocation3 + $0x38] sm:$0xff] %vm864, %v1734
  %v1743 = vld [vmem:[#allocation2 + $0x40] sm:$0xff]
  %v1744 = vld [vmem:[#allocation2 + $0x48] sm:$0xff]
  %v1745 = vld [vmem:[#allocation2 + $0x50] sm:$0xff]
  %v1746 = vld [vmem:[#allocation2 + $0x58] sm:$0xff]
  %v1747 = vsel %vm864, %v1499, 0
  %v1749 = vsel %vm864, %v1501, 0
  %v1751 = vsel %vm864, %v1503, 0
  %v1753 = vsel %vm864, %v1505, 0
  %1755 = vmatprep.subr.mxu0 0.0
  %1756 = vmatpush1.msra.mxu0 %v847
  %1757 = vmatprep.subr.mxu0 0.0
  %1758 = vmatpush1.msra.mxu0 %v848
  %1759 = vmatprep.subr.mxu0 0.0
  %1760 = vmatpush1.msra.mxu0 %v849
  %1761 = vmatprep.subr.mxu0 0.0
  %1762 = vmatpush1.msra.mxu0 %v850
  %1763 = vmatprep.subr.mxu0 0.0
  %1764 = vmatpush1.msra.mxu0 0.0
  %1765 = vmatprep.subr.mxu0 0.0
  %1766 = vmatpush1.msra.mxu0 0.0
  %1767 = vmatprep.subr.mxu0 0.0
  %1768 = vmatpush1.msra.mxu0 0.0
  %1769 = vmatprep.subr.mxu0 0.0
  %1770 = vmatpush1.msra.mxu0 0.0
  %1771 = vmatprep.subr.mxu0 0.0
  %1772 = vmatpush1.msra.mxu0 0.0
  %1773 = vmatprep.subr.mxu0 0.0
  %1774 = vmatpush1.msra.mxu0 0.0
  %1775 = vmatprep.subr.mxu0 0.0
  %1776 = vmatpush1.msra.mxu0 0.0
  %1777 = vmatprep.subr.mxu0 0.0
  %1778 = vmatpush1.msra.mxu0 0.0
  %1779 = vmatprep.subr.mxu0 0.0
  %1780 = vmatpush1.msra.mxu0 0.0
  %1781 = vmatprep.subr.mxu0 0.0
  %1782 = vmatpush1.msra.mxu0 0.0
  %1783 = vmatprep.subr.mxu0 0.0
  %1784 = vmatpush1.msra.mxu0 0.0
  %1785 = vmatprep.subr.mxu0 0.0
  %1786 = vmatpush1.msra.mxu0 0.0
  %1787 = vmatprep.subr.mxu0 0.0
  %1788 = vmatpush1.msra.mxu0 0.0
  %1789 = vmatprep.subr.mxu0 0.0
  %1790 = vmatpush1.msra.mxu0 0.0
  %1791 = vmatprep.subr.mxu0 0.0
  %1792 = vmatpush1.msra.mxu0 0.0
  %1793 = vmatprep.subr.mxu0 0.0
  %1794 = vmatpush1.msra.mxu0 0.0
  %1795 = vmatprep.subr.mxu0 0.0
  %1796 = vmatpush1.msra.mxu0 0.0
  %1797 = vmatprep.subr.mxu0 0.0
  %1798 = vmatpush1.msra.mxu0 0.0
  %1799 = vmatprep.subr.mxu0 0.0
  %1800 = vmatpush1.msra.mxu0 0.0
  %1801 = vmatprep.subr.mxu0 0.0
  %1802 = vmatpush1.msra.mxu0 0.0
  %1803 = vmatprep.subr.mxu0 0.0
  %1804 = vmatpush1.msra.mxu0 0.0
  %1805 = vmatprep.subr.mxu0 0.0
  %1806 = vmatpush1.msra.mxu0 0.0
  %1807 = vmatprep.subr.mxu0 0.0
  %1808 = vmatpush1.msra.mxu0 0.0
  %1809 = vmatprep.subr.mxu0 0.0
  %1810 = vmatpush1.msra.mxu0 0.0
  %1811 = vmatprep.subr.mxu0 0.0
  %1812 = vmatpush1.msra.mxu0 0.0
  %1813 = vmatprep.subr.mxu0 0.0
  %1814 = vmatpush1.msra.mxu0 0.0
  %1815 = vmatprep.subr.mxu0 0.0
  %1816 = vmatpush1.msra.mxu0 0.0
  %1817 = vmatprep.subr.mxu0 0.0
  %1818 = vmatpush1.msra.mxu0 0.0
  %1819 = vmatprep.mubr.f32.mxu0 0.0
  %1820 = vmatmul.mubr.f32.gmra.mrb[0].mxu0 %v1747
  %v1821 = vpop.f32.mrb[0].mxu0
  %v1822 = vadd.f32 0.0, %v1821
  %v1823 = vpop.f32.mrb[0].mxu0
  %1824 = vmatprep.mubr.f32.mxu0 0.0
  %1825 = vmatmul.mubr.f32.gmra.mrb[0].mxu0 %v1749
  %v1826 = vpop.f32.mrb[0].mxu0
  %v1827 = vadd.f32 0.0, %v1826
  %v1828 = vpop.f32.mrb[0].mxu0
  %1829 = vmatprep.mubr.f32.mxu0 0.0
  %1830 = vmatmul.mubr.f32.gmra.mrb[0].mxu0 %v1751
  %v1831 = vpop.f32.mrb[0].mxu0
  %v1832 = vadd.f32 0.0, %v1831
  %v1833 = vpop.f32.mrb[0].mxu0
  %1834 = vmatprep.mubr.f32.mxu0 0.0
  %1835 = vmatmul.mubr.f32.gmra.mrb[0].mxu0 %v1753
  %v1836 = vpop.f32.mrb[0].mxu0
  %v1837 = vadd.f32 0.0, %v1836
  %v1838 = vpop.f32.mrb[0].mxu0
  %1839 = vdwg.mxu0
  %v1840 = vadd.f32 %v1743, %v1822
  %v1841 = vadd.f32 %v1744, %v1827
  %v1842 = vadd.f32 %v1745, %v1832
  %v1843 = vadd.f32 %v1746, %v1837
  %v1844 = vxor.u32 %v1840, 2147483648
  %v1845 = vxor.u32 %v1841, 2147483648
  %v1846 = vxor.u32 %v1842, 2147483648
  %v1847 = vxor.u32 %v1843, 2147483648
  %v1848 = vmul.f32 %v1844, 1.442695
  %v1849 = vpow.pop %v1848
  %v1850 = vmul.f32 %v1845, 1.442695
  %v1851 = vpow.pop %v1850
  %v1852 = vmul.f32 %v1846, 1.442695
  %v1853 = vpow.pop %v1852
  %v1854 = vmul.f32 %v1847, 1.442695
  %v1855 = vpow.pop %v1854
  %v1856 = vadd.f32 %v1849, 1.0
  %v1857 = vadd.f32 %v1851, 1.0
  %v1858 = vadd.f32 %v1853, 1.0
  %v1859 = vadd.f32 %v1855, 1.0
  %v1860 = vrcp.pop %v1856
  %v1861 = vmul.f32 1.0, %v1860
  %v1862 = vrcp.pop %v1857
  %v1863 = vmul.f32 1.0, %v1862
  %v1864 = vrcp.pop %v1858
  %v1865 = vmul.f32 1.0, %v1864
  %v1866 = vrcp.pop %v1859
  %v1867 = vmul.f32 1.0, %v1866
  %v1868 = vtanh.pop %v1840
  %v1869 = vtanh.pop %v1841
  %v1870 = vtanh.pop %v1842
  %v1871 = vtanh.pop %v1843
  %v1872 = vmul.f32 %v1861, %v1466
  %v1873 = vmul.f32 %v1863, %v1467
  %v1874 = vmul.f32 %v1865, %v1468
  %v1875 = vmul.f32 %v1867, %v1469
  %1880 = vrot.lane.b32.xlu0 %v1868, 64
  %v1881 = vpop.permute.xlu0 %1880
  %1882 = vrot.lane.b32.xlu0 %v1869, 64
  %v1883 = vpop.permute.xlu0 %1882
  %1884 = vrot.lane.b32.xlu0 %v1870, 64
  %v1885 = vpop.permute.xlu0 %1884
  %1886 = vrot.lane.b32.xlu0 %v1871, 64
  %v1887 = vpop.permute.xlu0 %1886
  %v1892 = vmul.f32 %v1861, %v1881
  %v1893 = vmul.f32 %v1863, %v1883
  %v1894 = vmul.f32 %v1865, %v1885
  %v1895 = vmul.f32 %v1867, %v1887
  %1900 = vrot.lane.b32.xlu0 %v1892, 32
  %v1901 = vpop.permute.xlu0 %1900
  %1902 = vrot.lane.b32.xlu0 %v1893, 32
  %v1903 = vpop.permute.xlu0 %1902
  %1904 = vrot.lane.b32.xlu0 %v1894, 32
  %v1905 = vpop.permute.xlu0 %1904
  %1906 = vrot.lane.b32.xlu0 %v1895, 32
  %v1907 = vpop.permute.xlu0 %1906
  %v1912 = vadd.f32 %v1872, %v1901
  %v1913 = vadd.f32 %v1873, %v1903
  %v1914 = vadd.f32 %v1874, %v1905
  %v1915 = vadd.f32 %v1875, %v1907
  %v1916 = vtanh.pop %v1912
  %v1917 = vtanh.pop %v1913
  %v1918 = vtanh.pop %v1914
  %v1919 = vtanh.pop %v1915
  %1924 = vrot.lane.b32.xlu0 %v1916, 64
  %v1925 = vpop.permute.xlu0 %1924
  %1926 = vrot.lane.b32.xlu0 %v1917, 64
  %v1927 = vpop.permute.xlu0 %1926
  %1928 = vrot.lane.b32.xlu0 %v1918, 64
  %v1929 = vpop.permute.xlu0 %1928
  %1930 = vrot.lane.b32.xlu0 %v1919, 64
  %v1931 = vpop.permute.xlu0 %1930
  %v1936 = vmul.f32 %v1861, %v1925
  %v1937 = vmul.f32 %v1863, %v1927
  %v1938 = vmul.f32 %v1865, %v1929
  %v1939 = vmul.f32 %v1867, %v1931
  %1944 = vrot.lane.b32.xlu0 %v1936, 32
  %v1945 = vpop.permute.xlu0 %1944
  %1946 = vrot.lane.b32.xlu0 %v1937, 32
  %v1947 = vpop.permute.xlu0 %1946
  %1948 = vrot.lane.b32.xlu0 %v1938, 32
  %v1949 = vpop.permute.xlu0 %1948
  %1950 = vrot.lane.b32.xlu0 %v1939, 32
  %v1951 = vpop.permute.xlu0 %1950
  %1956 = vrot.lane.b32.xlu0 %v1719, 64
  %v1957 = vpop.permute.xlu0 %1956
  %1958 = vrot.lane.b32.xlu0 %v1720, 64
  %v1959 = vpop.permute.xlu0 %1958
  %1960 = vrot.lane.b32.xlu0 %v1721, 64
  %v1961 = vpop.permute.xlu0 %1960
  %1962 = vrot.lane.b32.xlu0 %v1722, 64
  %v1963 = vpop.permute.xlu0 %1962
  %v1968 = vsel %vm864, %v1945, %v1957
  %v1969 = vsel %vm864, %v1947, %v1959
  %v1970 = vsel %vm864, %v1949, %v1961
  %v1971 = vsel %vm864, %v1951, %v1963
  %v1973 = vsel %vm1073, %v1968, 0
  %v1976 = vsel %vm1073, %v1969, 0
  %v1979 = vsel %vm1073, %v1970, 0
  %v1982 = vsel %vm1073, %v1971, 0
  %1984 = vmatprep.subr.mxu0 0.0
  %1985 = vmatpush1.msra.mxu0 %v851
  %1986 = vmatprep.subr.mxu0 0.0
  %1987 = vmatpush1.msra.mxu0 %v852
  %1988 = vmatprep.subr.mxu0 0.0
  %1989 = vmatpush1.msra.mxu0 %v853
  %1990 = vmatprep.subr.mxu0 0.0
  %1991 = vmatpush1.msra.mxu0 %v854
  %1992 = vmatprep.subr.mxu0 0.0
  %1993 = vmatpush1.msra.mxu0 %v855
  %1994 = vmatprep.subr.mxu0 0.0
  %1995 = vmatpush1.msra.mxu0 %v856
  %1996 = vmatprep.subr.mxu0 0.0
  %1997 = vmatpush1.msra.mxu0 %v857
  %1998 = vmatprep.subr.mxu0 0.0
  %1999 = vmatpush1.msra.mxu0 %v858
  %2000 = vmatprep.subr.mxu0 0.0
  %2001 = vmatpush1.msra.mxu0 0.0
  %2002 = vmatprep.subr.mxu0 0.0
  %2003 = vmatpush1.msra.mxu0 0.0
  %2004 = vmatprep.subr.mxu0 0.0
  %2005 = vmatpush1.msra.mxu0 0.0
  %2006 = vmatprep.subr.mxu0 0.0
  %2007 = vmatpush1.msra.mxu0 0.0
  %2008 = vmatprep.subr.mxu0 0.0
  %2009 = vmatpush1.msra.mxu0 0.0
  %2010 = vmatprep.subr.mxu0 0.0
  %2011 = vmatpush1.msra.mxu0 0.0
  %2012 = vmatprep.subr.mxu0 0.0
  %2013 = vmatpush1.msra.mxu0 0.0
  %2014 = vmatprep.subr.mxu0 0.0
  %2015 = vmatpush1.msra.mxu0 0.0
  %2016 = vmatprep.subr.mxu0 0.0
  %2017 = vmatpush1.msra.mxu0 0.0
  %2018 = vmatprep.subr.mxu0 0.0
  %2019 = vmatpush1.msra.mxu0 0.0
  %2020 = vmatprep.subr.mxu0 0.0
  %2021 = vmatpush1.msra.mxu0 0.0
  %2022 = vmatprep.subr.mxu0 0.0
  %2023 = vmatpush1.msra.mxu0 0.0
  %2024 = vmatprep.subr.mxu0 0.0
  %2025 = vmatpush1.msra.mxu0 0.0
  %2026 = vmatprep.subr.mxu0 0.0
  %2027 = vmatpush1.msra.mxu0 0.0
  %2028 = vmatprep.subr.mxu0 0.0
  %2029 = vmatpush1.msra.mxu0 0.0
  %2030 = vmatprep.subr.mxu0 0.0
  %2031 = vmatpush1.msra.mxu0 0.0
  %2032 = vmatprep.subr.mxu0 0.0
  %2033 = vmatpush1.msra.mxu0 0.0
  %2034 = vmatprep.subr.mxu0 0.0
  %2035 = vmatpush1.msra.mxu0 0.0
  %2036 = vmatprep.subr.mxu0 0.0
  %2037 = vmatpush1.msra.mxu0 0.0
  %2038 = vmatprep.subr.mxu0 0.0
  %2039 = vmatpush1.msra.mxu0 0.0
  %2040 = vmatprep.subr.mxu0 0.0
  %2041 = vmatpush1.msra.mxu0 0.0
  %2042 = vmatprep.subr.mxu0 0.0
  %2043 = vmatpush1.msra.mxu0 0.0
  %2044 = vmatprep.subr.mxu0 0.0
  %2045 = vmatpush1.msra.mxu0 0.0
  %2046 = vmatprep.subr.mxu0 0.0
  %2047 = vmatpush1.msra.mxu0 0.0
  %2048 = vmatprep.mubr.f32.mxu0 0.0
  %2049 = vmatmul.mubr.f32.gmra.mrb[0].mxu0 %v1973
  %v2050 = vpop.f32.mrb[0].mxu0
  %v2051 = vadd.f32 0.0, %v2050
  %v2052 = vpop.f32.mrb[0].mxu0
  %2053 = vmatprep.mubr.f32.mxu0 0.0
  %2054 = vmatmul.mubr.f32.gmra.mrb[0].mxu0 %v1976
  %v2055 = vpop.f32.mrb[0].mxu0
  %v2056 = vadd.f32 0.0, %v2055
  %v2057 = vpop.f32.mrb[0].mxu0
  %2058 = vmatprep.mubr.f32.mxu0 0.0
  %2059 = vmatmul.mubr.f32.gmra.mrb[0].mxu0 %v1979
  %v2060 = vpop.f32.mrb[0].mxu0
  %v2061 = vadd.f32 0.0, %v2060
  %v2062 = vpop.f32.mrb[0].mxu0
  %2063 = vmatprep.mubr.f32.mxu0 0.0
  %2064 = vmatmul.mubr.f32.gmra.mrb[0].mxu0 %v1982
  %v2065 = vpop.f32.mrb[0].mxu0
  %v2066 = vadd.f32 0.0, %v2065
  %v2067 = vpop.f32.mrb[0].mxu0
  %2068 = vdwg.mxu0
  %v2069 = vadd.f32 %v1175, %v2051
  %v2070 = vadd.f32 %v1175, %v2056
  %v2071 = vadd.f32 %v1175, %v2061
  %v2072 = vadd.f32 %v1175, %v2066
  %v2073 = vxor.u32 %v2069, 2147483648
  %v2074 = vxor.u32 %v2070, 2147483648
  %v2075 = vxor.u32 %v2071, 2147483648
  %v2076 = vxor.u32 %v2072, 2147483648
  %v2077 = vmul.f32 %v2073, 1.442695
  %v2078 = vpow.pop %v2077
  %v2079 = vmul.f32 %v2074, 1.442695
  %v2080 = vpow.pop %v2079
  %v2081 = vmul.f32 %v2075, 1.442695
  %v2082 = vpow.pop %v2081
  %v2083 = vmul.f32 %v2076, 1.442695
  %v2084 = vpow.pop %v2083
  %v2085 = vadd.f32 %v2078, 1.0
  %v2086 = vadd.f32 %v2080, 1.0
  %v2087 = vadd.f32 %v2082, 1.0
  %v2088 = vadd.f32 %v2084, 1.0
  %v2089 = vrcp.pop %v2085
  %v2090 = vmul.f32 1.0, %v2089
  %v2091 = vrcp.pop %v2086
  %v2092 = vmul.f32 1.0, %v2091
  %v2093 = vrcp.pop %v2087
  %v2094 = vmul.f32 1.0, %v2093
  %v2095 = vrcp.pop %v2088
  %v2096 = vmul.f32 1.0, %v2095
  %v2097 = vtanh.pop %v2069
  %v2098 = vtanh.pop %v2070
  %v2099 = vtanh.pop %v2071
  %v2100 = vtanh.pop %v2072
  %v2101 = vmul.f32 %v2090, %v1695
  %v2102 = vmul.f32 %v2092, %v1696
  %v2103 = vmul.f32 %v2094, %v1697
  %v2104 = vmul.f32 %v2096, %v1698
  %2109 = vrot.lane.b32.xlu0 %v2097, 64
  %v2110 = vpop.permute.xlu0 %2109
  %2111 = vrot.lane.b32.xlu0 %v2098, 64
  %v2112 = vpop.permute.xlu0 %2111
  %2113 = vrot.lane.b32.xlu0 %v2099, 64
  %v2114 = vpop.permute.xlu0 %2113
  %2115 = vrot.lane.b32.xlu0 %v2100, 64
  %v2116 = vpop.permute.xlu0 %2115
  %v2121 = vmul.f32 %v2090, %v2110
  %v2122 = vmul.f32 %v2092, %v2112
  %v2123 = vmul.f32 %v2094, %v2114
  %v2124 = vmul.f32 %v2096, %v2116
  %2129 = vrot.lane.b32.xlu0 %v2121, 32
  %v2130 = vpop.permute.xlu0 %2129
  %2131 = vrot.lane.b32.xlu0 %v2122, 32
  %v2132 = vpop.permute.xlu0 %2131
  %2133 = vrot.lane.b32.xlu0 %v2123, 32
  %v2134 = vpop.permute.xlu0 %2133
  %2135 = vrot.lane.b32.xlu0 %v2124, 32
  %v2136 = vpop.permute.xlu0 %2135
  %v2141 = vadd.f32 %v2101, %v2130
  %v2142 = vadd.f32 %v2102, %v2132
  %v2143 = vadd.f32 %v2103, %v2134
  %v2144 = vadd.f32 %v2104, %v2136
  %v2145 = vtanh.pop %v2141
  %v2146 = vtanh.pop %v2142
  %v2147 = vtanh.pop %v2143
  %v2148 = vtanh.pop %v2144
  %2153 = vrot.lane.b32.xlu0 %v2145, 64
  %v2154 = vpop.permute.xlu0 %2153
  %2155 = vrot.lane.b32.xlu0 %v2146, 64
  %v2156 = vpop.permute.xlu0 %2155
  %2157 = vrot.lane.b32.xlu0 %v2147, 64
  %v2158 = vpop.permute.xlu0 %2157
  %2159 = vrot.lane.b32.xlu0 %v2148, 64
  %v2160 = vpop.permute.xlu0 %2159
  %v2165 = vmul.f32 %v2090, %v2154
  %v2166 = vmul.f32 %v2092, %v2156
  %v2167 = vmul.f32 %v2094, %v2158
  %v2168 = vmul.f32 %v2096, %v2160
  %2173 = vrot.lane.b32.xlu0 %v2165, 32
  %v2174 = vpop.permute.xlu0 %2173
  %2175 = vrot.lane.b32.xlu0 %v2166, 32
  %v2176 = vpop.permute.xlu0 %2175
  %2177 = vrot.lane.b32.xlu0 %v2167, 32
  %v2178 = vpop.permute.xlu0 %2177
  %2179 = vrot.lane.b32.xlu0 %v2168, 32
  %v2180 = vpop.permute.xlu0 %2179
  %2185 = vst.msk [vmem:[#allocation3 + $0x40] sm:$0xff] %vm864, %v2174
  %2186 = vst.msk [vmem:[#allocation3 + $0x48] sm:$0xff] %vm864, %v2176
  %2187 = vst.msk [vmem:[#allocation3 + $0x50] sm:$0xff] %vm864, %v2178
  %2188 = vst.msk [vmem:[#allocation3 + $0x58] sm:$0xff] %vm864, %v2180
  %v2189 = vld [vmem:[#allocation2 + $0x60] sm:$0xff]
  %v2190 = vld [vmem:[#allocation2 + $0x68] sm:$0xff]
  %v2191 = vld [vmem:[#allocation2 + $0x70] sm:$0xff]
  %v2192 = vld [vmem:[#allocation2 + $0x78] sm:$0xff]
  %v2193 = vsel %vm864, %v1945, 0
  %v2195 = vsel %vm864, %v1947, 0
  %v2197 = vsel %vm864, %v1949, 0
  %v2199 = vsel %vm864, %v1951, 0
  %2201 = vmatprep.subr.mxu0 0.0
  %2202 = vmatpush1.msra.mxu0 %v847
  %2203 = vmatprep.subr.mxu0 0.0
  %2204 = vmatpush1.msra.mxu0 %v848
  %2205 = vmatprep.subr.mxu0 0.0
  %2206 = vmatpush1.msra.mxu0 %v849
  %2207 = vmatprep.subr.mxu0 0.0
  %2208 = vmatpush1.msra.mxu0 %v850
  %2209 = vmatprep.subr.mxu0 0.0
  %2210 = vmatpush1.msra.mxu0 0.0
  %2211 = vmatprep.subr.mxu0 0.0
  %2212 = vmatpush1.msra.mxu0 0.0
  %2213 = vmatprep.subr.mxu0 0.0
  %2214 = vmatpush1.msra.mxu0 0.0
  %2215 = vmatprep.subr.mxu0 0.0
  %2216 = vmatpush1.msra.mxu0 0.0
  %2217 = vmatprep.subr.mxu0 0.0
  %2218 = vmatpush1.msra.mxu0 0.0
  %2219 = vmatprep.subr.mxu0 0.0
  %2220 = vmatpush1.msra.mxu0 0.0
  %2221 = vmatprep.subr.mxu0 0.0
  %2222 = vmatpush1.msra.mxu0 0.0
  %2223 = vmatprep.subr.mxu0 0.0
  %2224 = vmatpush1.msra.mxu0 0.0
  %2225 = vmatprep.subr.mxu0 0.0
  %2226 = vmatpush1.msra.mxu0 0.0
  %2227 = vmatprep.subr.mxu0 0.0
  %2228 = vmatpush1.msra.mxu0 0.0
  %2229 = vmatprep.subr.mxu0 0.0
  %2230 = vmatpush1.msra.mxu0 0.0
  %2231 = vmatprep.subr.mxu0 0.0
  %2232 = vmatpush1.msra.mxu0 0.0
  %2233 = vmatprep.subr.mxu0 0.0
  %2234 = vmatpush1.msra.mxu0 0.0
  %2235 = vmatprep.subr.mxu0 0.0
  %2236 = vmatpush1.msra.mxu0 0.0
  %2237 = vmatprep.subr.mxu0 0.0
  %2238 = vmatpush1.msra.mxu0 0.0
  %2239 = vmatprep.subr.mxu0 0.0
  %2240 = vmatpush1.msra.mxu0 0.0
  %2241 = vmatprep.subr.mxu0 0.0
  %2242 = vmatpush1.msra.mxu0 0.0
  %2243 = vmatprep.subr.mxu0 0.0
  %2244 = vmatpush1.msra.mxu0 0.0
  %2245 = vmatprep.subr.mxu0 0.0
  %2246 = vmatpush1.msra.mxu0 0.0
  %2247 = vmatprep.subr.mxu0 0.0
  %2248 = vmatpush1.msra.mxu0 0.0
  %2249 = vmatprep.subr.mxu0 0.0
  %2250 = vmatpush1.msra.mxu0 0.0
  %2251 = vmatprep.subr.mxu0 0.0
  %2252 = vmatpush1.msra.mxu0 0.0
  %2253 = vmatprep.subr.mxu0 0.0
  %2254 = vmatpush1.msra.mxu0 0.0
  %2255 = vmatprep.subr.mxu0 0.0
  %2256 = vmatpush1.msra.mxu0 0.0
  %2257 = vmatprep.subr.mxu0 0.0
  %2258 = vmatpush1.msra.mxu0 0.0
  %2259 = vmatprep.subr.mxu0 0.0
  %2260 = vmatpush1.msra.mxu0 0.0
  %2261 = vmatprep.subr.mxu0 0.0
  %2262 = vmatpush1.msra.mxu0 0.0
  %2263 = vmatprep.subr.mxu0 0.0
  %2264 = vmatpush1.msra.mxu0 0.0
  %2265 = vmatprep.mubr.f32.mxu0 0.0
  %2266 = vmatmul.mubr.f32.gmra.mrb[0].mxu0 %v2193
  %v2267 = vpop.f32.mrb[0].mxu0
  %v2268 = vadd.f32 0.0, %v2267
  %v2269 = vpop.f32.mrb[0].mxu0
  %2270 = vmatprep.mubr.f32.mxu0 0.0
  %2271 = vmatmul.mubr.f32.gmra.mrb[0].mxu0 %v2195
  %v2272 = vpop.f32.mrb[0].mxu0
  %v2273 = vadd.f32 0.0, %v2272
  %v2274 = vpop.f32.mrb[0].mxu0
  %2275 = vmatprep.mubr.f32.mxu0 0.0
  %2276 = vmatmul.mubr.f32.gmra.mrb[0].mxu0 %v2197
  %v2277 = vpop.f32.mrb[0].mxu0
  %v2278 = vadd.f32 0.0, %v2277
  %v2279 = vpop.f32.mrb[0].mxu0
  %2280 = vmatprep.mubr.f32.mxu0 0.0
  %2281 = vmatmul.mubr.f32.gmra.mrb[0].mxu0 %v2199
  %v2282 = vpop.f32.mrb[0].mxu0
  %v2283 = vadd.f32 0.0, %v2282
  %v2284 = vpop.f32.mrb[0].mxu0
  %2285 = vdwg.mxu0
  %v2286 = vadd.f32 %v2189, %v2268
  %v2287 = vadd.f32 %v2190, %v2273
  %v2288 = vadd.f32 %v2191, %v2278
  %v2289 = vadd.f32 %v2192, %v2283
  %v2290 = vxor.u32 %v2286, 2147483648
  %v2291 = vxor.u32 %v2287, 2147483648
  %v2292 = vxor.u32 %v2288, 2147483648
  %v2293 = vxor.u32 %v2289, 2147483648
  %v2294 = vmul.f32 %v2290, 1.442695
  %v2295 = vpow.pop %v2294
  %v2296 = vmul.f32 %v2291, 1.442695
  %v2297 = vpow.pop %v2296
  %v2298 = vmul.f32 %v2292, 1.442695
  %v2299 = vpow.pop %v2298
  %v2300 = vmul.f32 %v2293, 1.442695
  %v2301 = vpow.pop %v2300
  %v2302 = vadd.f32 %v2295, 1.0
  %v2303 = vadd.f32 %v2297, 1.0
  %v2304 = vadd.f32 %v2299, 1.0
  %v2305 = vadd.f32 %v2301, 1.0
  %v2306 = vrcp.pop %v2302
  %v2307 = vmul.f32 1.0, %v2306
  %v2308 = vrcp.pop %v2303
  %v2309 = vmul.f32 1.0, %v2308
  %v2310 = vrcp.pop %v2304
  %v2311 = vmul.f32 1.0, %v2310
  %v2312 = vrcp.pop %v2305
  %v2313 = vmul.f32 1.0, %v2312
  %v2314 = vtanh.pop %v2286
  %v2315 = vtanh.pop %v2287
  %v2316 = vtanh.pop %v2288
  %v2317 = vtanh.pop %v2289
  %v2318 = vmul.f32 %v2307, %v1912
  %v2319 = vmul.f32 %v2309, %v1913
  %v2320 = vmul.f32 %v2311, %v1914
  %v2321 = vmul.f32 %v2313, %v1915
  %2326 = vrot.lane.b32.xlu0 %v2314, 64
  %v2327 = vpop.permute.xlu0 %2326
  %2328 = vrot.lane.b32.xlu0 %v2315, 64
  %v2329 = vpop.permute.xlu0 %2328
  %2330 = vrot.lane.b32.xlu0 %v2316, 64
  %v2331 = vpop.permute.xlu0 %2330
  %2332 = vrot.lane.b32.xlu0 %v2317, 64
  %v2333 = vpop.permute.xlu0 %2332
  %v2338 = vmul.f32 %v2307, %v2327
  %v2339 = vmul.f32 %v2309, %v2329
  %v2340 = vmul.f32 %v2311, %v2331
  %v2341 = vmul.f32 %v2313, %v2333
  %2346 = vrot.lane.b32.xlu0 %v2338, 32
  %v2347 = vpop.permute.xlu0 %2346
  %2348 = vrot.lane.b32.xlu0 %v2339, 32
  %v2349 = vpop.permute.xlu0 %2348
  %2350 = vrot.lane.b32.xlu0 %v2340, 32
  %v2351 = vpop.permute.xlu0 %2350
  %2352 = vrot.lane.b32.xlu0 %v2341, 32
  %v2353 = vpop.permute.xlu0 %2352
  %v2358 = vadd.f32 %v2318, %v2347
  %v2359 = vadd.f32 %v2319, %v2349
  %v2360 = vadd.f32 %v2320, %v2351
  %v2361 = vadd.f32 %v2321, %v2353
  %v2362 = vtanh.pop %v2358
  %v2363 = vtanh.pop %v2359
  %v2364 = vtanh.pop %v2360
  %v2365 = vtanh.pop %v2361
  %2370 = vrot.lane.b32.xlu0 %v2362, 64
  %v2371 = vpop.permute.xlu0 %2370
  %2372 = vrot.lane.b32.xlu0 %v2363, 64
  %v2373 = vpop.permute.xlu0 %2372
  %2374 = vrot.lane.b32.xlu0 %v2364, 64
  %v2375 = vpop.permute.xlu0 %2374
  %2376 = vrot.lane.b32.xlu0 %v2365, 64
  %v2377 = vpop.permute.xlu0 %2376
  %v2382 = vmul.f32 %v2307, %v2371
  %v2383 = vmul.f32 %v2309, %v2373
  %v2384 = vmul.f32 %v2311, %v2375
  %v2385 = vmul.f32 %v2313, %v2377
  %2390 = vrot.lane.b32.xlu0 %v2382, 32
  %v2391 = vpop.permute.xlu0 %2390
  %2392 = vrot.lane.b32.xlu0 %v2383, 32
  %v2393 = vpop.permute.xlu0 %2392
  %2394 = vrot.lane.b32.xlu0 %v2384, 32
  %v2395 = vpop.permute.xlu0 %2394
  %2396 = vrot.lane.b32.xlu0 %v2385, 32
  %v2397 = vpop.permute.xlu0 %2396
  %2402 = vrot.lane.b32.xlu0 %v2165, 64
  %v2403 = vpop.permute.xlu0 %2402
  %2404 = vrot.lane.b32.xlu0 %v2166, 64
  %v2405 = vpop.permute.xlu0 %2404
  %2406 = vrot.lane.b32.xlu0 %v2167, 64
  %v2407 = vpop.permute.xlu0 %2406
  %2408 = vrot.lane.b32.xlu0 %v2168, 64
  %v2409 = vpop.permute.xlu0 %2408
  %v2414 = vsel %vm864, %v2391, %v2403
  %v2415 = vsel %vm864, %v2393, %v2405
  %v2416 = vsel %vm864, %v2395, %v2407
  %v2417 = vsel %vm864, %v2397, %v2409
  %v2419 = vsel %vm1073, %v2414, 0
  %v2422 = vsel %vm1073, %v2415, 0
  %v2425 = vsel %vm1073, %v2416, 0
  %v2428 = vsel %vm1073, %v2417, 0
  %2430 = vmatprep.subr.mxu0 0.0
  %2431 = vmatpush1.msra.mxu0 %v851
  %2432 = vmatprep.subr.mxu0 0.0
  %2433 = vmatpush1.msra.mxu0 %v852
  %2434 = vmatprep.subr.mxu0 0.0
  %2435 = vmatpush1.msra.mxu0 %v853
  %2436 = vmatprep.subr.mxu0 0.0
  %2437 = vmatpush1.msra.mxu0 %v854
  %2438 = vmatprep.subr.mxu0 0.0
  %2439 = vmatpush1.msra.mxu0 %v855
  %2440 = vmatprep.subr.mxu0 0.0
  %2441 = vmatpush1.msra.mxu0 %v856
  %2442 = vmatprep.subr.mxu0 0.0
  %2443 = vmatpush1.msra.mxu0 %v857
  %2444 = vmatprep.subr.mxu0 0.0
  %2445 = vmatpush1.msra.mxu0 %v858
  %2446 = vmatprep.subr.mxu0 0.0
  %2447 = vmatpush1.msra.mxu0 0.0
  %2448 = vmatprep.subr.mxu0 0.0
  %2449 = vmatpush1.msra.mxu0 0.0
  %2450 = vmatprep.subr.mxu0 0.0
  %2451 = vmatpush1.msra.mxu0 0.0
  %2452 = vmatprep.subr.mxu0 0.0
  %2453 = vmatpush1.msra.mxu0 0.0
  %2454 = vmatprep.subr.mxu0 0.0
  %2455 = vmatpush1.msra.mxu0 0.0
  %2456 = vmatprep.subr.mxu0 0.0
  %2457 = vmatpush1.msra.mxu0 0.0
  %2458 = vmatprep.subr.mxu0 0.0
  %2459 = vmatpush1.msra.mxu0 0.0
  %2460 = vmatprep.subr.mxu0 0.0
  %2461 = vmatpush1.msra.mxu0 0.0
  %2462 = vmatprep.subr.mxu0 0.0
  %2463 = vmatpush1.msra.mxu0 0.0
  %2464 = vmatprep.subr.mxu0 0.0
  %2465 = vmatpush1.msra.mxu0 0.0
  %2466 = vmatprep.subr.mxu0 0.0
  %2467 = vmatpush1.msra.mxu0 0.0
  %2468 = vmatprep.subr.mxu0 0.0
  %2469 = vmatpush1.msra.mxu0 0.0
  %2470 = vmatprep.subr.mxu0 0.0
  %2471 = vmatpush1.msra.mxu0 0.0
  %2472 = vmatprep.subr.mxu0 0.0
  %2473 = vmatpush1.msra.mxu0 0.0
  %2474 = vmatprep.subr.mxu0 0.0
  %2475 = vmatpush1.msra.mxu0 0.0
  %2476 = vmatprep.subr.mxu0 0.0
  %2477 = vmatpush1.msra.mxu0 0.0
  %2478 = vmatprep.subr.mxu0 0.0
  %2479 = vmatpush1.msra.mxu0 0.0
  %2480 = vmatprep.subr.mxu0 0.0
  %2481 = vmatpush1.msra.mxu0 0.0
  %2482 = vmatprep.subr.mxu0 0.0
  %2483 = vmatpush1.msra.mxu0 0.0
  %2484 = vmatprep.subr.mxu0 0.0
  %2485 = vmatpush1.msra.mxu0 0.0
  %2486 = vmatprep.subr.mxu0 0.0
  %2487 = vmatpush1.msra.mxu0 0.0
  %2488 = vmatprep.subr.mxu0 0.0
  %2489 = vmatpush1.msra.mxu0 0.0
  %2490 = vmatprep.subr.mxu0 0.0
  %2491 = vmatpush1.msra.mxu0 0.0
  %2492 = vmatprep.subr.mxu0 0.0
  %2493 = vmatpush1.msra.mxu0 0.0
  %2494 = vmatprep.mubr.f32.mxu0 0.0
  %2495 = vmatmul.mubr.f32.gmra.mrb[0].mxu0 %v2419
  %v2496 = vpop.f32.mrb[0].mxu0
  %v2497 = vadd.f32 0.0, %v2496
  %v2498 = vpop.f32.mrb[0].mxu0
  %2499 = vmatprep.mubr.f32.mxu0 0.0
  %2500 = vmatmul.mubr.f32.gmra.mrb[0].mxu0 %v2422
  %v2501 = vpop.f32.mrb[0].mxu0
  %v2502 = vadd.f32 0.0, %v2501
  %v2503 = vpop.f32.mrb[0].mxu0
  %2504 = vmatprep.mubr.f32.mxu0 0.0
  %2505 = vmatmul.mubr.f32.gmra.mrb[0].mxu0 %v2425
  %v2506 = vpop.f32.mrb[0].mxu0
  %v2507 = vadd.f32 0.0, %v2506
  %v2508 = vpop.f32.mrb[0].mxu0
  %2509 = vmatprep.mubr.f32.mxu0 0.0
  %2510 = vmatmul.mubr.f32.gmra.mrb[0].mxu0 %v2428
  %v2511 = vpop.f32.mrb[0].mxu0
  %v2512 = vadd.f32 0.0, %v2511
  %v2513 = vpop.f32.mrb[0].mxu0
  %2514 = vdwg.mxu0
  %v2515 = vadd.f32 %v1175, %v2497
  %v2516 = vadd.f32 %v1175, %v2502
  %v2517 = vadd.f32 %v1175, %v2507
  %v2518 = vadd.f32 %v1175, %v2512
  %v2519 = vxor.u32 %v2515, 2147483648
  %v2520 = vxor.u32 %v2516, 2147483648
  %v2521 = vxor.u32 %v2517, 2147483648
  %v2522 = vxor.u32 %v2518, 2147483648
  %v2523 = vmul.f32 %v2519, 1.442695
  %v2524 = vpow.pop %v2523
  %v2525 = vmul.f32 %v2520, 1.442695
  %v2526 = vpow.pop %v2525
  %v2527 = vmul.f32 %v2521, 1.442695
  %v2528 = vpow.pop %v2527
  %v2529 = vmul.f32 %v2522, 1.442695
  %v2530 = vpow.pop %v2529
  %v2531 = vadd.f32 %v2524, 1.0
  %v2532 = vadd.f32 %v2526, 1.0
  %v2533 = vadd.f32 %v2528, 1.0
  %v2534 = vadd.f32 %v2530, 1.0
  %v2535 = vrcp.pop %v2531
  %v2536 = vmul.f32 1.0, %v2535
  %v2537 = vrcp.pop %v2532
  %v2538 = vmul.f32 1.0, %v2537
  %v2539 = vrcp.pop %v2533
  %v2540 = vmul.f32 1.0, %v2539
  %v2541 = vrcp.pop %v2534
  %v2542 = vmul.f32 1.0, %v2541
  %v2543 = vtanh.pop %v2515
  %v2544 = vtanh.pop %v2516
  %v2545 = vtanh.pop %v2517
  %v2546 = vtanh.pop %v2518
  %v2547 = vmul.f32 %v2536, %v2141
  %v2548 = vmul.f32 %v2538, %v2142
  %v2549 = vmul.f32 %v2540, %v2143
  %v2550 = vmul.f32 %v2542, %v2144
  %2555 = vrot.lane.b32.xlu0 %v2543, 64
  %v2556 = vpop.permute.xlu0 %2555
  %2557 = vrot.lane.b32.xlu0 %v2544, 64
  %v2558 = vpop.permute.xlu0 %2557
  %2559 = vrot.lane.b32.xlu0 %v2545, 64
  %v2560 = vpop.permute.xlu0 %2559
  %2561 = vrot.lane.b32.xlu0 %v2546, 64
  %v2562 = vpop.permute.xlu0 %2561
  %v2567 = vmul.f32 %v2536, %v2556
  %v2568 = vmul.f32 %v2538, %v2558
  %v2569 = vmul.f32 %v2540, %v2560
  %v2570 = vmul.f32 %v2542, %v2562
  %2575 = vrot.lane.b32.xlu0 %v2567, 32
  %v2576 = vpop.permute.xlu0 %2575
  %2577 = vrot.lane.b32.xlu0 %v2568, 32
  %v2578 = vpop.permute.xlu0 %2577
  %2579 = vrot.lane.b32.xlu0 %v2569, 32
  %v2580 = vpop.permute.xlu0 %2579
  %2581 = vrot.lane.b32.xlu0 %v2570, 32
  %v2582 = vpop.permute.xlu0 %2581
  %v2587 = vadd.f32 %v2547, %v2576
  %v2588 = vadd.f32 %v2548, %v2578
  %v2589 = vadd.f32 %v2549, %v2580
  %v2590 = vadd.f32 %v2550, %v2582
  %v2591 = vtanh.pop %v2587
  %v2592 = vtanh.pop %v2588
  %v2593 = vtanh.pop %v2589
  %v2594 = vtanh.pop %v2590
  %2599 = vrot.lane.b32.xlu0 %v2591, 64
  %v2600 = vpop.permute.xlu0 %2599
  %2601 = vrot.lane.b32.xlu0 %v2592, 64
  %v2602 = vpop.permute.xlu0 %2601
  %2603 = vrot.lane.b32.xlu0 %v2593, 64
  %v2604 = vpop.permute.xlu0 %2603
  %2605 = vrot.lane.b32.xlu0 %v2594, 64
  %v2606 = vpop.permute.xlu0 %2605
  %v2611 = vmul.f32 %v2536, %v2600
  %v2612 = vmul.f32 %v2538, %v2602
  %v2613 = vmul.f32 %v2540, %v2604
  %v2614 = vmul.f32 %v2542, %v2606
  %2619 = vrot.lane.b32.xlu0 %v2611, 32
  %v2620 = vpop.permute.xlu0 %2619
  %2621 = vrot.lane.b32.xlu0 %v2612, 32
  %v2622 = vpop.permute.xlu0 %2621
  %2623 = vrot.lane.b32.xlu0 %v2613, 32
  %v2624 = vpop.permute.xlu0 %2623
  %2625 = vrot.lane.b32.xlu0 %v2614, 32
  %v2626 = vpop.permute.xlu0 %2625
  %2631 = vst.msk [vmem:[#allocation3 + $0x60] sm:$0xff] %vm864, %v2620
  %2632 = vst.msk [vmem:[#allocation3 + $0x68] sm:$0xff] %vm864, %v2622
  %2633 = vst.msk [vmem:[#allocation3 + $0x70] sm:$0xff] %vm864, %v2624
  %2634 = vst.msk [vmem:[#allocation3 + $0x78] sm:$0xff] %vm864, %v2626
  %v2635 = vld [vmem:[#allocation2 + $0x80] sm:$0xff]
  %v2636 = vld [vmem:[#allocation2 + $0x88] sm:$0xff]
  %v2637 = vld [vmem:[#allocation2 + $0x90] sm:$0xff]
  %v2638 = vld [vmem:[#allocation2 + $0x98] sm:$0xff]
  %v2639 = vsel %vm864, %v2391, 0
  %v2641 = vsel %vm864, %v2393, 0
  %v2643 = vsel %vm864, %v2395, 0
  %v2645 = vsel %vm864, %v2397, 0
  %2647 = vmatprep.subr.mxu0 0.0
  %2648 = vmatpush1.msra.mxu0 %v847
  %2649 = vmatprep.subr.mxu0 0.0
  %2650 = vmatpush1.msra.mxu0 %v848
  %2651 = vmatprep.subr.mxu0 0.0
  %2652 = vmatpush1.msra.mxu0 %v849
  %2653 = vmatprep.subr.mxu0 0.0
  %2654 = vmatpush1.msra.mxu0 %v850
  %2655 = vmatprep.subr.mxu0 0.0
  %2656 = vmatpush1.msra.mxu0 0.0
  %2657 = vmatprep.subr.mxu0 0.0
  %2658 = vmatpush1.msra.mxu0 0.0
  %2659 = vmatprep.subr.mxu0 0.0
  %2660 = vmatpush1.msra.mxu0 0.0
  %2661 = vmatprep.subr.mxu0 0.0
  %2662 = vmatpush1.msra.mxu0 0.0
  %2663 = vmatprep.subr.mxu0 0.0
  %2664 = vmatpush1.msra.mxu0 0.0
  %2665 = vmatprep.subr.mxu0 0.0
  %2666 = vmatpush1.msra.mxu0 0.0
  %2667 = vmatprep.subr.mxu0 0.0
  %2668 = vmatpush1.msra.mxu0 0.0
  %2669 = vmatprep.subr.mxu0 0.0
  %2670 = vmatpush1.msra.mxu0 0.0
  %2671 = vmatprep.subr.mxu0 0.0
  %2672 = vmatpush1.msra.mxu0 0.0
  %2673 = vmatprep.subr.mxu0 0.0
  %2674 = vmatpush1.msra.mxu0 0.0
  %2675 = vmatprep.subr.mxu0 0.0
  %2676 = vmatpush1.msra.mxu0 0.0
  %2677 = vmatprep.subr.mxu0 0.0
  %2678 = vmatpush1.msra.mxu0 0.0
  %2679 = vmatprep.subr.mxu0 0.0
  %2680 = vmatpush1.msra.mxu0 0.0
  %2681 = vmatprep.subr.mxu0 0.0
  %2682 = vmatpush1.msra.mxu0 0.0
  %2683 = vmatprep.subr.mxu0 0.0
  %2684 = vmatpush1.msra.mxu0 0.0
  %2685 = vmatprep.subr.mxu0 0.0
  %2686 = vmatpush1.msra.mxu0 0.0
  %2687 = vmatprep.subr.mxu0 0.0
  %2688 = vmatpush1.msra.mxu0 0.0
  %2689 = vmatprep.subr.mxu0 0.0
  %2690 = vmatpush1.msra.mxu0 0.0
  %2691 = vmatprep.subr.mxu0 0.0
  %2692 = vmatpush1.msra.mxu0 0.0
  %2693 = vmatprep.subr.mxu0 0.0
  %2694 = vmatpush1.msra.mxu0 0.0
  %2695 = vmatprep.subr.mxu0 0.0
  %2696 = vmatpush1.msra.mxu0 0.0
  %2697 = vmatprep.subr.mxu0 0.0
  %2698 = vmatpush1.msra.mxu0 0.0
  %2699 = vmatprep.subr.mxu0 0.0
  %2700 = vmatpush1.msra.mxu0 0.0
  %2701 = vmatprep.subr.mxu0 0.0
  %2702 = vmatpush1.msra.mxu0 0.0
  %2703 = vmatprep.subr.mxu0 0.0
  %2704 = vmatpush1.msra.mxu0 0.0
  %2705 = vmatprep.subr.mxu0 0.0
  %2706 = vmatpush1.msra.mxu0 0.0
  %2707 = vmatprep.subr.mxu0 0.0
  %2708 = vmatpush1.msra.mxu0 0.0
  %2709 = vmatprep.subr.mxu0 0.0
  %2710 = vmatpush1.msra.mxu0 0.0
  %2711 = vmatprep.mubr.f32.mxu0 0.0
  %2712 = vmatmul.mubr.f32.gmra.mrb[0].mxu0 %v2639
  %v2713 = vpop.f32.mrb[0].mxu0
  %v2714 = vadd.f32 0.0, %v2713
  %v2715 = vpop.f32.mrb[0].mxu0
  %2716 = vmatprep.mubr.f32.mxu0 0.0
  %2717 = vmatmul.mubr.f32.gmra.mrb[0].mxu0 %v2641
  %v2718 = vpop.f32.mrb[0].mxu0
  %v2719 = vadd.f32 0.0, %v2718
  %v2720 = vpop.f32.mrb[0].mxu0
  %2721 = vmatprep.mubr.f32.mxu0 0.0
  %2722 = vmatmul.mubr.f32.gmra.mrb[0].mxu0 %v2643
  %v2723 = vpop.f32.mrb[0].mxu0
  %v2724 = vadd.f32 0.0, %v2723
  %v2725 = vpop.f32.mrb[0].mxu0
  %2726 = vmatprep.mubr.f32.mxu0 0.0
  %2727 = vmatmul.mubr.f32.gmra.mrb[0].mxu0 %v2645
  %v2728 = vpop.f32.mrb[0].mxu0
  %v2729 = vadd.f32 0.0, %v2728
  %v2730 = vpop.f32.mrb[0].mxu0
  %2731 = vdwg.mxu0
  %v2732 = vadd.f32 %v2635, %v2714
  %v2733 = vadd.f32 %v2636, %v2719
  %v2734 = vadd.f32 %v2637, %v2724
  %v2735 = vadd.f32 %v2638, %v2729
  %v2736 = vxor.u32 %v2732, 2147483648
  %v2737 = vxor.u32 %v2733, 2147483648
  %v2738 = vxor.u32 %v2734, 2147483648
  %v2739 = vxor.u32 %v2735, 2147483648
  %v2740 = vmul.f32 %v2736, 1.442695
  %v2741 = vpow.pop %v2740
  %v2742 = vmul.f32 %v2737, 1.442695
  %v2743 = vpow.pop %v2742
  %v2744 = vmul.f32 %v2738, 1.442695
  %v2745 = vpow.pop %v2744
  %v2746 = vmul.f32 %v2739, 1.442695
  %v2747 = vpow.pop %v2746
  %v2748 = vadd.f32 %v2741, 1.0
  %v2749 = vadd.f32 %v2743, 1.0
  %v2750 = vadd.f32 %v2745, 1.0
  %v2751 = vadd.f32 %v2747, 1.0
  %v2752 = vrcp.pop %v2748
  %v2753 = vmul.f32 1.0, %v2752
  %v2754 = vrcp.pop %v2749
  %v2755 = vmul.f32 1.0, %v2754
  %v2756 = vrcp.pop %v2750
  %v2757 = vmul.f32 1.0, %v2756
  %v2758 = vrcp.pop %v2751
  %v2759 = vmul.f32 1.0, %v2758
  %v2760 = vtanh.pop %v2732
  %v2761 = vtanh.pop %v2733
  %v2762 = vtanh.pop %v2734
  %v2763 = vtanh.pop %v2735
  %v2764 = vmul.f32 %v2753, %v2358
  %v2765 = vmul.f32 %v2755, %v2359
  %v2766 = vmul.f32 %v2757, %v2360
  %v2767 = vmul.f32 %v2759, %v2361
  %2772 = vrot.lane.b32.xlu0 %v2760, 64
  %v2773 = vpop.permute.xlu0 %2772
  %2774 = vrot.lane.b32.xlu0 %v2761, 64
  %v2775 = vpop.permute.xlu0 %2774
  %2776 = vrot.lane.b32.xlu0 %v2762, 64
  %v2777 = vpop.permute.xlu0 %2776
  %2778 = vrot.lane.b32.xlu0 %v2763, 64
  %v2779 = vpop.permute.xlu0 %2778
  %v2784 = vmul.f32 %v2753, %v2773
  %v2785 = vmul.f32 %v2755, %v2775
  %v2786 = vmul.f32 %v2757, %v2777
  %v2787 = vmul.f32 %v2759, %v2779
  %2792 = vrot.lane.b32.xlu0 %v2784, 32
  %v2793 = vpop.permute.xlu0 %2792
  %2794 = vrot.lane.b32.xlu0 %v2785, 32
  %v2795 = vpop.permute.xlu0 %2794
  %2796 = vrot.lane.b32.xlu0 %v2786, 32
  %v2797 = vpop.permute.xlu0 %2796
  %2798 = vrot.lane.b32.xlu0 %v2787, 32
  %v2799 = vpop.permute.xlu0 %2798
  %v2804 = vadd.f32 %v2764, %v2793
  %v2805 = vadd.f32 %v2765, %v2795
  %v2806 = vadd.f32 %v2766, %v2797
  %v2807 = vadd.f32 %v2767, %v2799
  %v2808 = vtanh.pop %v2804
  %v2809 = vtanh.pop %v2805
  %v2810 = vtanh.pop %v2806
  %v2811 = vtanh.pop %v2807
  %2816 = vrot.lane.b32.xlu0 %v2808, 64
  %v2817 = vpop.permute.xlu0 %2816
  %2818 = vrot.lane.b32.xlu0 %v2809, 64
  %v2819 = vpop.permute.xlu0 %2818
  %2820 = vrot.lane.b32.xlu0 %v2810, 64
  %v2821 = vpop.permute.xlu0 %2820
  %2822 = vrot.lane.b32.xlu0 %v2811, 64
  %v2823 = vpop.permute.xlu0 %2822
  %v2828 = vmul.f32 %v2753, %v2817
  %v2829 = vmul.f32 %v2755, %v2819
  %v2830 = vmul.f32 %v2757, %v2821
  %v2831 = vmul.f32 %v2759, %v2823
  %2836 = vrot.lane.b32.xlu0 %v2828, 32
  %v2837 = vpop.permute.xlu0 %2836
  %2838 = vrot.lane.b32.xlu0 %v2829, 32
  %v2839 = vpop.permute.xlu0 %2838
  %2840 = vrot.lane.b32.xlu0 %v2830, 32
  %v2841 = vpop.permute.xlu0 %2840
  %2842 = vrot.lane.b32.xlu0 %v2831, 32
  %v2843 = vpop.permute.xlu0 %2842
  %2848 = vrot.lane.b32.xlu0 %v2611, 64
  %v2849 = vpop.permute.xlu0 %2848
  %2850 = vrot.lane.b32.xlu0 %v2612, 64
  %v2851 = vpop.permute.xlu0 %2850
  %2852 = vrot.lane.b32.xlu0 %v2613, 64
  %v2853 = vpop.permute.xlu0 %2852
  %2854 = vrot.lane.b32.xlu0 %v2614, 64
  %v2855 = vpop.permute.xlu0 %2854
  %v2860 = vsel %vm864, %v2837, %v2849
  %v2861 = vsel %vm864, %v2839, %v2851
  %v2862 = vsel %vm864, %v2841, %v2853
  %v2863 = vsel %vm864, %v2843, %v2855
  %v2865 = vsel %vm1073, %v2860, 0
  %v2868 = vsel %vm1073, %v2861, 0
  %v2871 = vsel %vm1073, %v2862, 0
  %v2874 = vsel %vm1073, %v2863, 0
  %2876 = vmatprep.subr.mxu0 0.0
  %2877 = vmatpush1.msra.mxu0 %v851
  %2878 = vmatprep.subr.mxu0 0.0
  %2879 = vmatpush1.msra.mxu0 %v852
  %2880 = vmatprep.subr.mxu0 0.0
  %2881 = vmatpush1.msra.mxu0 %v853
  %2882 = vmatprep.subr.mxu0 0.0
  %2883 = vmatpush1.msra.mxu0 %v854
  %2884 = vmatprep.subr.mxu0 0.0
  %2885 = vmatpush1.msra.mxu0 %v855
  %2886 = vmatprep.subr.mxu0 0.0
  %2887 = vmatpush1.msra.mxu0 %v856
  %2888 = vmatprep.subr.mxu0 0.0
  %2889 = vmatpush1.msra.mxu0 %v857
  %2890 = vmatprep.subr.mxu0 0.0
  %2891 = vmatpush1.msra.mxu0 %v858
  %2892 = vmatprep.subr.mxu0 0.0
  %2893 = vmatpush1.msra.mxu0 0.0
  %2894 = vmatprep.subr.mxu0 0.0
  %2895 = vmatpush1.msra.mxu0 0.0
  %2896 = vmatprep.subr.mxu0 0.0
  %2897 = vmatpush1.msra.mxu0 0.0
  %2898 = vmatprep.subr.mxu0 0.0
  %2899 = vmatpush1.msra.mxu0 0.0
  %2900 = vmatprep.subr.mxu0 0.0
  %2901 = vmatpush1.msra.mxu0 0.0
  %2902 = vmatprep.subr.mxu0 0.0
  %2903 = vmatpush1.msra.mxu0 0.0
  %2904 = vmatprep.subr.mxu0 0.0
  %2905 = vmatpush1.msra.mxu0 0.0
  %2906 = vmatprep.subr.mxu0 0.0
  %2907 = vmatpush1.msra.mxu0 0.0
  %2908 = vmatprep.subr.mxu0 0.0
  %2909 = vmatpush1.msra.mxu0 0.0
  %2910 = vmatprep.subr.mxu0 0.0
  %2911 = vmatpush1.msra.mxu0 0.0
  %2912 = vmatprep.subr.mxu0 0.0
  %2913 = vmatpush1.msra.mxu0 0.0
  %2914 = vmatprep.subr.mxu0 0.0
  %2915 = vmatpush1.msra.mxu0 0.0
  %2916 = vmatprep.subr.mxu0 0.0
  %2917 = vmatpush1.msra.mxu0 0.0
  %2918 = vmatprep.subr.mxu0 0.0
  %2919 = vmatpush1.msra.mxu0 0.0
  %2920 = vmatprep.subr.mxu0 0.0
  %2921 = vmatpush1.msra.mxu0 0.0
  %2922 = vmatprep.subr.mxu0 0.0
  %2923 = vmatpush1.msra.mxu0 0.0
  %2924 = vmatprep.subr.mxu0 0.0
  %2925 = vmatpush1.msra.mxu0 0.0
  %2926 = vmatprep.subr.mxu0 0.0
  %2927 = vmatpush1.msra.mxu0 0.0
  %2928 = vmatprep.subr.mxu0 0.0
  %2929 = vmatpush1.msra.mxu0 0.0
  %2930 = vmatprep.subr.mxu0 0.0
  %2931 = vmatpush1.msra.mxu0 0.0
  %2932 = vmatprep.subr.mxu0 0.0
  %2933 = vmatpush1.msra.mxu0 0.0
  %2934 = vmatprep.subr.mxu0 0.0
  %2935 = vmatpush1.msra.mxu0 0.0
  %2936 = vmatprep.subr.mxu0 0.0
  %2937 = vmatpush1.msra.mxu0 0.0
  %2938 = vmatprep.subr.mxu0 0.0
  %2939 = vmatpush1.msra.mxu0 0.0
  %2940 = vmatprep.mubr.f32.mxu0 0.0
  %2941 = vmatmul.mubr.f32.gmra.mrb[0].mxu0 %v2865
  %v2942 = vpop.f32.mrb[0].mxu0
  %v2943 = vadd.f32 0.0, %v2942
  %v2944 = vpop.f32.mrb[0].mxu0
  %2945 = vmatprep.mubr.f32.mxu0 0.0
  %2946 = vmatmul.mubr.f32.gmra.mrb[0].mxu0 %v2868
  %v2947 = vpop.f32.mrb[0].mxu0
  %v2948 = vadd.f32 0.0, %v2947
  %v2949 = vpop.f32.mrb[0].mxu0
  %2950 = vmatprep.mubr.f32.mxu0 0.0
  %2951 = vmatmul.mubr.f32.gmra.mrb[0].mxu0 %v2871
  %v2952 = vpop.f32.mrb[0].mxu0
  %v2953 = vadd.f32 0.0, %v2952
  %v2954 = vpop.f32.mrb[0].mxu0
  %2955 = vmatprep.mubr.f32.mxu0 0.0
  %2956 = vmatmul.mubr.f32.gmra.mrb[0].mxu0 %v2874
  %v2957 = vpop.f32.mrb[0].mxu0
  %v2958 = vadd.f32 0.0, %v2957
  %v2959 = vpop.f32.mrb[0].mxu0
  %2960 = vdwg.mxu0
  %v2961 = vadd.f32 %v1175, %v2943
  %v2962 = vadd.f32 %v1175, %v2948
  %v2963 = vadd.f32 %v1175, %v2953
  %v2964 = vadd.f32 %v1175, %v2958
  %v2965 = vxor.u32 %v2961, 2147483648
  %v2966 = vxor.u32 %v2962, 2147483648
  %v2967 = vxor.u32 %v2963, 2147483648
  %v2968 = vxor.u32 %v2964, 2147483648
  %v2969 = vmul.f32 %v2965, 1.442695
  %v2970 = vpow.pop %v2969
  %v2971 = vmul.f32 %v2966, 1.442695
  %v2972 = vpow.pop %v2971
  %v2973 = vmul.f32 %v2967, 1.442695
  %v2974 = vpow.pop %v2973
  %v2975 = vmul.f32 %v2968, 1.442695
  %v2976 = vpow.pop %v2975
  %v2977 = vadd.f32 %v2970, 1.0
  %v2978 = vadd.f32 %v2972, 1.0
  %v2979 = vadd.f32 %v2974, 1.0
  %v2980 = vadd.f32 %v2976, 1.0
  %v2981 = vrcp.pop %v2977
  %v2982 = vmul.f32 1.0, %v2981
  %v2983 = vrcp.pop %v2978
  %v2984 = vmul.f32 1.0, %v2983
  %v2985 = vrcp.pop %v2979
  %v2986 = vmul.f32 1.0, %v2985
  %v2987 = vrcp.pop %v2980
  %v2988 = vmul.f32 1.0, %v2987
  %v2989 = vtanh.pop %v2961
  %v2990 = vtanh.pop %v2962
  %v2991 = vtanh.pop %v2963
  %v2992 = vtanh.pop %v2964
  %v2993 = vmul.f32 %v2982, %v2587
  %v2994 = vmul.f32 %v2984, %v2588
  %v2995 = vmul.f32 %v2986, %v2589
  %v2996 = vmul.f32 %v2988, %v2590
  %3001 = vrot.lane.b32.xlu0 %v2989, 64
  %v3002 = vpop.permute.xlu0 %3001
  %3003 = vrot.lane.b32.xlu0 %v2990, 64
  %v3004 = vpop.permute.xlu0 %3003
  %3005 = vrot.lane.b32.xlu0 %v2991, 64
  %v3006 = vpop.permute.xlu0 %3005
  %3007 = vrot.lane.b32.xlu0 %v2992, 64
  %v3008 = vpop.permute.xlu0 %3007
  %v3013 = vmul.f32 %v2982, %v3002
  %v3014 = vmul.f32 %v2984, %v3004
  %v3015 = vmul.f32 %v2986, %v3006
  %v3016 = vmul.f32 %v2988, %v3008
  %3021 = vrot.lane.b32.xlu0 %v3013, 32
  %v3022 = vpop.permute.xlu0 %3021
  %3023 = vrot.lane.b32.xlu0 %v3014, 32
  %v3024 = vpop.permute.xlu0 %3023
  %3025 = vrot.lane.b32.xlu0 %v3015, 32
  %v3026 = vpop.permute.xlu0 %3025
  %3027 = vrot.lane.b32.xlu0 %v3016, 32
  %v3028 = vpop.permute.xlu0 %3027
  %v3033 = vadd.f32 %v2993, %v3022
  %v3034 = vadd.f32 %v2994, %v3024
  %v3035 = vadd.f32 %v2995, %v3026
  %v3036 = vadd.f32 %v2996, %v3028
  %v3037 = vtanh.pop %v3033
  %v3038 = vtanh.pop %v3034
  %v3039 = vtanh.pop %v3035
  %v3040 = vtanh.pop %v3036
  %3045 = vrot.lane.b32.xlu0 %v3037, 64
  %v3046 = vpop.permute.xlu0 %3045
  %3047 = vrot.lane.b32.xlu0 %v3038, 64
  %v3048 = vpop.permute.xlu0 %3047
  %3049 = vrot.lane.b32.xlu0 %v3039, 64
  %v3050 = vpop.permute.xlu0 %3049
  %3051 = vrot.lane.b32.xlu0 %v3040, 64
  %v3052 = vpop.permute.xlu0 %3051
  %v3057 = vmul.f32 %v2982, %v3046
  %v3058 = vmul.f32 %v2984, %v3048
  %v3059 = vmul.f32 %v2986, %v3050
  %v3060 = vmul.f32 %v2988, %v3052
  %3065 = vrot.lane.b32.xlu0 %v3057, 32
  %v3066 = vpop.permute.xlu0 %3065
  %3067 = vrot.lane.b32.xlu0 %v3058, 32
  %v3068 = vpop.permute.xlu0 %3067
  %3069 = vrot.lane.b32.xlu0 %v3059, 32
  %v3070 = vpop.permute.xlu0 %3069
  %3071 = vrot.lane.b32.xlu0 %v3060, 32
  %v3072 = vpop.permute.xlu0 %3071
  %3077 = vst.msk [vmem:[#allocation3 + $0x80] sm:$0xff] %vm864, %v3066
  %3078 = vst.msk [vmem:[#allocation3 + $0x88] sm:$0xff] %vm864, %v3068
  %3079 = vst.msk [vmem:[#allocation3 + $0x90] sm:$0xff] %vm864, %v3070
  %3080 = vst.msk [vmem:[#allocation3 + $0x98] sm:$0xff] %vm864, %v3072
  %v3081 = vld [vmem:[#allocation2 + $0xa0] sm:$0xff]
  %v3082 = vld [vmem:[#allocation2 + $0xa8] sm:$0xff]
  %v3083 = vld [vmem:[#allocation2 + $0xb0] sm:$0xff]
  %v3084 = vld [vmem:[#allocation2 + $0xb8] sm:$0xff]
  %v3085 = vsel %vm864, %v2837, 0
  %v3087 = vsel %vm864, %v2839, 0
  %v3089 = vsel %vm864, %v2841, 0
  %v3091 = vsel %vm864, %v2843, 0
  %3093 = vmatprep.subr.mxu0 0.0
  %3094 = vmatpush1.msra.mxu0 %v847
  %3095 = vmatprep.subr.mxu0 0.0
  %3096 = vmatpush1.msra.mxu0 %v848
  %3097 = vmatprep.subr.mxu0 0.0
  %3098 = vmatpush1.msra.mxu0 %v849
  %3099 = vmatprep.subr.mxu0 0.0
  %3100 = vmatpush1.msra.mxu0 %v850
  %3101 = vmatprep.subr.mxu0 0.0
  %3102 = vmatpush1.msra.mxu0 0.0
  %3103 = vmatprep.subr.mxu0 0.0
  %3104 = vmatpush1.msra.mxu0 0.0
  %3105 = vmatprep.subr.mxu0 0.0
  %3106 = vmatpush1.msra.mxu0 0.0
  %3107 = vmatprep.subr.mxu0 0.0
  %3108 = vmatpush1.msra.mxu0 0.0
  %3109 = vmatprep.subr.mxu0 0.0
  %3110 = vmatpush1.msra.mxu0 0.0
  %3111 = vmatprep.subr.mxu0 0.0
  %3112 = vmatpush1.msra.mxu0 0.0
  %3113 = vmatprep.subr.mxu0 0.0
  %3114 = vmatpush1.msra.mxu0 0.0
  %3115 = vmatprep.subr.mxu0 0.0
  %3116 = vmatpush1.msra.mxu0 0.0
  %3117 = vmatprep.subr.mxu0 0.0
  %3118 = vmatpush1.msra.mxu0 0.0
  %3119 = vmatprep.subr.mxu0 0.0
  %3120 = vmatpush1.msra.mxu0 0.0
  %3121 = vmatprep.subr.mxu0 0.0
  %3122 = vmatpush1.msra.mxu0 0.0
  %3123 = vmatprep.subr.mxu0 0.0
  %3124 = vmatpush1.msra.mxu0 0.0
  %3125 = vmatprep.subr.mxu0 0.0
  %3126 = vmatpush1.msra.mxu0 0.0
  %3127 = vmatprep.subr.mxu0 0.0
  %3128 = vmatpush1.msra.mxu0 0.0
  %3129 = vmatprep.subr.mxu0 0.0
  %3130 = vmatpush1.msra.mxu0 0.0
  %3131 = vmatprep.subr.mxu0 0.0
  %3132 = vmatpush1.msra.mxu0 0.0
  %3133 = vmatprep.subr.mxu0 0.0
  %3134 = vmatpush1.msra.mxu0 0.0
  %3135 = vmatprep.subr.mxu0 0.0
  %3136 = vmatpush1.msra.mxu0 0.0
  %3137 = vmatprep.subr.mxu0 0.0
  %3138 = vmatpush1.msra.mxu0 0.0
  %3139 = vmatprep.subr.mxu0 0.0
  %3140 = vmatpush1.msra.mxu0 0.0
  %3141 = vmatprep.subr.mxu0 0.0
  %3142 = vmatpush1.msra.mxu0 0.0
  %3143 = vmatprep.subr.mxu0 0.0
  %3144 = vmatpush1.msra.mxu0 0.0
  %3145 = vmatprep.subr.mxu0 0.0
  %3146 = vmatpush1.msra.mxu0 0.0
  %3147 = vmatprep.subr.mxu0 0.0
  %3148 = vmatpush1.msra.mxu0 0.0
  %3149 = vmatprep.subr.mxu0 0.0
  %3150 = vmatpush1.msra.mxu0 0.0
  %3151 = vmatprep.subr.mxu0 0.0
  %3152 = vmatpush1.msra.mxu0 0.0
  %3153 = vmatprep.subr.mxu0 0.0
  %3154 = vmatpush1.msra.mxu0 0.0
  %3155 = vmatprep.subr.mxu0 0.0
  %3156 = vmatpush1.msra.mxu0 0.0
  %3157 = vmatprep.mubr.f32.mxu0 0.0
  %3158 = vmatmul.mubr.f32.gmra.mrb[0].mxu0 %v3085
  %v3159 = vpop.f32.mrb[0].mxu0
  %v3160 = vadd.f32 0.0, %v3159
  %v3161 = vpop.f32.mrb[0].mxu0
  %3162 = vmatprep.mubr.f32.mxu0 0.0
  %3163 = vmatmul.mubr.f32.gmra.mrb[0].mxu0 %v3087
  %v3164 = vpop.f32.mrb[0].mxu0
  %v3165 = vadd.f32 0.0, %v3164
  %v3166 = vpop.f32.mrb[0].mxu0
  %3167 = vmatprep.mubr.f32.mxu0 0.0
  %3168 = vmatmul.mubr.f32.gmra.mrb[0].mxu0 %v3089
  %v3169 = vpop.f32.mrb[0].mxu0
  %v3170 = vadd.f32 0.0, %v3169
  %v3171 = vpop.f32.mrb[0].mxu0
  %3172 = vmatprep.mubr.f32.mxu0 0.0
  %3173 = vmatmul.mubr.f32.gmra.mrb[0].mxu0 %v3091
  %v3174 = vpop.f32.mrb[0].mxu0
  %v3175 = vadd.f32 0.0, %v3174
  %v3176 = vpop.f32.mrb[0].mxu0
  %3177 = vdwg.mxu0
  %v3178 = vadd.f32 %v3081, %v3160
  %v3179 = vadd.f32 %v3082, %v3165
  %v3180 = vadd.f32 %v3083, %v3170
  %v3181 = vadd.f32 %v3084, %v3175
  %v3182 = vxor.u32 %v3178, 2147483648
  %v3183 = vxor.u32 %v3179, 2147483648
  %v3184 = vxor.u32 %v3180, 2147483648
  %v3185 = vxor.u32 %v3181, 2147483648
  %v3186 = vmul.f32 %v3182, 1.442695
  %v3187 = vpow.pop %v3186
  %v3188 = vmul.f32 %v3183, 1.442695
  %v3189 = vpow.pop %v3188
  %v3190 = vmul.f32 %v3184, 1.442695
  %v3191 = vpow.pop %v3190
  %v3192 = vmul.f32 %v3185, 1.442695
  %v3193 = vpow.pop %v3192
  %v3194 = vadd.f32 %v3187, 1.0
  %v3195 = vadd.f32 %v3189, 1.0
  %v3196 = vadd.f32 %v3191, 1.0
  %v3197 = vadd.f32 %v3193, 1.0
  %v3198 = vrcp.pop %v3194
  %v3199 = vmul.f32 1.0, %v3198
  %v3200 = vrcp.pop %v3195
  %v3201 = vmul.f32 1.0, %v3200
  %v3202 = vrcp.pop %v3196
  %v3203 = vmul.f32 1.0, %v3202
  %v3204 = vrcp.pop %v3197
  %v3205 = vmul.f32 1.0, %v3204
  %v3206 = vtanh.pop %v3178
  %v3207 = vtanh.pop %v3179
  %v3208 = vtanh.pop %v3180
  %v3209 = vtanh.pop %v3181
  %v3210 = vmul.f32 %v3199, %v2804
  %v3211 = vmul.f32 %v3201, %v2805
  %v3212 = vmul.f32 %v3203, %v2806
  %v3213 = vmul.f32 %v3205, %v2807
  %3218 = vrot.lane.b32.xlu0 %v3206, 64
  %v3219 = vpop.permute.xlu0 %3218
  %3220 = vrot.lane.b32.xlu0 %v3207, 64
  %v3221 = vpop.permute.xlu0 %3220
  %3222 = vrot.lane.b32.xlu0 %v3208, 64
  %v3223 = vpop.permute.xlu0 %3222
  %3224 = vrot.lane.b32.xlu0 %v3209, 64
  %v3225 = vpop.permute.xlu0 %3224
  %v3230 = vmul.f32 %v3199, %v3219
  %v3231 = vmul.f32 %v3201, %v3221
  %v3232 = vmul.f32 %v3203, %v3223
  %v3233 = vmul.f32 %v3205, %v3225
  %3238 = vrot.lane.b32.xlu0 %v3230, 32
  %v3239 = vpop.permute.xlu0 %3238
  %3240 = vrot.lane.b32.xlu0 %v3231, 32
  %v3241 = vpop.permute.xlu0 %3240
  %3242 = vrot.lane.b32.xlu0 %v3232, 32
  %v3243 = vpop.permute.xlu0 %3242
  %3244 = vrot.lane.b32.xlu0 %v3233, 32
  %v3245 = vpop.permute.xlu0 %3244
  %v3250 = vadd.f32 %v3210, %v3239
  %v3251 = vadd.f32 %v3211, %v3241
  %v3252 = vadd.f32 %v3212, %v3243
  %v3253 = vadd.f32 %v3213, %v3245
  %v3254 = vtanh.pop %v3250
  %v3255 = vtanh.pop %v3251
  %v3256 = vtanh.pop %v3252
  %v3257 = vtanh.pop %v3253
  %3262 = vrot.lane.b32.xlu0 %v3254, 64
  %v3263 = vpop.permute.xlu0 %3262
  %3264 = vrot.lane.b32.xlu0 %v3255, 64
  %v3265 = vpop.permute.xlu0 %3264
  %3266 = vrot.lane.b32.xlu0 %v3256, 64
  %v3267 = vpop.permute.xlu0 %3266
  %3268 = vrot.lane.b32.xlu0 %v3257, 64
  %v3269 = vpop.permute.xlu0 %3268
  %v3274 = vmul.f32 %v3199, %v3263
  %v3275 = vmul.f32 %v3201, %v3265
  %v3276 = vmul.f32 %v3203, %v3267
  %v3277 = vmul.f32 %v3205, %v3269
  %3282 = vrot.lane.b32.xlu0 %v3274, 32
  %v3283 = vpop.permute.xlu0 %3282
  %3284 = vrot.lane.b32.xlu0 %v3275, 32
  %v3285 = vpop.permute.xlu0 %3284
  %3286 = vrot.lane.b32.xlu0 %v3276, 32
  %v3287 = vpop.permute.xlu0 %3286
  %3288 = vrot.lane.b32.xlu0 %v3277, 32
  %v3289 = vpop.permute.xlu0 %3288
  %3294 = vrot.lane.b32.xlu0 %v3057, 64
  %v3295 = vpop.permute.xlu0 %3294
  %3296 = vrot.lane.b32.xlu0 %v3058, 64
  %v3297 = vpop.permute.xlu0 %3296
  %3298 = vrot.lane.b32.xlu0 %v3059, 64
  %v3299 = vpop.permute.xlu0 %3298
  %3300 = vrot.lane.b32.xlu0 %v3060, 64
  %v3301 = vpop.permute.xlu0 %3300
  %v3306 = vsel %vm864, %v3283, %v3295
  %v3307 = vsel %vm864, %v3285, %v3297
  %v3308 = vsel %vm864, %v3287, %v3299
  %v3309 = vsel %vm864, %v3289, %v3301
  %v3311 = vsel %vm1073, %v3306, 0
  %v3314 = vsel %vm1073, %v3307, 0
  %v3317 = vsel %vm1073, %v3308, 0
  %v3320 = vsel %vm1073, %v3309, 0
  %3322 = vmatprep.subr.mxu0 0.0
  %3323 = vmatpush1.msra.mxu0 %v851
  %3324 = vmatprep.subr.mxu0 0.0
  %3325 = vmatpush1.msra.mxu0 %v852
  %3326 = vmatprep.subr.mxu0 0.0
  %3327 = vmatpush1.msra.mxu0 %v853
  %3328 = vmatprep.subr.mxu0 0.0
  %3329 = vmatpush1.msra.mxu0 %v854
  %3330 = vmatprep.subr.mxu0 0.0
  %3331 = vmatpush1.msra.mxu0 %v855
  %3332 = vmatprep.subr.mxu0 0.0
  %3333 = vmatpush1.msra.mxu0 %v856
  %3334 = vmatprep.subr.mxu0 0.0
  %3335 = vmatpush1.msra.mxu0 %v857
  %3336 = vmatprep.subr.mxu0 0.0
  %3337 = vmatpush1.msra.mxu0 %v858
  %3338 = vmatprep.subr.mxu0 0.0
  %3339 = vmatpush1.msra.mxu0 0.0
  %3340 = vmatprep.subr.mxu0 0.0
  %3341 = vmatpush1.msra.mxu0 0.0
  %3342 = vmatprep.subr.mxu0 0.0
  %3343 = vmatpush1.msra.mxu0 0.0
  %3344 = vmatprep.subr.mxu0 0.0
  %3345 = vmatpush1.msra.mxu0 0.0
  %3346 = vmatprep.subr.mxu0 0.0
  %3347 = vmatpush1.msra.mxu0 0.0
  %3348 = vmatprep.subr.mxu0 0.0
  %3349 = vmatpush1.msra.mxu0 0.0
  %3350 = vmatprep.subr.mxu0 0.0
  %3351 = vmatpush1.msra.mxu0 0.0
  %3352 = vmatprep.subr.mxu0 0.0
  %3353 = vmatpush1.msra.mxu0 0.0
  %3354 = vmatprep.subr.mxu0 0.0
  %3355 = vmatpush1.msra.mxu0 0.0
  %3356 = vmatprep.subr.mxu0 0.0
  %3357 = vmatpush1.msra.mxu0 0.0
  %3358 = vmatprep.subr.mxu0 0.0
  %3359 = vmatpush1.msra.mxu0 0.0
  %3360 = vmatprep.subr.mxu0 0.0
  %3361 = vmatpush1.msra.mxu0 0.0
  %3362 = vmatprep.subr.mxu0 0.0
  %3363 = vmatpush1.msra.mxu0 0.0
  %3364 = vmatprep.subr.mxu0 0.0
  %3365 = vmatpush1.msra.mxu0 0.0
  %3366 = vmatprep.subr.mxu0 0.0
  %3367 = vmatpush1.msra.mxu0 0.0
  %3368 = vmatprep.subr.mxu0 0.0
  %3369 = vmatpush1.msra.mxu0 0.0
  %3370 = vmatprep.subr.mxu0 0.0
  %3371 = vmatpush1.msra.mxu0 0.0
  %3372 = vmatprep.subr.mxu0 0.0
  %3373 = vmatpush1.msra.mxu0 0.0
  %3374 = vmatprep.subr.mxu0 0.0
  %3375 = vmatpush1.msra.mxu0 0.0
  %3376 = vmatprep.subr.mxu0 0.0
  %3377 = vmatpush1.msra.mxu0 0.0
  %3378 = vmatprep.subr.mxu0 0.0
  %3379 = vmatpush1.msra.mxu0 0.0
  %3380 = vmatprep.subr.mxu0 0.0
  %3381 = vmatpush1.msra.mxu0 0.0
  %3382 = vmatprep.subr.mxu0 0.0
  %3383 = vmatpush1.msra.mxu0 0.0
  %3384 = vmatprep.subr.mxu0 0.0
  %3385 = vmatpush1.msra.mxu0 0.0
  %3386 = vmatprep.mubr.f32.mxu0 0.0
  %3387 = vmatmul.mubr.f32.gmra.mrb[0].mxu0 %v3311
  %v3388 = vpop.f32.mrb[0].mxu0
  %v3389 = vadd.f32 0.0, %v3388
  %v3390 = vpop.f32.mrb[0].mxu0
  %3391 = vmatprep.mubr.f32.mxu0 0.0
  %3392 = vmatmul.mubr.f32.gmra.mrb[0].mxu0 %v3314
  %v3393 = vpop.f32.mrb[0].mxu0
  %v3394 = vadd.f32 0.0, %v3393
  %v3395 = vpop.f32.mrb[0].mxu0
  %3396 = vmatprep.mubr.f32.mxu0 0.0
  %3397 = vmatmul.mubr.f32.gmra.mrb[0].mxu0 %v3317
  %v3398 = vpop.f32.mrb[0].mxu0
  %v3399 = vadd.f32 0.0, %v3398
  %v3400 = vpop.f32.mrb[0].mxu0
  %3401 = vmatprep.mubr.f32.mxu0 0.0
  %3402 = vmatmul.mubr.f32.gmra.mrb[0].mxu0 %v3320
  %v3403 = vpop.f32.mrb[0].mxu0
  %v3404 = vadd.f32 0.0, %v3403
  %v3405 = vpop.f32.mrb[0].mxu0
  %3406 = vdwg.mxu0
  %v3407 = vadd.f32 %v1175, %v3389
  %v3408 = vadd.f32 %v1175, %v3394
  %v3409 = vadd.f32 %v1175, %v3399
  %v3410 = vadd.f32 %v1175, %v3404
  %v3411 = vxor.u32 %v3407, 2147483648
  %v3412 = vxor.u32 %v3408, 2147483648
  %v3413 = vxor.u32 %v3409, 2147483648
  %v3414 = vxor.u32 %v3410, 2147483648
  %v3415 = vmul.f32 %v3411, 1.442695
  %v3416 = vpow.pop %v3415
  %v3417 = vmul.f32 %v3412, 1.442695
  %v3418 = vpow.pop %v3417
  %v3419 = vmul.f32 %v3413, 1.442695
  %v3420 = vpow.pop %v3419
  %v3421 = vmul.f32 %v3414, 1.442695
  %v3422 = vpow.pop %v3421
  %v3423 = vadd.f32 %v3416, 1.0
  %v3424 = vadd.f32 %v3418, 1.0
  %v3425 = vadd.f32 %v3420, 1.0
  %v3426 = vadd.f32 %v3422, 1.0
  %v3427 = vrcp.pop %v3423
  %v3428 = vmul.f32 1.0, %v3427
  %v3429 = vrcp.pop %v3424
  %v3430 = vmul.f32 1.0, %v3429
  %v3431 = vrcp.pop %v3425
  %v3432 = vmul.f32 1.0, %v3431
  %v3433 = vrcp.pop %v3426
  %v3434 = vmul.f32 1.0, %v3433
  %v3435 = vtanh.pop %v3407
  %v3436 = vtanh.pop %v3408
  %v3437 = vtanh.pop %v3409
  %v3438 = vtanh.pop %v3410
  %v3439 = vmul.f32 %v3428, %v3033
  %v3440 = vmul.f32 %v3430, %v3034
  %v3441 = vmul.f32 %v3432, %v3035
  %v3442 = vmul.f32 %v3434, %v3036
  %3447 = vrot.lane.b32.xlu0 %v3435, 64
  %v3448 = vpop.permute.xlu0 %3447
  %3449 = vrot.lane.b32.xlu0 %v3436, 64
  %v3450 = vpop.permute.xlu0 %3449
  %3451 = vrot.lane.b32.xlu0 %v3437, 64
  %v3452 = vpop.permute.xlu0 %3451
  %3453 = vrot.lane.b32.xlu0 %v3438, 64
  %v3454 = vpop.permute.xlu0 %3453
  %v3459 = vmul.f32 %v3428, %v3448
  %v3460 = vmul.f32 %v3430, %v3450
  %v3461 = vmul.f32 %v3432, %v3452
  %v3462 = vmul.f32 %v3434, %v3454
  %3467 = vrot.lane.b32.xlu0 %v3459, 32
  %v3468 = vpop.permute.xlu0 %3467
  %3469 = vrot.lane.b32.xlu0 %v3460, 32
  %v3470 = vpop.permute.xlu0 %3469
  %3471 = vrot.lane.b32.xlu0 %v3461, 32
  %v3472 = vpop.permute.xlu0 %3471
  %3473 = vrot.lane.b32.xlu0 %v3462, 32
  %v3474 = vpop.permute.xlu0 %3473
  %v3479 = vadd.f32 %v3439, %v3468
  %v3480 = vadd.f32 %v3440, %v3470
  %v3481 = vadd.f32 %v3441, %v3472
  %v3482 = vadd.f32 %v3442, %v3474
  %v3483 = vtanh.pop %v3479
  %v3484 = vtanh.pop %v3480
  %v3485 = vtanh.pop %v3481
  %v3486 = vtanh.pop %v3482
  %3491 = vrot.lane.b32.xlu0 %v3483, 64
  %v3492 = vpop.permute.xlu0 %3491
  %3493 = vrot.lane.b32.xlu0 %v3484, 64
  %v3494 = vpop.permute.xlu0 %3493
  %3495 = vrot.lane.b32.xlu0 %v3485, 64
  %v3496 = vpop.permute.xlu0 %3495
  %3497 = vrot.lane.b32.xlu0 %v3486, 64
  %v3498 = vpop.permute.xlu0 %3497
  %v3503 = vmul.f32 %v3428, %v3492
  %v3504 = vmul.f32 %v3430, %v3494
  %v3505 = vmul.f32 %v3432, %v3496
  %v3506 = vmul.f32 %v3434, %v3498
  %3511 = vrot.lane.b32.xlu0 %v3503, 32
  %v3512 = vpop.permute.xlu0 %3511
  %3513 = vrot.lane.b32.xlu0 %v3504, 32
  %v3514 = vpop.permute.xlu0 %3513
  %3515 = vrot.lane.b32.xlu0 %v3505, 32
  %v3516 = vpop.permute.xlu0 %3515
  %3517 = vrot.lane.b32.xlu0 %v3506, 32
  %v3518 = vpop.permute.xlu0 %3517
  %3523 = vst.msk [vmem:[#allocation3 + $0xa0] sm:$0xff] %vm864, %v3512
  %3524 = vst.msk [vmem:[#allocation3 + $0xa8] sm:$0xff] %vm864, %v3514
  %3525 = vst.msk [vmem:[#allocation3 + $0xb0] sm:$0xff] %vm864, %v3516
  %3526 = vst.msk [vmem:[#allocation3 + $0xb8] sm:$0xff] %vm864, %v3518
  %v3527 = vld [vmem:[#allocation2 + $0xc0] sm:$0xff]
  %v3528 = vld [vmem:[#allocation2 + $0xc8] sm:$0xff]
  %v3529 = vld [vmem:[#allocation2 + $0xd0] sm:$0xff]
  %v3530 = vld [vmem:[#allocation2 + $0xd8] sm:$0xff]
  %v3531 = vsel %vm864, %v3283, 0
  %v3533 = vsel %vm864, %v3285, 0
  %v3535 = vsel %vm864, %v3287, 0
  %v3537 = vsel %vm864, %v3289, 0
  %3539 = vmatprep.subr.mxu0 0.0
  %3540 = vmatpush1.msra.mxu0 %v847
  %3541 = vmatprep.subr.mxu0 0.0
  %3542 = vmatpush1.msra.mxu0 %v848
  %3543 = vmatprep.subr.mxu0 0.0
  %3544 = vmatpush1.msra.mxu0 %v849
  %3545 = vmatprep.subr.mxu0 0.0
  %3546 = vmatpush1.msra.mxu0 %v850
  %3547 = vmatprep.subr.mxu0 0.0
  %3548 = vmatpush1.msra.mxu0 0.0
  %3549 = vmatprep.subr.mxu0 0.0
  %3550 = vmatpush1.msra.mxu0 0.0
  %3551 = vmatprep.subr.mxu0 0.0
  %3552 = vmatpush1.msra.mxu0 0.0
  %3553 = vmatprep.subr.mxu0 0.0
  %3554 = vmatpush1.msra.mxu0 0.0
  %3555 = vmatprep.subr.mxu0 0.0
  %3556 = vmatpush1.msra.mxu0 0.0
  %3557 = vmatprep.subr.mxu0 0.0
  %3558 = vmatpush1.msra.mxu0 0.0
  %3559 = vmatprep.subr.mxu0 0.0
  %3560 = vmatpush1.msra.mxu0 0.0
  %3561 = vmatprep.subr.mxu0 0.0
  %3562 = vmatpush1.msra.mxu0 0.0
  %3563 = vmatprep.subr.mxu0 0.0
  %3564 = vmatpush1.msra.mxu0 0.0
  %3565 = vmatprep.subr.mxu0 0.0
  %3566 = vmatpush1.msra.mxu0 0.0
  %3567 = vmatprep.subr.mxu0 0.0
  %3568 = vmatpush1.msra.mxu0 0.0
  %3569 = vmatprep.subr.mxu0 0.0
  %3570 = vmatpush1.msra.mxu0 0.0
  %3571 = vmatprep.subr.mxu0 0.0
  %3572 = vmatpush1.msra.mxu0 0.0
  %3573 = vmatprep.subr.mxu0 0.0
  %3574 = vmatpush1.msra.mxu0 0.0
  %3575 = vmatprep.subr.mxu0 0.0
  %3576 = vmatpush1.msra.mxu0 0.0
  %3577 = vmatprep.subr.mxu0 0.0
  %3578 = vmatpush1.msra.mxu0 0.0
  %3579 = vmatprep.subr.mxu0 0.0
  %3580 = vmatpush1.msra.mxu0 0.0
  %3581 = vmatprep.subr.mxu0 0.0
  %3582 = vmatpush1.msra.mxu0 0.0
  %3583 = vmatprep.subr.mxu0 0.0
  %3584 = vmatpush1.msra.mxu0 0.0
  %3585 = vmatprep.subr.mxu0 0.0
  %3586 = vmatpush1.msra.mxu0 0.0
  %3587 = vmatprep.subr.mxu0 0.0
  %3588 = vmatpush1.msra.mxu0 0.0
  %3589 = vmatprep.subr.mxu0 0.0
  %3590 = vmatpush1.msra.mxu0 0.0
  %3591 = vmatprep.subr.mxu0 0.0
  %3592 = vmatpush1.msra.mxu0 0.0
  %3593 = vmatprep.subr.mxu0 0.0
  %3594 = vmatpush1.msra.mxu0 0.0
  %3595 = vmatprep.subr.mxu0 0.0
  %3596 = vmatpush1.msra.mxu0 0.0
  %3597 = vmatprep.subr.mxu0 0.0
  %3598 = vmatpush1.msra.mxu0 0.0
  %3599 = vmatprep.subr.mxu0 0.0
  %3600 = vmatpush1.msra.mxu0 0.0
  %3601 = vmatprep.subr.mxu0 0.0
  %3602 = vmatpush1.msra.mxu0 0.0
  %3603 = vmatprep.mubr.f32.mxu0 0.0
  %3604 = vmatmul.mubr.f32.gmra.mrb[0].mxu0 %v3531
  %v3605 = vpop.f32.mrb[0].mxu0
  %v3606 = vadd.f32 0.0, %v3605
  %v3607 = vpop.f32.mrb[0].mxu0
  %3608 = vmatprep.mubr.f32.mxu0 0.0
  %3609 = vmatmul.mubr.f32.gmra.mrb[0].mxu0 %v3533
  %v3610 = vpop.f32.mrb[0].mxu0
  %v3611 = vadd.f32 0.0, %v3610
  %v3612 = vpop.f32.mrb[0].mxu0
  %3613 = vmatprep.mubr.f32.mxu0 0.0
  %3614 = vmatmul.mubr.f32.gmra.mrb[0].mxu0 %v3535
  %v3615 = vpop.f32.mrb[0].mxu0
  %v3616 = vadd.f32 0.0, %v3615
  %v3617 = vpop.f32.mrb[0].mxu0
  %3618 = vmatprep.mubr.f32.mxu0 0.0
  %3619 = vmatmul.mubr.f32.gmra.mrb[0].mxu0 %v3537
  %v3620 = vpop.f32.mrb[0].mxu0
  %v3621 = vadd.f32 0.0, %v3620
  %v3622 = vpop.f32.mrb[0].mxu0
  %3623 = vdwg.mxu0
  %v3624 = vadd.f32 %v3527, %v3606
  %v3625 = vadd.f32 %v3528, %v3611
  %v3626 = vadd.f32 %v3529, %v3616
  %v3627 = vadd.f32 %v3530, %v3621
  %v3628 = vxor.u32 %v3624, 2147483648
  %v3629 = vxor.u32 %v3625, 2147483648
  %v3630 = vxor.u32 %v3626, 2147483648
  %v3631 = vxor.u32 %v3627, 2147483648
  %v3632 = vmul.f32 %v3628, 1.442695
  %v3633 = vpow.pop %v3632
  %v3634 = vmul.f32 %v3629, 1.442695
  %v3635 = vpow.pop %v3634
  %v3636 = vmul.f32 %v3630, 1.442695
  %v3637 = vpow.pop %v3636
  %v3638 = vmul.f32 %v3631, 1.442695
  %v3639 = vpow.pop %v3638
  %v3640 = vadd.f32 %v3633, 1.0
  %v3641 = vadd.f32 %v3635, 1.0
  %v3642 = vadd.f32 %v3637, 1.0
  %v3643 = vadd.f32 %v3639, 1.0
  %v3644 = vrcp.pop %v3640
  %v3645 = vmul.f32 1.0, %v3644
  %v3646 = vrcp.pop %v3641
  %v3647 = vmul.f32 1.0, %v3646
  %v3648 = vrcp.pop %v3642
  %v3649 = vmul.f32 1.0, %v3648
  %v3650 = vrcp.pop %v3643
  %v3651 = vmul.f32 1.0, %v3650
  %v3652 = vtanh.pop %v3624
  %v3653 = vtanh.pop %v3625
  %v3654 = vtanh.pop %v3626
  %v3655 = vtanh.pop %v3627
  %v3656 = vmul.f32 %v3645, %v3250
  %v3657 = vmul.f32 %v3647, %v3251
  %v3658 = vmul.f32 %v3649, %v3252
  %v3659 = vmul.f32 %v3651, %v3253
  %3664 = vrot.lane.b32.xlu0 %v3652, 64
  %v3665 = vpop.permute.xlu0 %3664
  %3666 = vrot.lane.b32.xlu0 %v3653, 64
  %v3667 = vpop.permute.xlu0 %3666
  %3668 = vrot.lane.b32.xlu0 %v3654, 64
  %v3669 = vpop.permute.xlu0 %3668
  %3670 = vrot.lane.b32.xlu0 %v3655, 64
  %v3671 = vpop.permute.xlu0 %3670
  %v3676 = vmul.f32 %v3645, %v3665
  %v3677 = vmul.f32 %v3647, %v3667
  %v3678 = vmul.f32 %v3649, %v3669
  %v3679 = vmul.f32 %v3651, %v3671
  %3684 = vrot.lane.b32.xlu0 %v3676, 32
  %v3685 = vpop.permute.xlu0 %3684
  %3686 = vrot.lane.b32.xlu0 %v3677, 32
  %v3687 = vpop.permute.xlu0 %3686
  %3688 = vrot.lane.b32.xlu0 %v3678, 32
  %v3689 = vpop.permute.xlu0 %3688
  %3690 = vrot.lane.b32.xlu0 %v3679, 32
  %v3691 = vpop.permute.xlu0 %3690
  %v3696 = vadd.f32 %v3656, %v3685
  %v3697 = vadd.f32 %v3657, %v3687
  %v3698 = vadd.f32 %v3658, %v3689
  %v3699 = vadd.f32 %v3659, %v3691
  %v3700 = vtanh.pop %v3696
  %v3701 = vtanh.pop %v3697
  %v3702 = vtanh.pop %v3698
  %v3703 = vtanh.pop %v3699
  %3708 = vrot.lane.b32.xlu0 %v3700, 64
  %v3709 = vpop.permute.xlu0 %3708
  %3710 = vrot.lane.b32.xlu0 %v3701, 64
  %v3711 = vpop.permute.xlu0 %3710
  %3712 = vrot.lane.b32.xlu0 %v3702, 64
  %v3713 = vpop.permute.xlu0 %3712
  %3714 = vrot.lane.b32.xlu0 %v3703, 64
  %v3715 = vpop.permute.xlu0 %3714
  %v3720 = vmul.f32 %v3645, %v3709
  %v3721 = vmul.f32 %v3647, %v3711
  %v3722 = vmul.f32 %v3649, %v3713
  %v3723 = vmul.f32 %v3651, %v3715
  %3728 = vrot.lane.b32.xlu0 %v3720, 32
  %v3729 = vpop.permute.xlu0 %3728
  %3730 = vrot.lane.b32.xlu0 %v3721, 32
  %v3731 = vpop.permute.xlu0 %3730
  %3732 = vrot.lane.b32.xlu0 %v3722, 32
  %v3733 = vpop.permute.xlu0 %3732
  %3734 = vrot.lane.b32.xlu0 %v3723, 32
  %v3735 = vpop.permute.xlu0 %3734
  %3740 = vrot.lane.b32.xlu0 %v3503, 64
  %v3741 = vpop.permute.xlu0 %3740
  %3742 = vrot.lane.b32.xlu0 %v3504, 64
  %v3743 = vpop.permute.xlu0 %3742
  %3744 = vrot.lane.b32.xlu0 %v3505, 64
  %v3745 = vpop.permute.xlu0 %3744
  %3746 = vrot.lane.b32.xlu0 %v3506, 64
  %v3747 = vpop.permute.xlu0 %3746
  %v3752 = vsel %vm864, %v3729, %v3741
  %v3753 = vsel %vm864, %v3731, %v3743
  %v3754 = vsel %vm864, %v3733, %v3745
  %v3755 = vsel %vm864, %v3735, %v3747
  %v3757 = vsel %vm1073, %v3752, 0
  %v3760 = vsel %vm1073, %v3753, 0
  %v3763 = vsel %vm1073, %v3754, 0
  %v3766 = vsel %vm1073, %v3755, 0
  %3768 = vmatprep.subr.mxu0 0.0
  %3769 = vmatpush1.msra.mxu0 %v851
  %3770 = vmatprep.subr.mxu0 0.0
  %3771 = vmatpush1.msra.mxu0 %v852
  %3772 = vmatprep.subr.mxu0 0.0
  %3773 = vmatpush1.msra.mxu0 %v853
  %3774 = vmatprep.subr.mxu0 0.0
  %3775 = vmatpush1.msra.mxu0 %v854
  %3776 = vmatprep.subr.mxu0 0.0
  %3777 = vmatpush1.msra.mxu0 %v855
  %3778 = vmatprep.subr.mxu0 0.0
  %3779 = vmatpush1.msra.mxu0 %v856
  %3780 = vmatprep.subr.mxu0 0.0
  %3781 = vmatpush1.msra.mxu0 %v857
  %3782 = vmatprep.subr.mxu0 0.0
  %3783 = vmatpush1.msra.mxu0 %v858
  %3784 = vmatprep.subr.mxu0 0.0
  %3785 = vmatpush1.msra.mxu0 0.0
  %3786 = vmatprep.subr.mxu0 0.0
  %3787 = vmatpush1.msra.mxu0 0.0
  %3788 = vmatprep.subr.mxu0 0.0
  %3789 = vmatpush1.msra.mxu0 0.0
  %3790 = vmatprep.subr.mxu0 0.0
  %3791 = vmatpush1.msra.mxu0 0.0
  %3792 = vmatprep.subr.mxu0 0.0
  %3793 = vmatpush1.msra.mxu0 0.0
  %3794 = vmatprep.subr.mxu0 0.0
  %3795 = vmatpush1.msra.mxu0 0.0
  %3796 = vmatprep.subr.mxu0 0.0
  %3797 = vmatpush1.msra.mxu0 0.0
  %3798 = vmatprep.subr.mxu0 0.0
  %3799 = vmatpush1.msra.mxu0 0.0
  %3800 = vmatprep.subr.mxu0 0.0
  %3801 = vmatpush1.msra.mxu0 0.0
  %3802 = vmatprep.subr.mxu0 0.0
  %3803 = vmatpush1.msra.mxu0 0.0
  %3804 = vmatprep.subr.mxu0 0.0
  %3805 = vmatpush1.msra.mxu0 0.0
  %3806 = vmatprep.subr.mxu0 0.0
  %3807 = vmatpush1.msra.mxu0 0.0
  %3808 = vmatprep.subr.mxu0 0.0
  %3809 = vmatpush1.msra.mxu0 0.0
  %3810 = vmatprep.subr.mxu0 0.0
  %3811 = vmatpush1.msra.mxu0 0.0
  %3812 = vmatprep.subr.mxu0 0.0
  %3813 = vmatpush1.msra.mxu0 0.0
  %3814 = vmatprep.subr.mxu0 0.0
  %3815 = vmatpush1.msra.mxu0 0.0
  %3816 = vmatprep.subr.mxu0 0.0
  %3817 = vmatpush1.msra.mxu0 0.0
  %3818 = vmatprep.subr.mxu0 0.0
  %3819 = vmatpush1.msra.mxu0 0.0
  %3820 = vmatprep.subr.mxu0 0.0
  %3821 = vmatpush1.msra.mxu0 0.0
  %3822 = vmatprep.subr.mxu0 0.0
  %3823 = vmatpush1.msra.mxu0 0.0
  %3824 = vmatprep.subr.mxu0 0.0
  %3825 = vmatpush1.msra.mxu0 0.0
  %3826 = vmatprep.subr.mxu0 0.0
  %3827 = vmatpush1.msra.mxu0 0.0
  %3828 = vmatprep.subr.mxu0 0.0
  %3829 = vmatpush1.msra.mxu0 0.0
  %3830 = vmatprep.subr.mxu0 0.0
  %3831 = vmatpush1.msra.mxu0 0.0
  %3832 = vmatprep.mubr.f32.mxu0 0.0
  %3833 = vmatmul.mubr.f32.gmra.mrb[0].mxu0 %v3757
  %v3834 = vpop.f32.mrb[0].mxu0
  %v3835 = vadd.f32 0.0, %v3834
  %v3836 = vpop.f32.mrb[0].mxu0
  %3837 = vmatprep.mubr.f32.mxu0 0.0
  %3838 = vmatmul.mubr.f32.gmra.mrb[0].mxu0 %v3760
  %v3839 = vpop.f32.mrb[0].mxu0
  %v3840 = vadd.f32 0.0, %v3839
  %v3841 = vpop.f32.mrb[0].mxu0
  %3842 = vmatprep.mubr.f32.mxu0 0.0
  %3843 = vmatmul.mubr.f32.gmra.mrb[0].mxu0 %v3763
  %v3844 = vpop.f32.mrb[0].mxu0
  %v3845 = vadd.f32 0.0, %v3844
  %v3846 = vpop.f32.mrb[0].mxu0
  %3847 = vmatprep.mubr.f32.mxu0 0.0
  %3848 = vmatmul.mubr.f32.gmra.mrb[0].mxu0 %v3766
  %v3849 = vpop.f32.mrb[0].mxu0
  %v3850 = vadd.f32 0.0, %v3849
  %v3851 = vpop.f32.mrb[0].mxu0
  %3852 = vdwg.mxu0
  %v3853 = vadd.f32 %v1175, %v3835
  %v3854 = vadd.f32 %v1175, %v3840
  %v3855 = vadd.f32 %v1175, %v3845
  %v3856 = vadd.f32 %v1175, %v3850
  %v3857 = vxor.u32 %v3853, 2147483648
  %v3858 = vxor.u32 %v3854, 2147483648
  %v3859 = vxor.u32 %v3855, 2147483648
  %v3860 = vxor.u32 %v3856, 2147483648
  %v3861 = vmul.f32 %v3857, 1.442695
  %v3862 = vpow.pop %v3861
  %v3863 = vmul.f32 %v3858, 1.442695
  %v3864 = vpow.pop %v3863
  %v3865 = vmul.f32 %v3859, 1.442695
  %v3866 = vpow.pop %v3865
  %v3867 = vmul.f32 %v3860, 1.442695
  %v3868 = vpow.pop %v3867
  %v3869 = vadd.f32 %v3862, 1.0
  %v3870 = vadd.f32 %v3864, 1.0
  %v3871 = vadd.f32 %v3866, 1.0
  %v3872 = vadd.f32 %v3868, 1.0
  %v3873 = vrcp.pop %v3869
  %v3874 = vmul.f32 1.0, %v3873
  %v3875 = vrcp.pop %v3870
  %v3876 = vmul.f32 1.0, %v3875
  %v3877 = vrcp.pop %v3871
  %v3878 = vmul.f32 1.0, %v3877
  %v3879 = vrcp.pop %v3872
  %v3880 = vmul.f32 1.0, %v3879
  %v3881 = vtanh.pop %v3853
  %v3882 = vtanh.pop %v3854
  %v3883 = vtanh.pop %v3855
  %v3884 = vtanh.pop %v3856
  %v3885 = vmul.f32 %v3874, %v3479
  %v3886 = vmul.f32 %v3876, %v3480
  %v3887 = vmul.f32 %v3878, %v3481
  %v3888 = vmul.f32 %v3880, %v3482
  %3893 = vrot.lane.b32.xlu0 %v3881, 64
  %v3894 = vpop.permute.xlu0 %3893
  %3895 = vrot.lane.b32.xlu0 %v3882, 64
  %v3896 = vpop.permute.xlu0 %3895
  %3897 = vrot.lane.b32.xlu0 %v3883, 64
  %v3898 = vpop.permute.xlu0 %3897
  %3899 = vrot.lane.b32.xlu0 %v3884, 64
  %v3900 = vpop.permute.xlu0 %3899
  %v3905 = vmul.f32 %v3874, %v3894
  %v3906 = vmul.f32 %v3876, %v3896
  %v3907 = vmul.f32 %v3878, %v3898
  %v3908 = vmul.f32 %v3880, %v3900
  %3913 = vrot.lane.b32.xlu0 %v3905, 32
  %v3914 = vpop.permute.xlu0 %3913
  %3915 = vrot.lane.b32.xlu0 %v3906, 32
  %v3916 = vpop.permute.xlu0 %3915
  %3917 = vrot.lane.b32.xlu0 %v3907, 32
  %v3918 = vpop.permute.xlu0 %3917
  %3919 = vrot.lane.b32.xlu0 %v3908, 32
  %v3920 = vpop.permute.xlu0 %3919
  %v3925 = vadd.f32 %v3885, %v3914
  %v3926 = vadd.f32 %v3886, %v3916
  %v3927 = vadd.f32 %v3887, %v3918
  %v3928 = vadd.f32 %v3888, %v3920
  %v3929 = vtanh.pop %v3925
  %v3930 = vtanh.pop %v3926
  %v3931 = vtanh.pop %v3927
  %v3932 = vtanh.pop %v3928
  %3937 = vrot.lane.b32.xlu0 %v3929, 64
  %v3938 = vpop.permute.xlu0 %3937
  %3939 = vrot.lane.b32.xlu0 %v3930, 64
  %v3940 = vpop.permute.xlu0 %3939
  %3941 = vrot.lane.b32.xlu0 %v3931, 64
  %v3942 = vpop.permute.xlu0 %3941
  %3943 = vrot.lane.b32.xlu0 %v3932, 64
  %v3944 = vpop.permute.xlu0 %3943
  %v3949 = vmul.f32 %v3874, %v3938
  %v3950 = vmul.f32 %v3876, %v3940
  %v3951 = vmul.f32 %v3878, %v3942
  %v3952 = vmul.f32 %v3880, %v3944
  %3957 = vrot.lane.b32.xlu0 %v3949, 32
  %v3958 = vpop.permute.xlu0 %3957
  %3959 = vrot.lane.b32.xlu0 %v3950, 32
  %v3960 = vpop.permute.xlu0 %3959
  %3961 = vrot.lane.b32.xlu0 %v3951, 32
  %v3962 = vpop.permute.xlu0 %3961
  %3963 = vrot.lane.b32.xlu0 %v3952, 32
  %v3964 = vpop.permute.xlu0 %3963
  %3969 = vst.msk [vmem:[#allocation3 + $0xc0] sm:$0xff] %vm864, %v3958
  %3970 = vst.msk [vmem:[#allocation3 + $0xc8] sm:$0xff] %vm864, %v3960
  %3971 = vst.msk [vmem:[#allocation3 + $0xd0] sm:$0xff] %vm864, %v3962
  %3972 = vst.msk [vmem:[#allocation3 + $0xd8] sm:$0xff] %vm864, %v3964
  %v3973 = vld [vmem:[#allocation2 + $0xe0] sm:$0xff]
  %v3974 = vld [vmem:[#allocation2 + $0xe8] sm:$0xff]
  %v3975 = vld [vmem:[#allocation2 + $0xf0] sm:$0xff]
  %v3976 = vld [vmem:[#allocation2 + $0xf8] sm:$0xff]
  %v3977 = vsel %vm864, %v3729, 0
  %v3979 = vsel %vm864, %v3731, 0
  %v3981 = vsel %vm864, %v3733, 0
  %v3983 = vsel %vm864, %v3735, 0
  %3985 = vmatprep.subr.mxu0 0.0
  %3986 = vmatpush1.msra.mxu0 %v847
  %3987 = vmatprep.subr.mxu0 0.0
  %3988 = vmatpush1.msra.mxu0 %v848
  %3989 = vmatprep.subr.mxu0 0.0
  %3990 = vmatpush1.msra.mxu0 %v849
  %3991 = vmatprep.subr.mxu0 0.0
  %3992 = vmatpush1.msra.mxu0 %v850
  %3993 = vmatprep.subr.mxu0 0.0
  %3994 = vmatpush1.msra.mxu0 0.0
  %3995 = vmatprep.subr.mxu0 0.0
  %3996 = vmatpush1.msra.mxu0 0.0
  %3997 = vmatprep.subr.mxu0 0.0
  %3998 = vmatpush1.msra.mxu0 0.0
  %3999 = vmatprep.subr.mxu0 0.0
  %4000 = vmatpush1.msra.mxu0 0.0
  %4001 = vmatprep.subr.mxu0 0.0
  %4002 = vmatpush1.msra.mxu0 0.0
  %4003 = vmatprep.subr.mxu0 0.0
  %4004 = vmatpush1.msra.mxu0 0.0
  %4005 = vmatprep.subr.mxu0 0.0
  %4006 = vmatpush1.msra.mxu0 0.0
  %4007 = vmatprep.subr.mxu0 0.0
  %4008 = vmatpush1.msra.mxu0 0.0
  %4009 = vmatprep.subr.mxu0 0.0
  %4010 = vmatpush1.msra.mxu0 0.0
  %4011 = vmatprep.subr.mxu0 0.0
  %4012 = vmatpush1.msra.mxu0 0.0
  %4013 = vmatprep.subr.mxu0 0.0
  %4014 = vmatpush1.msra.mxu0 0.0
  %4015 = vmatprep.subr.mxu0 0.0
  %4016 = vmatpush1.msra.mxu0 0.0
  %4017 = vmatprep.subr.mxu0 0.0
  %4018 = vmatpush1.msra.mxu0 0.0
  %4019 = vmatprep.subr.mxu0 0.0
  %4020 = vmatpush1.msra.mxu0 0.0
  %4021 = vmatprep.subr.mxu0 0.0
  %4022 = vmatpush1.msra.mxu0 0.0
  %4023 = vmatprep.subr.mxu0 0.0
  %4024 = vmatpush1.msra.mxu0 0.0
  %4025 = vmatprep.subr.mxu0 0.0
  %4026 = vmatpush1.msra.mxu0 0.0
  %4027 = vmatprep.subr.mxu0 0.0
  %4028 = vmatpush1.msra.mxu0 0.0
  %4029 = vmatprep.subr.mxu0 0.0
  %4030 = vmatpush1.msra.mxu0 0.0
  %4031 = vmatprep.subr.mxu0 0.0
  %4032 = vmatpush1.msra.mxu0 0.0
  %4033 = vmatprep.subr.mxu0 0.0
  %4034 = vmatpush1.msra.mxu0 0.0
  %4035 = vmatprep.subr.mxu0 0.0
  %4036 = vmatpush1.msra.mxu0 0.0
  %4037 = vmatprep.subr.mxu0 0.0
  %4038 = vmatpush1.msra.mxu0 0.0
  %4039 = vmatprep.subr.mxu0 0.0
  %4040 = vmatpush1.msra.mxu0 0.0
  %4041 = vmatprep.subr.mxu0 0.0
  %4042 = vmatpush1.msra.mxu0 0.0
  %4043 = vmatprep.subr.mxu0 0.0
  %4044 = vmatpush1.msra.mxu0 0.0
  %4045 = vmatprep.subr.mxu0 0.0
  %4046 = vmatpush1.msra.mxu0 0.0
  %4047 = vmatprep.subr.mxu0 0.0
  %4048 = vmatpush1.msra.mxu0 0.0
  %4049 = vmatprep.mubr.f32.mxu0 0.0
  %4050 = vmatmul.mubr.f32.gmra.mrb[0].mxu0 %v3977
  %v4051 = vpop.f32.mrb[0].mxu0
  %v4052 = vadd.f32 0.0, %v4051
  %v4053 = vpop.f32.mrb[0].mxu0
  %4054 = vmatprep.mubr.f32.mxu0 0.0
  %4055 = vmatmul.mubr.f32.gmra.mrb[0].mxu0 %v3979
  %v4056 = vpop.f32.mrb[0].mxu0
  %v4057 = vadd.f32 0.0, %v4056
  %v4058 = vpop.f32.mrb[0].mxu0
  %4059 = vmatprep.mubr.f32.mxu0 0.0
  %4060 = vmatmul.mubr.f32.gmra.mrb[0].mxu0 %v3981
  %v4061 = vpop.f32.mrb[0].mxu0
  %v4062 = vadd.f32 0.0, %v4061
  %v4063 = vpop.f32.mrb[0].mxu0
  %4064 = vmatprep.mubr.f32.mxu0 0.0
  %4065 = vmatmul.mubr.f32.gmra.mrb[0].mxu0 %v3983
  %v4066 = vpop.f32.mrb[0].mxu0
  %v4067 = vadd.f32 0.0, %v4066
  %v4068 = vpop.f32.mrb[0].mxu0
  %4069 = vdwg.mxu0
  %v4070 = vadd.f32 %v3973, %v4052
  %v4071 = vadd.f32 %v3974, %v4057
  %v4072 = vadd.f32 %v3975, %v4062
  %v4073 = vadd.f32 %v3976, %v4067
  %v4074 = vxor.u32 %v4070, 2147483648
  %v4075 = vxor.u32 %v4071, 2147483648
  %v4076 = vxor.u32 %v4072, 2147483648
  %v4077 = vxor.u32 %v4073, 2147483648
  %v4078 = vmul.f32 %v4074, 1.442695
  %v4079 = vpow.pop %v4078
  %v4080 = vmul.f32 %v4075, 1.442695
  %v4081 = vpow.pop %v4080
  %v4082 = vmul.f32 %v4076, 1.442695
  %v4083 = vpow.pop %v4082
  %v4084 = vmul.f32 %v4077, 1.442695
  %v4085 = vpow.pop %v4084
  %v4086 = vadd.f32 %v4079, 1.0
  %v4087 = vadd.f32 %v4081, 1.0
  %v4088 = vadd.f32 %v4083, 1.0
  %v4089 = vadd.f32 %v4085, 1.0
  %v4090 = vrcp.pop %v4086
  %v4091 = vmul.f32 1.0, %v4090
  %v4092 = vrcp.pop %v4087
  %v4093 = vmul.f32 1.0, %v4092
  %v4094 = vrcp.pop %v4088
  %v4095 = vmul.f32 1.0, %v4094
  %v4096 = vrcp.pop %v4089
  %v4097 = vmul.f32 1.0, %v4096
  %v4098 = vtanh.pop %v4070
  %v4099 = vtanh.pop %v4071
  %v4100 = vtanh.pop %v4072
  %v4101 = vtanh.pop %v4073
  %v4102 = vmul.f32 %v4091, %v3696
  %v4103 = vmul.f32 %v4093, %v3697
  %v4104 = vmul.f32 %v4095, %v3698
  %v4105 = vmul.f32 %v4097, %v3699
  %4110 = vrot.lane.b32.xlu0 %v4098, 64
  %v4111 = vpop.permute.xlu0 %4110
  %4112 = vrot.lane.b32.xlu0 %v4099, 64
  %v4113 = vpop.permute.xlu0 %4112
  %4114 = vrot.lane.b32.xlu0 %v4100, 64
  %v4115 = vpop.permute.xlu0 %4114
  %4116 = vrot.lane.b32.xlu0 %v4101, 64
  %v4117 = vpop.permute.xlu0 %4116
  %v4122 = vmul.f32 %v4091, %v4111
  %v4123 = vmul.f32 %v4093, %v4113
  %v4124 = vmul.f32 %v4095, %v4115
  %v4125 = vmul.f32 %v4097, %v4117
  %4130 = vrot.lane.b32.xlu0 %v4122, 32
  %v4131 = vpop.permute.xlu0 %4130
  %4132 = vrot.lane.b32.xlu0 %v4123, 32
  %v4133 = vpop.permute.xlu0 %4132
  %4134 = vrot.lane.b32.xlu0 %v4124, 32
  %v4135 = vpop.permute.xlu0 %4134
  %4136 = vrot.lane.b32.xlu0 %v4125, 32
  %v4137 = vpop.permute.xlu0 %4136
  %v4142 = vadd.f32 %v4102, %v4131
  %v4143 = vadd.f32 %v4103, %v4133
  %v4144 = vadd.f32 %v4104, %v4135
  %v4145 = vadd.f32 %v4105, %v4137
  %v4146 = vtanh.pop %v4142
  %v4147 = vtanh.pop %v4143
  %v4148 = vtanh.pop %v4144
  %v4149 = vtanh.pop %v4145
  %4154 = vrot.lane.b32.xlu0 %v4146, 64
  %v4155 = vpop.permute.xlu0 %4154
  %4156 = vrot.lane.b32.xlu0 %v4147, 64
  %v4157 = vpop.permute.xlu0 %4156
  %4158 = vrot.lane.b32.xlu0 %v4148, 64
  %v4159 = vpop.permute.xlu0 %4158
  %4160 = vrot.lane.b32.xlu0 %v4149, 64
  %v4161 = vpop.permute.xlu0 %4160
  %v4166 = vmul.f32 %v4091, %v4155
  %v4167 = vmul.f32 %v4093, %v4157
  %v4168 = vmul.f32 %v4095, %v4159
  %v4169 = vmul.f32 %v4097, %v4161
  %4174 = vrot.lane.b32.xlu0 %v4166, 32
  %v4175 = vpop.permute.xlu0 %4174
  %4176 = vrot.lane.b32.xlu0 %v4167, 32
  %v4177 = vpop.permute.xlu0 %4176
  %4178 = vrot.lane.b32.xlu0 %v4168, 32
  %v4179 = vpop.permute.xlu0 %4178
  %4180 = vrot.lane.b32.xlu0 %v4169, 32
  %v4181 = vpop.permute.xlu0 %4180
  %4186 = vrot.lane.b32.xlu0 %v3949, 64
  %v4187 = vpop.permute.xlu0 %4186
  %4188 = vrot.lane.b32.xlu0 %v3950, 64
  %v4189 = vpop.permute.xlu0 %4188
  %4190 = vrot.lane.b32.xlu0 %v3951, 64
  %v4191 = vpop.permute.xlu0 %4190
  %4192 = vrot.lane.b32.xlu0 %v3952, 64
  %v4193 = vpop.permute.xlu0 %4192
  %v4198 = vsel %vm864, %v4175, %v4187
  %v4199 = vsel %vm864, %v4177, %v4189
  %v4200 = vsel %vm864, %v4179, %v4191
  %v4201 = vsel %vm864, %v4181, %v4193
  %v4203 = vsel %vm1073, %v4198, 0
  %v4206 = vsel %vm1073, %v4199, 0
  %v4209 = vsel %vm1073, %v4200, 0
  %v4212 = vsel %vm1073, %v4201, 0
  %4214 = vmatprep.subr.mxu0 0.0
  %4215 = vmatpush1.msra.mxu0 %v851
  %4216 = vmatprep.subr.mxu0 0.0
  %4217 = vmatpush1.msra.mxu0 %v852
  %4218 = vmatprep.subr.mxu0 0.0
  %4219 = vmatpush1.msra.mxu0 %v853
  %4220 = vmatprep.subr.mxu0 0.0
  %4221 = vmatpush1.msra.mxu0 %v854
  %4222 = vmatprep.subr.mxu0 0.0
  %4223 = vmatpush1.msra.mxu0 %v855
  %4224 = vmatprep.subr.mxu0 0.0
  %4225 = vmatpush1.msra.mxu0 %v856
  %4226 = vmatprep.subr.mxu0 0.0
  %4227 = vmatpush1.msra.mxu0 %v857
  %4228 = vmatprep.subr.mxu0 0.0
  %4229 = vmatpush1.msra.mxu0 %v858
  %4230 = vmatprep.subr.mxu0 0.0
  %4231 = vmatpush1.msra.mxu0 0.0
  %4232 = vmatprep.subr.mxu0 0.0
  %4233 = vmatpush1.msra.mxu0 0.0
  %4234 = vmatprep.subr.mxu0 0.0
  %4235 = vmatpush1.msra.mxu0 0.0
  %4236 = vmatprep.subr.mxu0 0.0
  %4237 = vmatpush1.msra.mxu0 0.0
  %4238 = vmatprep.subr.mxu0 0.0
  %4239 = vmatpush1.msra.mxu0 0.0
  %4240 = vmatprep.subr.mxu0 0.0
  %4241 = vmatpush1.msra.mxu0 0.0
  %4242 = vmatprep.subr.mxu0 0.0
  %4243 = vmatpush1.msra.mxu0 0.0
  %4244 = vmatprep.subr.mxu0 0.0
  %4245 = vmatpush1.msra.mxu0 0.0
  %4246 = vmatprep.subr.mxu0 0.0
  %4247 = vmatpush1.msra.mxu0 0.0
  %4248 = vmatprep.subr.mxu0 0.0
  %4249 = vmatpush1.msra.mxu0 0.0
  %4250 = vmatprep.subr.mxu0 0.0
  %4251 = vmatpush1.msra.mxu0 0.0
  %4252 = vmatprep.subr.mxu0 0.0
  %4253 = vmatpush1.msra.mxu0 0.0
  %4254 = vmatprep.subr.mxu0 0.0
  %4255 = vmatpush1.msra.mxu0 0.0
  %4256 = vmatprep.subr.mxu0 0.0
  %4257 = vmatpush1.msra.mxu0 0.0
  %4258 = vmatprep.subr.mxu0 0.0
  %4259 = vmatpush1.msra.mxu0 0.0
  %4260 = vmatprep.subr.mxu0 0.0
  %4261 = vmatpush1.msra.mxu0 0.0
  %4262 = vmatprep.subr.mxu0 0.0
  %4263 = vmatpush1.msra.mxu0 0.0
  %4264 = vmatprep.subr.mxu0 0.0
  %4265 = vmatpush1.msra.mxu0 0.0
  %4266 = vmatprep.subr.mxu0 0.0
  %4267 = vmatpush1.msra.mxu0 0.0
  %4268 = vmatprep.subr.mxu0 0.0
  %4269 = vmatpush1.msra.mxu0 0.0
  %4270 = vmatprep.subr.mxu0 0.0
  %4271 = vmatpush1.msra.mxu0 0.0
  %4272 = vmatprep.subr.mxu0 0.0
  %4273 = vmatpush1.msra.mxu0 0.0
  %4274 = vmatprep.subr.mxu0 0.0
  %4275 = vmatpush1.msra.mxu0 0.0
  %4276 = vmatprep.subr.mxu0 0.0
  %4277 = vmatpush1.msra.mxu0 0.0
  %4278 = vmatprep.mubr.f32.mxu0 0.0
  %4279 = vmatmul.mubr.f32.gmra.mrb[0].mxu0 %v4203
  %v4280 = vpop.f32.mrb[0].mxu0
  %v4281 = vadd.f32 0.0, %v4280
  %v4282 = vpop.f32.mrb[0].mxu0
  %4283 = vmatprep.mubr.f32.mxu0 0.0
  %4284 = vmatmul.mubr.f32.gmra.mrb[0].mxu0 %v4206
  %v4285 = vpop.f32.mrb[0].mxu0
  %v4286 = vadd.f32 0.0, %v4285
  %v4287 = vpop.f32.mrb[0].mxu0
  %4288 = vmatprep.mubr.f32.mxu0 0.0
  %4289 = vmatmul.mubr.f32.gmra.mrb[0].mxu0 %v4209
  %v4290 = vpop.f32.mrb[0].mxu0
  %v4291 = vadd.f32 0.0, %v4290
  %v4292 = vpop.f32.mrb[0].mxu0
  %4293 = vmatprep.mubr.f32.mxu0 0.0
  %4294 = vmatmul.mubr.f32.gmra.mrb[0].mxu0 %v4212
  %v4295 = vpop.f32.mrb[0].mxu0
  %v4296 = vadd.f32 0.0, %v4295
  %v4297 = vpop.f32.mrb[0].mxu0
  %4298 = vdwg.mxu0
  %v4299 = vadd.f32 %v1175, %v4281
  %v4300 = vadd.f32 %v1175, %v4286
  %v4301 = vadd.f32 %v1175, %v4291
  %v4302 = vadd.f32 %v1175, %v4296
  %v4303 = vxor.u32 %v4299, 2147483648
  %v4304 = vxor.u32 %v4300, 2147483648
  %v4305 = vxor.u32 %v4301, 2147483648
  %v4306 = vxor.u32 %v4302, 2147483648
  %v4307 = vmul.f32 %v4303, 1.442695
  %v4308 = vpow.pop %v4307
  %v4309 = vmul.f32 %v4304, 1.442695
  %v4310 = vpow.pop %v4309
  %v4311 = vmul.f32 %v4305, 1.442695
  %v4312 = vpow.pop %v4311
  %v4313 = vmul.f32 %v4306, 1.442695
  %v4314 = vpow.pop %v4313
  %v4315 = vadd.f32 %v4308, 1.0
  %v4316 = vadd.f32 %v4310, 1.0
  %v4317 = vadd.f32 %v4312, 1.0
  %v4318 = vadd.f32 %v4314, 1.0
  %v4319 = vrcp.pop %v4315
  %v4320 = vmul.f32 1.0, %v4319
  %v4321 = vrcp.pop %v4316
  %v4322 = vmul.f32 1.0, %v4321
  %v4323 = vrcp.pop %v4317
  %v4324 = vmul.f32 1.0, %v4323
  %v4325 = vrcp.pop %v4318
  %v4326 = vmul.f32 1.0, %v4325
  %v4327 = vtanh.pop %v4299
  %v4328 = vtanh.pop %v4300
  %v4329 = vtanh.pop %v4301
  %v4330 = vtanh.pop %v4302
  %v4331 = vmul.f32 %v4320, %v3925
  %v4332 = vmul.f32 %v4322, %v3926
  %v4333 = vmul.f32 %v4324, %v3927
  %v4334 = vmul.f32 %v4326, %v3928
  %4339 = vrot.lane.b32.xlu0 %v4327, 64
  %v4340 = vpop.permute.xlu0 %4339
  %4341 = vrot.lane.b32.xlu0 %v4328, 64
  %v4342 = vpop.permute.xlu0 %4341
  %4343 = vrot.lane.b32.xlu0 %v4329, 64
  %v4344 = vpop.permute.xlu0 %4343
  %4345 = vrot.lane.b32.xlu0 %v4330, 64
  %v4346 = vpop.permute.xlu0 %4345
  %v4351 = vmul.f32 %v4320, %v4340
  %v4352 = vmul.f32 %v4322, %v4342
  %v4353 = vmul.f32 %v4324, %v4344
  %v4354 = vmul.f32 %v4326, %v4346
  %4359 = vrot.lane.b32.xlu0 %v4351, 32
  %v4360 = vpop.permute.xlu0 %4359
  %4361 = vrot.lane.b32.xlu0 %v4352, 32
  %v4362 = vpop.permute.xlu0 %4361
  %4363 = vrot.lane.b32.xlu0 %v4353, 32
  %v4364 = vpop.permute.xlu0 %4363
  %4365 = vrot.lane.b32.xlu0 %v4354, 32
  %v4366 = vpop.permute.xlu0 %4365
  %v4371 = vadd.f32 %v4331, %v4360
  %v4372 = vadd.f32 %v4332, %v4362
  %v4373 = vadd.f32 %v4333, %v4364
  %v4374 = vadd.f32 %v4334, %v4366
  %v4375 = vtanh.pop %v4371
  %v4376 = vtanh.pop %v4372
  %v4377 = vtanh.pop %v4373
  %v4378 = vtanh.pop %v4374
  %4383 = vrot.lane.b32.xlu0 %v4375, 64
  %v4384 = vpop.permute.xlu0 %4383
  %4385 = vrot.lane.b32.xlu0 %v4376, 64
  %v4386 = vpop.permute.xlu0 %4385
  %4387 = vrot.lane.b32.xlu0 %v4377, 64
  %v4388 = vpop.permute.xlu0 %4387
  %4389 = vrot.lane.b32.xlu0 %v4378, 64
  %v4390 = vpop.permute.xlu0 %4389
  %v4395 = vmul.f32 %v4320, %v4384
  %v4396 = vmul.f32 %v4322, %v4386
  %v4397 = vmul.f32 %v4324, %v4388
  %v4398 = vmul.f32 %v4326, %v4390
  %4403 = vrot.lane.b32.xlu0 %v4395, 32
  %v4404 = vpop.permute.xlu0 %4403
  %4405 = vrot.lane.b32.xlu0 %v4396, 32
  %v4406 = vpop.permute.xlu0 %4405
  %4407 = vrot.lane.b32.xlu0 %v4397, 32
  %v4408 = vpop.permute.xlu0 %4407
  %4409 = vrot.lane.b32.xlu0 %v4398, 32
  %v4410 = vpop.permute.xlu0 %4409
  %4415 = vst.msk [vmem:[#allocation3 + $0xe0] sm:$0xff] %vm864, %v4404
  %4416 = vst.msk [vmem:[#allocation3 + $0xe8] sm:$0xff] %vm864, %v4406
  %4417 = vst.msk [vmem:[#allocation3 + $0xf0] sm:$0xff] %vm864, %v4408
  %4418 = vst.msk [vmem:[#allocation3 + $0xf8] sm:$0xff] %vm864, %v4410
  %v4419 = vld [vmem:[#allocation3] sm:$0xff]
  %v4420 = vld [vmem:[#allocation3 + $0x8] sm:$0xff]
  %v4421 = vld [vmem:[#allocation3 + $0x10] sm:$0xff]
  %v4422 = vld [vmem:[#allocation3 + $0x18] sm:$0xff]
  %v4423 = vld [vmem:[#allocation3 + $0x20] sm:$0xff]
  %v4424 = vld [vmem:[#allocation3 + $0x28] sm:$0xff]
  %v4425 = vld [vmem:[#allocation3 + $0x30] sm:$0xff]
  %v4426 = vld [vmem:[#allocation3 + $0x38] sm:$0xff]
  %v4427 = vld [vmem:[#allocation3 + $0x40] sm:$0xff]
  %v4428 = vld [vmem:[#allocation3 + $0x48] sm:$0xff]
  %v4429 = vld [vmem:[#allocation3 + $0x50] sm:$0xff]
  %v4430 = vld [vmem:[#allocation3 + $0x58] sm:$0xff]
  %v4431 = vld [vmem:[#allocation3 + $0x60] sm:$0xff]
  %v4432 = vld [vmem:[#allocation3 + $0x68] sm:$0xff]
  %v4433 = vld [vmem:[#allocation3 + $0x70] sm:$0xff]
  %v4434 = vld [vmem:[#allocation3 + $0x78] sm:$0xff]
  %v4435 = vld [vmem:[#allocation3 + $0x80] sm:$0xff]
  %v4436 = vld [vmem:[#allocation3 + $0x88] sm:$0xff]
  %v4437 = vld [vmem:[#allocation3 + $0x90] sm:$0xff]
  %v4438 = vld [vmem:[#allocation3 + $0x98] sm:$0xff]
  %v4439 = vld [vmem:[#allocation3 + $0xa0] sm:$0xff]
  %v4440 = vld [vmem:[#allocation3 + $0xa8] sm:$0xff]
  %v4441 = vld [vmem:[#allocation3 + $0xb0] sm:$0xff]
  %v4442 = vld [vmem:[#allocation3 + $0xb8] sm:$0xff]
  %v4443 = vld [vmem:[#allocation3 + $0xc0] sm:$0xff]
  %v4444 = vld [vmem:[#allocation3 + $0xc8] sm:$0xff]
  %v4445 = vld [vmem:[#allocation3 + $0xd0] sm:$0xff]
  %v4446 = vld [vmem:[#allocation3 + $0xd8] sm:$0xff]
  %v4447 = vld [vmem:[#allocation3 + $0xe0] sm:$0xff]
  %v4448 = vld [vmem:[#allocation3 + $0xe8] sm:$0xff]
  %v4449 = vld [vmem:[#allocation3 + $0xf0] sm:$0xff]
  %v4450 = vld [vmem:[#allocation3 + $0xf8] sm:$0xff]
  %v4451 = vld [vmem:[%s6] sm:$0xff]
  %v4452 = vld [vmem:[%s6 + $0x8] sm:$0xff]
  %v4453 = vld [vmem:[%s6 + $0x10] sm:$0xff]
  %v4454 = vld [vmem:[%s6 + $0x18] sm:$0xff]
  %v4455 = vld [vmem:[%s7] sm:$0x1]
  %v4457 = vlaneseq
  %v4458 = vshrl.u32 %v4457, 7
  %v4459 = vsub.s32 0, %v4458
  %v4460 = vrot.slane %v4455, %v4459
  %v4463 = vsel %vm864, %v4419, 0
  %v4466 = vsel %vm864, %v4420, 0
  %v4469 = vsel %vm864, %v4421, 0
  %v4472 = vsel %vm864, %v4422, 0
  %v4475 = vsel %vm864, %v4423, 0
  %v4478 = vsel %vm864, %v4424, 0
  %v4481 = vsel %vm864, %v4425, 0
  %v4484 = vsel %vm864, %v4426, 0
  %v4487 = vsel %vm864, %v4427, 0
  %v4490 = vsel %vm864, %v4428, 0
  %v4493 = vsel %vm864, %v4429, 0
  %v4496 = vsel %vm864, %v4430, 0
  %v4499 = vsel %vm864, %v4431, 0
  %v4502 = vsel %vm864, %v4432, 0
  %v4505 = vsel %vm864, %v4433, 0
  %v4508 = vsel %vm864, %v4434, 0
  %v4511 = vsel %vm864, %v4435, 0
  %v4514 = vsel %vm864, %v4436, 0
  %v4517 = vsel %vm864, %v4437, 0
  %v4520 = vsel %vm864, %v4438, 0
  %v4523 = vsel %vm864, %v4439, 0
  %v4526 = vsel %vm864, %v4440, 0
  %v4529 = vsel %vm864, %v4441, 0
  %v4532 = vsel %vm864, %v4442, 0
  %v4535 = vsel %vm864, %v4443, 0
  %v4538 = vsel %vm864, %v4444, 0
  %v4541 = vsel %vm864, %v4445, 0
  %v4544 = vsel %vm864, %v4446, 0
  %v4547 = vsel %vm864, %v4447, 0
  %v4550 = vsel %vm864, %v4448, 0
  %v4553 = vsel %vm864, %v4449, 0
  %v4556 = vsel %vm864, %v4450, 0
  %4558 = vmatprep.subr.mxu0 0.0
  %4559 = vmatpush1.msra.mxu0 %v4451
  %4560 = vmatprep.subr.mxu0 0.0
  %4561 = vmatpush1.msra.mxu0 %v4452
  %4562 = vmatprep.subr.mxu0 0.0
  %4563 = vmatpush1.msra.mxu0 %v4453
  %4564 = vmatprep.subr.mxu0 0.0
  %4565 = vmatpush1.msra.mxu0 %v4454
  %4566 = vmatprep.subr.mxu0 0.0
  %4567 = vmatpush1.msra.mxu0 0.0
  %4568 = vmatprep.subr.mxu0 0.0
  %4569 = vmatpush1.msra.mxu0 0.0
  %4570 = vmatprep.subr.mxu0 0.0
  %4571 = vmatpush1.msra.mxu0 0.0
  %4572 = vmatprep.subr.mxu0 0.0
  %4573 = vmatpush1.msra.mxu0 0.0
  %4574 = vmatprep.subr.mxu0 0.0
  %4575 = vmatpush1.msra.mxu0 0.0
  %4576 = vmatprep.subr.mxu0 0.0
  %4577 = vmatpush1.msra.mxu0 0.0
  %4578 = vmatprep.subr.mxu0 0.0
  %4579 = vmatpush1.msra.mxu0 0.0
  %4580 = vmatprep.subr.mxu0 0.0
  %4581 = vmatpush1.msra.mxu0 0.0
  %4582 = vmatprep.subr.mxu0 0.0
  %4583 = vmatpush1.msra.mxu0 0.0
  %4584 = vmatprep.subr.mxu0 0.0
  %4585 = vmatpush1.msra.mxu0 0.0
  %4586 = vmatprep.subr.mxu0 0.0
  %4587 = vmatpush1.msra.mxu0 0.0
  %4588 = vmatprep.subr.mxu0 0.0
  %4589 = vmatpush1.msra.mxu0 0.0
  %4590 = vmatprep.subr.mxu0 0.0
  %4591 = vmatpush1.msra.mxu0 0.0
  %4592 = vmatprep.subr.mxu0 0.0
  %4593 = vmatpush1.msra.mxu0 0.0
  %4594 = vmatprep.subr.mxu0 0.0
  %4595 = vmatpush1.msra.mxu0 0.0
  %4596 = vmatprep.subr.mxu0 0.0
  %4597 = vmatpush1.msra.mxu0 0.0
  %4598 = vmatprep.subr.mxu0 0.0
  %4599 = vmatpush1.msra.mxu0 0.0
  %4600 = vmatprep.subr.mxu0 0.0
  %4601 = vmatpush1.msra.mxu0 0.0
  %4602 = vmatprep.subr.mxu0 0.0
  %4603 = vmatpush1.msra.mxu0 0.0
  %4604 = vmatprep.subr.mxu0 0.0
  %4605 = vmatpush1.msra.mxu0 0.0
  %4606 = vmatprep.subr.mxu0 0.0
  %4607 = vmatpush1.msra.mxu0 0.0
  %4608 = vmatprep.subr.mxu0 0.0
  %4609 = vmatpush1.msra.mxu0 0.0
  %4610 = vmatprep.subr.mxu0 0.0
  %4611 = vmatpush1.msra.mxu0 0.0
  %4612 = vmatprep.subr.mxu0 0.0
  %4613 = vmatpush1.msra.mxu0 0.0
  %4614 = vmatprep.subr.mxu0 0.0
  %4615 = vmatpush1.msra.mxu0 0.0
  %4616 = vmatprep.subr.mxu0 0.0
  %4617 = vmatpush1.msra.mxu0 0.0
  %4618 = vmatprep.subr.mxu0 0.0
  %4619 = vmatpush1.msra.mxu0 0.0
  %4620 = vmatprep.subr.mxu0 0.0
  %4621 = vmatpush1.msra.mxu0 0.0
  %4622 = vmatprep.mubr.f32.mxu0 0.0
  %4623 = vmatmul.mubr.f32.gmra.mrb[0].mxu0 %v4463
  %v4624 = vpop.f32.mrb[0].mxu0
  %v4625 = vadd.f32 %v4460, %v4624
  %v4626 = vpop.f32.mrb[0].mxu0
  %4627 = vmatprep.mubr.f32.mxu0 0.0
  %4628 = vmatmul.mubr.f32.gmra.mrb[0].mxu0 %v4466
  %v4629 = vpop.f32.mrb[0].mxu0
  %v4630 = vadd.f32 %v4460, %v4629
  %v4631 = vpop.f32.mrb[0].mxu0
  %4632 = vmatprep.mubr.f32.mxu0 0.0
  %4633 = vmatmul.mubr.f32.gmra.mrb[0].mxu0 %v4469
  %v4634 = vpop.f32.mrb[0].mxu0
  %v4635 = vadd.f32 %v4460, %v4634
  %v4636 = vpop.f32.mrb[0].mxu0
  %4637 = vmatprep.mubr.f32.mxu0 0.0
  %4638 = vmatmul.mubr.f32.gmra.mrb[0].mxu0 %v4472
  %v4639 = vpop.f32.mrb[0].mxu0
  %v4640 = vadd.f32 %v4460, %v4639
  %v4641 = vpop.f32.mrb[0].mxu0
  %4642 = vmatprep.mubr.f32.mxu0 0.0
  %4643 = vmatmul.mubr.f32.gmra.mrb[0].mxu0 %v4475
  %v4644 = vpop.f32.mrb[0].mxu0
  %v4645 = vadd.f32 %v4460, %v4644
  %v4646 = vpop.f32.mrb[0].mxu0
  %4647 = vmatprep.mubr.f32.mxu0 0.0
  %4648 = vmatmul.mubr.f32.gmra.mrb[0].mxu0 %v4478
  %v4649 = vpop.f32.mrb[0].mxu0
  %v4650 = vadd.f32 %v4460, %v4649
  %v4651 = vpop.f32.mrb[0].mxu0
  %4652 = vmatprep.mubr.f32.mxu0 0.0
  %4653 = vmatmul.mubr.f32.gmra.mrb[0].mxu0 %v4481
  %v4654 = vpop.f32.mrb[0].mxu0
  %v4655 = vadd.f32 %v4460, %v4654
  %v4656 = vpop.f32.mrb[0].mxu0
  %4657 = vmatprep.mubr.f32.mxu0 0.0
  %4658 = vmatmul.mubr.f32.gmra.mrb[0].mxu0 %v4484
  %v4659 = vpop.f32.mrb[0].mxu0
  %v4660 = vadd.f32 %v4460, %v4659
  %v4661 = vpop.f32.mrb[0].mxu0
  %4662 = vmatprep.mubr.f32.mxu0 0.0
  %4663 = vmatmul.mubr.f32.gmra.mrb[0].mxu0 %v4487
  %v4664 = vpop.f32.mrb[0].mxu0
  %v4665 = vadd.f32 %v4460, %v4664
  %v4666 = vpop.f32.mrb[0].mxu0
  %4667 = vmatprep.mubr.f32.mxu0 0.0
  %4668 = vmatmul.mubr.f32.gmra.mrb[0].mxu0 %v4490
  %v4669 = vpop.f32.mrb[0].mxu0
  %v4670 = vadd.f32 %v4460, %v4669
  %v4671 = vpop.f32.mrb[0].mxu0
  %4672 = vmatprep.mubr.f32.mxu0 0.0
  %4673 = vmatmul.mubr.f32.gmra.mrb[0].mxu0 %v4493
  %v4674 = vpop.f32.mrb[0].mxu0
  %v4675 = vadd.f32 %v4460, %v4674
  %v4676 = vpop.f32.mrb[0].mxu0
  %4677 = vmatprep.mubr.f32.mxu0 0.0
  %4678 = vmatmul.mubr.f32.gmra.mrb[0].mxu0 %v4496
  %v4679 = vpop.f32.mrb[0].mxu0
  %v4680 = vadd.f32 %v4460, %v4679
  %v4681 = vpop.f32.mrb[0].mxu0
  %4682 = vmatprep.mubr.f32.mxu0 0.0
  %4683 = vmatmul.mubr.f32.gmra.mrb[0].mxu0 %v4499
  %v4684 = vpop.f32.mrb[0].mxu0
  %v4685 = vadd.f32 %v4460, %v4684
  %v4686 = vpop.f32.mrb[0].mxu0
  %4687 = vmatprep.mubr.f32.mxu0 0.0
  %4688 = vmatmul.mubr.f32.gmra.mrb[0].mxu0 %v4502
  %v4689 = vpop.f32.mrb[0].mxu0
  %v4690 = vadd.f32 %v4460, %v4689
  %v4691 = vpop.f32.mrb[0].mxu0
  %4692 = vmatprep.mubr.f32.mxu0 0.0
  %4693 = vmatmul.mubr.f32.gmra.mrb[0].mxu0 %v4505
  %v4694 = vpop.f32.mrb[0].mxu0
  %v4695 = vadd.f32 %v4460, %v4694
  %v4696 = vpop.f32.mrb[0].mxu0
  %4697 = vmatprep.mubr.f32.mxu0 0.0
  %4698 = vmatmul.mubr.f32.gmra.mrb[0].mxu0 %v4508
  %v4699 = vpop.f32.mrb[0].mxu0
  %v4700 = vadd.f32 %v4460, %v4699
  %v4701 = vpop.f32.mrb[0].mxu0
  %4702 = vmatprep.mubr.f32.mxu0 0.0
  %4703 = vmatmul.mubr.f32.gmra.mrb[0].mxu0 %v4511
  %v4704 = vpop.f32.mrb[0].mxu0
  %v4705 = vadd.f32 %v4460, %v4704
  %v4706 = vpop.f32.mrb[0].mxu0
  %4707 = vmatprep.mubr.f32.mxu0 0.0
  %4708 = vmatmul.mubr.f32.gmra.mrb[0].mxu0 %v4514
  %v4709 = vpop.f32.mrb[0].mxu0
  %v4710 = vadd.f32 %v4460, %v4709
  %v4711 = vpop.f32.mrb[0].mxu0
  %4712 = vmatprep.mubr.f32.mxu0 0.0
  %4713 = vmatmul.mubr.f32.gmra.mrb[0].mxu0 %v4517
  %v4714 = vpop.f32.mrb[0].mxu0
  %v4715 = vadd.f32 %v4460, %v4714
  %v4716 = vpop.f32.mrb[0].mxu0
  %4717 = vmatprep.mubr.f32.mxu0 0.0
  %4718 = vmatmul.mubr.f32.gmra.mrb[0].mxu0 %v4520
  %v4719 = vpop.f32.mrb[0].mxu0
  %v4720 = vadd.f32 %v4460, %v4719
  %v4721 = vpop.f32.mrb[0].mxu0
  %4722 = vmatprep.mubr.f32.mxu0 0.0
  %4723 = vmatmul.mubr.f32.gmra.mrb[0].mxu0 %v4523
  %v4724 = vpop.f32.mrb[0].mxu0
  %v4725 = vadd.f32 %v4460, %v4724
  %v4726 = vpop.f32.mrb[0].mxu0
  %4727 = vmatprep.mubr.f32.mxu0 0.0
  %4728 = vmatmul.mubr.f32.gmra.mrb[0].mxu0 %v4526
  %v4729 = vpop.f32.mrb[0].mxu0
  %v4730 = vadd.f32 %v4460, %v4729
  %v4731 = vpop.f32.mrb[0].mxu0
  %4732 = vmatprep.mubr.f32.mxu0 0.0
  %4733 = vmatmul.mubr.f32.gmra.mrb[0].mxu0 %v4529
  %v4734 = vpop.f32.mrb[0].mxu0
  %v4735 = vadd.f32 %v4460, %v4734
  %v4736 = vpop.f32.mrb[0].mxu0
  %4737 = vmatprep.mubr.f32.mxu0 0.0
  %4738 = vmatmul.mubr.f32.gmra.mrb[0].mxu0 %v4532
  %v4739 = vpop.f32.mrb[0].mxu0
  %v4740 = vadd.f32 %v4460, %v4739
  %v4741 = vpop.f32.mrb[0].mxu0
  %4742 = vmatprep.mubr.f32.mxu0 0.0
  %4743 = vmatmul.mubr.f32.gmra.mrb[0].mxu0 %v4535
  %v4744 = vpop.f32.mrb[0].mxu0
  %v4745 = vadd.f32 %v4460, %v4744
  %v4746 = vpop.f32.mrb[0].mxu0
  %4747 = vmatprep.mubr.f32.mxu0 0.0
  %4748 = vmatmul.mubr.f32.gmra.mrb[0].mxu0 %v4538
  %v4749 = vpop.f32.mrb[0].mxu0
  %v4750 = vadd.f32 %v4460, %v4749
  %v4751 = vpop.f32.mrb[0].mxu0
  %4752 = vmatprep.mubr.f32.mxu0 0.0
  %4753 = vmatmul.mubr.f32.gmra.mrb[0].mxu0 %v4541
  %v4754 = vpop.f32.mrb[0].mxu0
  %v4755 = vadd.f32 %v4460, %v4754
  %v4756 = vpop.f32.mrb[0].mxu0
  %4757 = vmatprep.mubr.f32.mxu0 0.0
  %4758 = vmatmul.mubr.f32.gmra.mrb[0].mxu0 %v4544
  %v4759 = vpop.f32.mrb[0].mxu0
  %v4760 = vadd.f32 %v4460, %v4759
  %v4761 = vpop.f32.mrb[0].mxu0
  %4762 = vmatprep.mubr.f32.mxu0 0.0
  %4763 = vmatmul.mubr.f32.gmra.mrb[0].mxu0 %v4547
  %v4764 = vpop.f32.mrb[0].mxu0
  %v4765 = vadd.f32 %v4460, %v4764
  %v4766 = vpop.f32.mrb[0].mxu0
  %4767 = vmatprep.mubr.f32.mxu0 0.0
  %4768 = vmatmul.mubr.f32.gmra.mrb[0].mxu0 %v4550
  %v4769 = vpop.f32.mrb[0].mxu0
  %v4770 = vadd.f32 %v4460, %v4769
  %v4771 = vpop.f32.mrb[0].mxu0
  %4772 = vmatprep.mubr.f32.mxu0 0.0
  %4773 = vmatmul.mubr.f32.gmra.mrb[0].mxu0 %v4553
  %v4774 = vpop.f32.mrb[0].mxu0
  %v4775 = vadd.f32 %v4460, %v4774
  %v4776 = vpop.f32.mrb[0].mxu0
  %4777 = vmatprep.mubr.f32.mxu0 0.0
  %4778 = vmatmul.mubr.f32.gmra.mrb[0].mxu0 %v4556
  %v4779 = vpop.f32.mrb[0].mxu0
  %v4780 = vadd.f32 %v4460, %v4779
  %v4781 = vpop.f32.mrb[0].mxu0
  %4782 = vdwg.mxu0
  %v4783 = vmax.f32 %v4625, 0.0
  %v4784 = vmax.f32 %v4630, 0.0
  %v4785 = vmax.f32 %v4635, 0.0
  %v4786 = vmax.f32 %v4640, 0.0
  %v4787 = vmax.f32 %v4645, 0.0
  %v4788 = vmax.f32 %v4650, 0.0
  %v4789 = vmax.f32 %v4655, 0.0
  %v4790 = vmax.f32 %v4660, 0.0
  %v4791 = vmax.f32 %v4665, 0.0
  %v4792 = vmax.f32 %v4670, 0.0
  %v4793 = vmax.f32 %v4675, 0.0
  %v4794 = vmax.f32 %v4680, 0.0
  %v4795 = vmax.f32 %v4685, 0.0
  %v4796 = vmax.f32 %v4690, 0.0
  %v4797 = vmax.f32 %v4695, 0.0
  %v4798 = vmax.f32 %v4700, 0.0
  %v4799 = vmax.f32 %v4705, 0.0
  %v4800 = vmax.f32 %v4710, 0.0
  %v4801 = vmax.f32 %v4715, 0.0
  %v4802 = vmax.f32 %v4720, 0.0
  %v4803 = vmax.f32 %v4725, 0.0
  %v4804 = vmax.f32 %v4730, 0.0
  %v4805 = vmax.f32 %v4735, 0.0
  %v4806 = vmax.f32 %v4740, 0.0
  %v4807 = vmax.f32 %v4745, 0.0
  %v4808 = vmax.f32 %v4750, 0.0
  %v4809 = vmax.f32 %v4755, 0.0
  %v4810 = vmax.f32 %v4760, 0.0
  %v4811 = vmax.f32 %v4765, 0.0
  %v4812 = vmax.f32 %v4770, 0.0
  %v4813 = vmax.f32 %v4775, 0.0
  %v4814 = vmax.f32 %v4780, 0.0
  %v4815 = vld [vmem:[%s8] sm:$0xff]
  %v4816 = vld [vmem:[%s9] sm:$0xff]
  %4818 = vset.pattern.permute.xlu0 0
  %4819 = vperm.xlu0 %4818, %v4816
  %v4820 = vpop.permute.xlu0 %4819
  %v4823 = vsel %vm864, %v4815, 0
  %v4826 = vsel %vm864, %v4783, 0
  %v4829 = vsel %vm864, %v4784, 0
  %v4832 = vsel %vm864, %v4785, 0
  %v4835 = vsel %vm864, %v4786, 0
  %v4838 = vsel %vm864, %v4787, 0
  %v4841 = vsel %vm864, %v4788, 0
  %v4844 = vsel %vm864, %v4789, 0
  %v4847 = vsel %vm864, %v4790, 0
  %v4850 = vsel %vm864, %v4791, 0
  %v4853 = vsel %vm864, %v4792, 0
  %v4856 = vsel %vm864, %v4793, 0
  %v4859 = vsel %vm864, %v4794, 0
  %v4862 = vsel %vm864, %v4795, 0
  %v4865 = vsel %vm864, %v4796, 0
  %v4868 = vsel %vm864, %v4797, 0
  %v4871 = vsel %vm864, %v4798, 0
  %v4874 = vsel %vm864, %v4799, 0
  %v4877 = vsel %vm864, %v4800, 0
  %v4880 = vsel %vm864, %v4801, 0
  %v4883 = vsel %vm864, %v4802, 0
  %v4886 = vsel %vm864, %v4803, 0
  %v4889 = vsel %vm864, %v4804, 0
  %v4892 = vsel %vm864, %v4805, 0
  %v4895 = vsel %vm864, %v4806, 0
  %v4898 = vsel %vm864, %v4807, 0
  %v4901 = vsel %vm864, %v4808, 0
  %v4904 = vsel %vm864, %v4809, 0
  %v4907 = vsel %vm864, %v4810, 0
  %v4910 = vsel %vm864, %v4811, 0
  %v4913 = vsel %vm864, %v4812, 0
  %v4916 = vsel %vm864, %v4813, 0
  %v4919 = vsel %vm864, %v4814, 0
  %4921 = vmatprep.subr.mxu0 0.0
  %4922 = vmatpush1.xpose.msra.mxu0 %v4826
  %4923 = vmatprep.subr.mxu0 0.0
  %4924 = vmatpush1.xpose.msra.mxu0 %v4829
  %4925 = vmatprep.subr.mxu0 0.0
  %4926 = vmatpush1.xpose.msra.mxu0 %v4832
  %4927 = vmatprep.subr.mxu0 0.0
  %4928 = vmatpush1.xpose.msra.mxu0 %v4835
  %4929 = vmatprep.subr.mxu0 0.0
  %4930 = vmatpush1.xpose.msra.mxu0 %v4838
  %4931 = vmatprep.subr.mxu0 0.0
  %4932 = vmatpush1.xpose.msra.mxu0 %v4841
  %4933 = vmatprep.subr.mxu0 0.0
  %4934 = vmatpush1.xpose.msra.mxu0 %v4844
  %4935 = vmatprep.subr.mxu0 0.0
  %4936 = vmatpush1.xpose.msra.mxu0 %v4847
  %4937 = vmatprep.subr.mxu0 0.0
  %4938 = vmatpush1.xpose.msra.mxu0 %v4850
  %4939 = vmatprep.subr.mxu0 0.0
  %4940 = vmatpush1.xpose.msra.mxu0 %v4853
  %4941 = vmatprep.subr.mxu0 0.0
  %4942 = vmatpush1.xpose.msra.mxu0 %v4856
  %4943 = vmatprep.subr.mxu0 0.0
  %4944 = vmatpush1.xpose.msra.mxu0 %v4859
  %4945 = vmatprep.subr.mxu0 0.0
  %4946 = vmatpush1.xpose.msra.mxu0 %v4862
  %4947 = vmatprep.subr.mxu0 0.0
  %4948 = vmatpush1.xpose.msra.mxu0 %v4865
  %4949 = vmatprep.subr.mxu0 0.0
  %4950 = vmatpush1.xpose.msra.mxu0 %v4868
  %4951 = vmatprep.subr.mxu0 0.0
  %4952 = vmatpush1.xpose.msra.mxu0 %v4871
  %4953 = vmatprep.subr.mxu0 0.0
  %4954 = vmatpush1.xpose.msra.mxu0 %v4874
  %4955 = vmatprep.subr.mxu0 0.0
  %4956 = vmatpush1.xpose.msra.mxu0 %v4877
  %4957 = vmatprep.subr.mxu0 0.0
  %4958 = vmatpush1.xpose.msra.mxu0 %v4880
  %4959 = vmatprep.subr.mxu0 0.0
  %4960 = vmatpush1.xpose.msra.mxu0 %v4883
  %4961 = vmatprep.subr.mxu0 0.0
  %4962 = vmatpush1.xpose.msra.mxu0 %v4886
  %4963 = vmatprep.subr.mxu0 0.0
  %4964 = vmatpush1.xpose.msra.mxu0 %v4889
  %4965 = vmatprep.subr.mxu0 0.0
  %4966 = vmatpush1.xpose.msra.mxu0 %v4892
  %4967 = vmatprep.subr.mxu0 0.0
  %4968 = vmatpush1.xpose.msra.mxu0 %v4895
  %4969 = vmatprep.subr.mxu0 0.0
  %4970 = vmatpush1.xpose.msra.mxu0 %v4898
  %4971 = vmatprep.subr.mxu0 0.0
  %4972 = vmatpush1.xpose.msra.mxu0 %v4901
  %4973 = vmatprep.subr.mxu0 0.0
  %4974 = vmatpush1.xpose.msra.mxu0 %v4904
  %4975 = vmatprep.subr.mxu0 0.0
  %4976 = vmatpush1.xpose.msra.mxu0 %v4907
  %4977 = vmatprep.subr.mxu0 0.0
  %4978 = vmatpush1.xpose.msra.mxu0 %v4910
  %4979 = vmatprep.subr.mxu0 0.0
  %4980 = vmatpush1.xpose.msra.mxu0 %v4913
  %4981 = vmatprep.subr.mxu0 0.0
  %4982 = vmatpush1.xpose.msra.mxu0 %v4916
  %4983 = vmatprep.subr.mxu0 0.0
  %4984 = vmatpush1.xpose.msra.mxu0 %v4919
  %4985 = vmatprep.mubr.f32.mxu0 0.0
  %4986 = vmatmul.mubr.f32.gmra.mrb[0].mxu0 %v4823
  %v4987 = vpop.f32.mrb[0].mxu0
  %v4988 = vadd.f32 %v4820, %v4987
  %v4989 = vpop.f32.mrb[0].mxu0
  %v4990 = vadd.f32 %v4820, %v4989
  %4991 = vdwg.mxu0
  %4992 = vst [vmem:[%s10] sm:$0xff] %v4988
  %4993 = vst [vmem:[%s10 + $0x8] sm:$0xff] %v4990
  // Predicated region
  $region42: #{_lambda_.1} parent=0 // pred_check
    _
  $region43: #{_lambda_.1} parent=0 // pred_check_branch
    %4995 = sbr.rel (0) target = $region45
  $region44: #{_lambda_.1} parent=0 // pred_region
    _
  $region45: #{_lambda_.1} parent=0 // pred_fallthru
    _
  // Predicated region
  $region46: #{_lambda_.1} parent=0 // pred_check
    _
  $region47: #{_lambda_.1} parent=0 // pred_check_branch
    %4997 = sbr.rel (0) target = $region49
  $region48: #{_lambda_.1} parent=0 // pred_region
    _
  $region49: #{_lambda_.1} parent=0 // pred_fallthru
    _

</llo_original>
